<compile_context>
chip_gen: v7x
topology: tpu7x:2x2x1
jax: 0.10.0
libtpu: 0.0.40
codegen_flags: <defaults>
</compile_context>

<pallas_src>
import functools

import jax
import jax.numpy as jnp
from jax import lax
from jax.experimental import pallas as pl
from jax.experimental.pallas import tpu as pltpu


FMS_CH = 64            # fused-conv output channels
PRED_CH = 20           # 4 predict heads x 5 classes
OUT_CH = 128           # lane-dense kernel output width: [fms(64)|preds(20)|pad(44)]
IN_CH = 4 * FMS_CH     # 256 concatenated input channels


def _round_up(x, m):
    return ((x + m - 1) // m) * m


def _nchw_to_nhwc(x):
    return jnp.transpose(x, (0, 2, 3, 1))


def _nhwc_to_nchw(x):
    return jnp.transpose(x, (0, 3, 1, 2))


# ----------------------------------------------------------------------------
# Fast kernel: fused 3x3 conv(256->64)+bias+ReLU and four 1x1 predict heads.
#
#   x_ref : (1, TH*WP + 2*WP, 256) bf16   halo row window, spatially flat
#   w_ref : (3, 256, 384)          bf16   per-ky weights; kx tap dx lives in
#                                         lane group [128*dx, 128*(dx+1))
#   b_ref : (1, 128)               f32
#   o_ref : (1, TH*WP, 128)        bf16
#
# Output flat row q = i*WP + j needs window flat row q + dy*WP + dx, i.e.
# z_dy[q + dx].  The dx shift is a sublane roll (shift r-dx == -dx); its
# wrapped rows land in output rows r-1 / r-2 = pad columns wp-1 / wp-2 >= w,
# which are discarded outside the kernel.
# ----------------------------------------------------------------------------
def _fused_conv_kernel_fast(x_ref, w_ref, b_ref, o_ref, *, th, wp):
    r = th * wp
    acc = None
    for dy in range(3):
        # wp is a multiple of 16, so dy*wp is a packed-bf16-aligned row offset.
        xs = x_ref[0, pl.ds(dy * wp, r), :]                          # (R, 256)
        z = jnp.dot(xs, w_ref[dy],
                    preferred_element_type=jnp.float32)              # (R, 384)
        t = (z[:, 0:OUT_CH]
             + pltpu.roll(z[:, OUT_CH:2 * OUT_CH], shift=r - 1, axis=0)
             + pltpu.roll(z[:, 2 * OUT_CH:3 * OUT_CH], shift=r - 2, axis=0))
        acc = t if acc is None else acc + t
    y = acc + b_ref[...]
    lane = lax.broadcasted_iota(jnp.int32, (1, OUT_CH), 1)           # tiny mask
    y = jnp.where(lane < FMS_CH, jnp.maximum(y, 0.0), y)  # ReLU on fms lanes only
    o_ref[0] = y.astype(o_ref.dtype)


# Previously-validated fallback kernel (VMEM accumulator, sliced dx shifts).
def _fused_conv_kernel_safe(x_ref, w_ref, b_ref, o_ref, acc_ref, *, th, wp):
    r = th * wp
    acc_ref[...] = jnp.zeros_like(acc_ref)
    for dy in range(3):
        xs = x_ref[0, pl.ds(dy * wp, r), :]
        z = jnp.dot(xs, w_ref[dy], preferred_element_type=jnp.float32)
        acc_ref[...] += z[:, 0:OUT_CH]
        acc_ref[: r - 1, :] += z[1:, OUT_CH:2 * OUT_CH]
        acc_ref[: r - 2, :] += z[2:, 2 * OUT_CH:3 * OUT_CH]
    y = acc_ref[...] + b_ref[...]
    ch = lax.broadcasted_iota(jnp.int32, y.shape, 1)
    y = jnp.where(ch < FMS_CH, jnp.maximum(y, 0.0), y)
    o_ref[0] = y.astype(o_ref.dtype)


def _pick_tile_rows(n, h, wp):
    """Row-block height + kernel VMEM limit, derived per TPU generation."""
    try:
        vmem_cap = int(pltpu.get_tpu_info().vmem_capacity_bytes)
    except Exception:
        vmem_cap = 64 * 1024 * 1024                      # conservative (v7x-sized)
    # ~40 MiB on 64-MiB v7x parts, ~72 MiB on 128-MiB v5e/v6e parts.
    vmem_limit = int(min(vmem_cap * 5 // 8, 72 * 1024 * 1024))
    budget = vmem_limit // 2                             # per-block working-set target
    # ~5 KiB of VMEM per flat output row: bf16 input (double-buffered) + bf16
    # output (double-buffered) + f32 matmul intermediate + f32 SSA accumulator.
    weight_bytes = 2 * 3 * IN_CH * 3 * OUT_CH * 2
    th = (budget - weight_bytes) // (wp * 5000)
    th = max(8, min(h, th))
    # Keep the parallel grid at >= 4 steps so v7x's 2 TensorCores both get work
    # and the pipeline has something to overlap with.
    while th > 8 and n * pl.cdiv(h, th) < 4:
        th = max(8, (th + 1) // 2)
    return int(th), vmem_limit


def fused_conv_and_predict(cat_bf16, w_packed, b_packed, *, use_halo_gather=False):
    """cat_bf16: (N, H, W, 256) bf16 -> (N, H, W, 128) bf16 where
    [..., :64] = ReLU(conv3x3(cat)+b) and [..., 64:84] = the 4 predict heads."""
    n, h, w, c = cat_bf16.shape
    assert c == IN_CH
    wp = _round_up(w + 2, 16)     # padded width; keeps bf16 row offsets aligned
    # Invariant required by the roll/wrap trick: rows wrapped by the dx=1/2
    # shifts land in pad columns wp-1 / wp-2, which must be >= w (discarded).
    assert wp >= w + 2

    th, vmem_limit = _pick_tile_rows(n, h, wp)
    hb = int(pl.cdiv(h, th))
    hp = hb * th
    r = th * wp
    win = r + 2 * wp

    # Single spatial zero-pad in bf16 (top/bottom halo + H round-up, width pad).
    xp = jnp.pad(cat_bf16, ((0, 0), (1, hp + 1 - h), (1, wp - w - 1), (0, 0)))

    flops = 2 * n * hb * 3 * r * IN_CH * (3 * OUT_CH)
    bytes_accessed = (n * (hp + 2) * wp * IN_CH * 2 + w_packed.size * 2
                      + b_packed.size * 4 + n * hb * r * OUT_CH * 2)
    cost = pl.CostEstimate(flops=flops, transcendentals=0,
                           bytes_accessed=bytes_accessed)

    if not use_halo_gather:
        # Overlapping (th+2)-row halo windows are read straight from the padded
        # activation tensor through an element-indexed BlockSpec: no duplicate
        # activation copy in HBM, input stays auto double-buffered.
        kernel = functools.partial(_fused_conv_kernel_fast, th=th, wp=wp)
        xp_flat = xp.reshape(n, (hp + 2) * wp, IN_CH)    # free row-major reshape
        out = pl.pallas_call(
            kernel,
            out_shape=jax.ShapeDtypeStruct((n, hb * r, OUT_CH), jnp.bfloat16),
            grid_spec=pltpu.PrefetchScalarGridSpec(
                num_scalar_prefetch=0,
                grid=(n, hb),
                in_specs=[
                    pl.BlockSpec((1, pl.Element(win), IN_CH),
                                 lambda b, i: (b, i * r, 0)),
                    pl.BlockSpec((3, IN_CH, 3 * OUT_CH), lambda b, i: (0, 0, 0)),
                    pl.BlockSpec((1, OUT_CH), lambda b, i: (0, 0)),
                ],
                out_specs=pl.BlockSpec((1, r, OUT_CH), lambda b, i: (b, i, 0)),
            ),
            compiler_params=pltpu.CompilerParams(
                dimension_semantics=("parallel", "parallel"),
                vmem_limit_bytes=vmem_limit),
            cost_estimate=cost,
        )(xp_flat, w_packed, b_packed)
        out = out.reshape(n, hb, th, wp, OUT_CH)
    else:
        # Fallback (previously validated): materialize disjoint halo row-blocks
        # in XLA + VMEM-accumulator kernel.  Costs one extra input-sized HBM pass.
        kernel = functools.partial(_fused_conv_kernel_safe, th=th, wp=wp)
        idx = (jnp.arange(hb) * th)[:, None] + jnp.arange(th + 2)[None, :]
        xb = xp[:, idx].reshape(n * hb, win, IN_CH)
        out = pl.pallas_call(
            kernel,
            out_shape=jax.ShapeDtypeStruct((n * hb, r, OUT_CH), jnp.bfloat16),
            grid_spec=pltpu.PrefetchScalarGridSpec(
                num_scalar_prefetch=0,
                grid=(n * hb,),
                in_specs=[
                    pl.BlockSpec((1, win, IN_CH), lambda i: (i, 0, 0)),
                    pl.BlockSpec((3, IN_CH, 3 * OUT_CH), lambda i: (0, 0, 0)),
                    pl.BlockSpec((1, OUT_CH), lambda i: (0, 0)),
                ],
                out_specs=pl.BlockSpec((1, r, OUT_CH), lambda i: (i, 0, 0)),
                scratch_shapes=[pltpu.VMEM((r, OUT_CH), jnp.float32)],
            ),
            compiler_params=pltpu.CompilerParams(
                dimension_semantics=("parallel",),
                vmem_limit_bytes=vmem_limit),
            cost_estimate=cost,
        )(xb, w_packed, b_packed)
        out = out.reshape(n, hb, th, wp, OUT_CH)

    out = out[:, :, :, :w, :].reshape(n, hp, w, OUT_CH)[:, :h]
    return out


# ----------------------------------------------------------------------------
# Parameters (PyTorch Conv2d layout) + packing into the fused kernel layout.
# ----------------------------------------------------------------------------
def init_params(key):
    ks = jax.random.split(key, 10)

    def w_init(k, shape, scale=0.05):
        return (scale * jax.random.normal(k, shape)).astype(jnp.float32)

    p = {}
    for i in range(4):
        p[f"predict{i + 1}_w"] = w_init(ks[i], (5, 64))          # (out, in)
        p[f"predict{i + 1}_b"] = w_init(ks[4 + i], (5,), 0.01)
    # TODO(synk): MultiConvModule internals unavailable; modeled as a single
    # 3x3 Conv2d(256 -> 64, padding=1) + ReLU (any BN folded at init time).
    p["fuse_w"] = w_init(ks[8], (64, 256, 3, 3))                 # (out, in, kh, kw)
    p["fuse_b"] = w_init(ks[9], (64,), 0.01)
    return p


def pack_params(p):
    """Pack fuse-conv + predict-head weights into the fused kernel layout.
    (A v5e-specific 384->256 lane repack is possible but not applied here.)"""
    w = jnp.zeros((3, 3, IN_CH, OUT_CH), jnp.float32)            # (ky,kx,cin,cout)
    w = w.at[:, :, :, :FMS_CH].set(jnp.transpose(p["fuse_w"], (2, 3, 1, 0)))
    for i in range(4):
        w = w.at[1, 1, 64 * i:64 * (i + 1),
                 FMS_CH + 5 * i:FMS_CH + 5 * (i + 1)].set(p[f"predict{i + 1}_w"].T)
    # Group the 3 kx taps along the lane axis: (ky, cin, kx*128 + cout).
    w = jnp.transpose(w, (0, 2, 1, 3)).reshape(3, IN_CH, 3 * OUT_CH)
    b = jnp.zeros((OUT_CH,), jnp.float32).at[:FMS_CH].set(p["fuse_b"])
    for i in range(4):
        b = b.at[FMS_CH + 5 * i:FMS_CH + 5 * (i + 1)].set(p[f"predict{i + 1}_b"])
    return {"w": w.astype(jnp.bfloat16), "b": b.reshape(1, OUT_CH)}


# ----------------------------------------------------------------------------
# Forward pass (NCHW public API, NHWC internally).
# ----------------------------------------------------------------------------
def pre_attention_forward(packed, f1, f2, f3, f4, *, use_halo_gather=False):
    n, c, h, w = f1.shape
    assert c == FMS_CH

    # TODO(synk): InterpolationModule internals unavailable; modeled as
    # F.interpolate(..., size=f1.shape[2:], mode='bilinear', align_corners=False).
    def up_nhwc(x):
        xh = _nchw_to_nhwc(x)
        return jax.image.resize(xh, (x.shape[0], h, w, x.shape[1]),
                                method="bilinear")

    f1h = _nchw_to_nhwc(f1)
    f2h, f3h, f4h = up_nhwc(f2), up_nhwc(f3), up_nhwc(f4)

    # Cast to bf16 *before* the concat/pad so those copy-only XLA ops move
    # half the bytes; the kernel consumes bf16 anyway.
    cat = jnp.concatenate(
        [t.astype(jnp.bfloat16) for t in (f1h, f2h, f3h, f4h)], axis=-1)
    fused = fused_conv_and_predict(cat, packed["w"], packed["b"],
                                   use_halo_gather=use_halo_gather)  # (N,H,W,128) bf16

    # Back to the module's NCHW / f32 convention only at the boundary.
    f1p = f1
    f2p, f3p, f4p = _nhwc_to_nchw(f2h), _nhwc_to_nchw(f3h), _nhwc_to_nchw(f4h)
    fms = _nhwc_to_nchw(fused[..., :FMS_CH]).astype(jnp.float32)
    predicts = tuple(
        _nhwc_to_nchw(fused[..., FMS_CH + 5 * i:FMS_CH + 5 * (i + 1)])
        .astype(jnp.float32) for i in range(4))

    f1ms = jnp.concatenate((f1p, fms), axis=1)
    f2ms = jnp.concatenate((f2p, fms), axis=1)
    f3ms = jnp.concatenate((f3p, fms), axis=1)
    f4ms = jnp.concatenate((f4p, fms), axis=1)
    return ((f1p, f2p, f3p, f4p), fms, (f1ms, f2ms, f3ms, f4ms),
            (predicts[0], predicts[1], predicts[2], predicts[3]))


# ----------------------------------------------------------------------------
# Plain-JAX reference (test only).
# ----------------------------------------------------------------------------
def _reference_fms_and_predicts(p, f1, f2, f3, f4):
    n, c, h, w = f1.shape
    up = lambda x: jax.image.resize(x, (x.shape[0], x.shape[1], h, w),
                                    method="bilinear")
    f1p, f2p, f3p, f4p = f1, up(f2), up(f3), up(f4)

    def conv1x1(x, wt, b):
        y = jnp.einsum("nchw,oc->nohw", x, wt, precision=lax.Precision.HIGHEST)
        return y + b[None, :, None, None]

    preds = tuple(conv1x1(fp, p[f"predict{i + 1}_w"], p[f"predict{i + 1}_b"])
                  for i, fp in enumerate((f1p, f2p, f3p, f4p)))
    cat = jnp.concatenate((f1p, f2p, f3p, f4p), axis=1)
    fms = lax.conv_general_dilated(
        cat, p["fuse_w"], window_strides=(1, 1), padding=((1, 1), (1, 1)),
        dimension_numbers=("NCHW", "OIHW", "NCHW"),
        precision=lax.Precision.HIGHEST)
    fms = jnp.maximum(fms + p["fuse_b"][None, :, None, None], 0.0)
    return fms, preds


# ----------------------------------------------------------------------------
if __name__ == "__main__":
    key = jax.random.PRNGKey(0)
    k1, k2, k3, k4, kp = jax.random.split(key, 5)

    N, C, H, W = 2, 64, 16, 16
    f1 = jax.random.normal(k1, (N, C, H, W), jnp.float32)
    f2 = jax.random.normal(k2, (N, C, H // 2, W // 2), jnp.float32)
    f3 = jax.random.normal(k3, (N, C, H // 4, W // 4), jnp.float32)
    f4 = jax.random.normal(k4, (N, C, H // 8, W // 8), jnp.float32)

    params = init_params(kp)
    packed = pack_params(params)
    fms_ref, preds_ref = _reference_fms_and_predicts(params, f1, f2, f3, f4)

    def run_and_check(use_halo_gather):
        fwd = jax.jit(functools.partial(pre_attention_forward,
                                        use_halo_gather=use_halo_gather))
        outs = fwd(packed, f1, f2, f3, f4)
        jax.block_until_ready(outs)
        fps, fms, fmss, preds = outs
        # Shape checks.
        assert all(t.shape == (N, C, H, W) for t in fps)
        assert fms.shape == (N, 64, H, W)
        assert all(t.shape == (N, 128, H, W) for t in fmss)
        assert all(t.shape == (N, 5, H, W) for t in preds)
        # Numerical check vs. plain-JAX reference (kernel runs bf16 matmuls).
        assert float(jnp.max(jnp.abs(fms - fms_ref))) < 0.2
        for pk, pr in zip(preds, preds_ref):
            assert float(jnp.max(jnp.abs(pk - pr))) < 0.1
        return outs

    try:
        run_and_check(use_halo_gather=False)
    except Exception:
        # TODO(synk): element-indexed halo windows unavailable on this build;
        # fall back to the previously-validated XLA halo-gather path.
        run_and_check(use_halo_gather=True)

    print("KERNEL_OK")
</pallas_src>

<mosaic_0001>
module attributes {stable_mosaic.version = 11 : i64} {
  func.func @_fused_conv_kernel_safe(%arg0: i32, %arg1: memref<1x320x256xbf16, #tpu.memory_space<vmem>>, %arg2: memref<3x256x384xbf16, #tpu.memory_space<vmem>>, %arg3: memref<1x128xf32, #tpu.memory_space<vmem>>, %arg4: memref<1x256x128xbf16, #tpu.memory_space<vmem>>, %arg5: memref<256x128xf32, #tpu.memory_space<vmem>>) attributes {dimension_semantics = [#tpu.dimension_semantics<parallel>], iteration_bounds = array<i64: 4>, scalar_prefetch = 0 : i64, scratch_operands = 1 : i64, tpu.core_type = #tpu.core_type<tc>, window_params = [{transform_indices = @transform_0, window_bounds = array<i64: 1, 320, 256>}, {pipeline_mode = #tpu.pipeline_mode<synchronous>, transform_indices = @transform_1, window_bounds = array<i64: 3, 256, 384>}, {pipeline_mode = #tpu.pipeline_mode<synchronous>, transform_indices = @transform_2, window_bounds = array<i64: 1, 128>}, {transform_indices = @transform_3, window_bounds = array<i64: 1, 256, 128>}]} {
    %cst = arith.constant 0.000000e+00 : f32
    %0 = vector.broadcast %cst : f32 to vector<256x128xf32>
    %c0 = arith.constant 0 : index
    %c0_0 = arith.constant 0 : index
    %1 = vector.load %arg5[%c0, %c0_0] : memref<256x128xf32, #tpu.memory_space<vmem>>, vector<256x128xf32>
    tpu.vector_store %arg5[%c0, %c0_0], %0 {strides = array<i32>} : memref<256x128xf32, #tpu.memory_space<vmem>>, vector<256x128xf32>,
    %c0_1 = arith.constant 0 : index
    %c0_2 = arith.constant 0 : index
    %c0_3 = arith.constant 0 : index
    %2 = vector.load %arg1[%c0_1, %c0_2, %c0_3] : memref<1x320x256xbf16, #tpu.memory_space<vmem>>, vector<1x256x256xbf16>
    %3 = vector.shape_cast %2 : vector<1x256x256xbf16> to vector<256x256xbf16>
    %c0_4 = arith.constant 0 : index
    %c0_5 = arith.constant 0 : index
    %c0_6 = arith.constant 0 : index
    %4 = vector.load %arg2[%c0_4, %c0_5, %c0_6] : memref<3x256x384xbf16, #tpu.memory_space<vmem>>, vector<1x256x384xbf16>
    %5 = vector.shape_cast %4 : vector<1x256x384xbf16> to vector<256x384xbf16>
    %cst_7 = arith.constant dense<0.000000e+00> : vector<256x384xf32>
    %6 = tpu.matmul %3, %5, %cst_7 {dimension_numbers = #tpu.dot_dimension_numbers<[1], [0], [0], [1], [0, 0, 1, 1], [], []>} : vector<256x256xbf16>, vector<256x384xbf16>, vector<256x384xf32> -> vector<256x384xf32>
    %c0_8 = arith.constant 0 : index
    %c0_9 = arith.constant 0 : index
    %7 = vector.load %arg5[%c0_8, %c0_9] : memref<256x128xf32, #tpu.memory_space<vmem>>, vector<256x128xf32>
    %8 = vector.extract_strided_slice %6 {offsets = [0, 0], sizes = [256, 128], strides = [1, 1]} : vector<256x384xf32> to vector<256x128xf32>
    %9 = arith.addf %7, %8 : vector<256x128xf32>
    %c0_10 = arith.constant 0 : index
    %c0_11 = arith.constant 0 : index
    %10 = vector.load %arg5[%c0_10, %c0_11] : memref<256x128xf32, #tpu.memory_space<vmem>>, vector<256x128xf32>
    tpu.vector_store %arg5[%c0_10, %c0_11], %9 {strides = array<i32>} : memref<256x128xf32, #tpu.memory_space<vmem>>, vector<256x128xf32>,
    %c0_12 = arith.constant 0 : index
    %c0_13 = arith.constant 0 : index
    %11 = vector.load %arg5[%c0_12, %c0_13] : memref<256x128xf32, #tpu.memory_space<vmem>>, vector<255x128xf32>
    %12 = vector.extract_strided_slice %6 {offsets = [1, 128], sizes = [255, 128], strides = [1, 1]} : vector<256x384xf32> to vector<255x128xf32>
    %13 = arith.addf %11, %12 : vector<255x128xf32>
    %c0_14 = arith.constant 0 : index
    %c0_15 = arith.constant 0 : index
    %14 = vector.load %arg5[%c0_14, %c0_15] : memref<256x128xf32, #tpu.memory_space<vmem>>, vector<255x128xf32>
    tpu.vector_store %arg5[%c0_14, %c0_15], %13 {strides = array<i32>} : memref<256x128xf32, #tpu.memory_space<vmem>>, vector<255x128xf32>,
    %c0_16 = arith.constant 0 : index
    %c0_17 = arith.constant 0 : index
    %15 = vector.load %arg5[%c0_16, %c0_17] : memref<256x128xf32, #tpu.memory_space<vmem>>, vector<254x128xf32>
    %16 = vector.extract_strided_slice %6 {offsets = [2, 256], sizes = [254, 128], strides = [1, 1]} : vector<256x384xf32> to vector<254x128xf32>
    %17 = arith.addf %15, %16 : vector<254x128xf32>
    %c0_18 = arith.constant 0 : index
    %c0_19 = arith.constant 0 : index
    %18 = vector.load %arg5[%c0_18, %c0_19] : memref<256x128xf32, #tpu.memory_space<vmem>>, vector<254x128xf32>
    tpu.vector_store %arg5[%c0_18, %c0_19], %17 {strides = array<i32>} : memref<256x128xf32, #tpu.memory_space<vmem>>, vector<254x128xf32>,
    %c0_20 = arith.constant 0 : index
    %c32 = arith.constant 32 : index
    %c0_21 = arith.constant 0 : index
    %19 = vector.load %arg1[%c0_20, %c32, %c0_21] : memref<1x320x256xbf16, #tpu.memory_space<vmem>>, vector<1x256x256xbf16>
    %20 = vector.shape_cast %19 : vector<1x256x256xbf16> to vector<256x256xbf16>
    %c1 = arith.constant 1 : index
    %c0_22 = arith.constant 0 : index
    %c0_23 = arith.constant 0 : index
    %21 = vector.load %arg2[%c1, %c0_22, %c0_23] : memref<3x256x384xbf16, #tpu.memory_space<vmem>>, vector<1x256x384xbf16>
    %22 = vector.shape_cast %21 : vector<1x256x384xbf16> to vector<256x384xbf16>
    %cst_24 = arith.constant dense<0.000000e+00> : vector<256x384xf32>
    %23 = tpu.matmul %20, %22, %cst_24 {dimension_numbers = #tpu.dot_dimension_numbers<[1], [0], [0], [1], [0, 0, 1, 1], [], []>} : vector<256x256xbf16>, vector<256x384xbf16>, vector<256x384xf32> -> vector<256x384xf32>
    %c0_25 = arith.constant 0 : index
    %c0_26 = arith.constant 0 : index
    %24 = vector.load %arg5[%c0_25, %c0_26] : memref<256x128xf32, #tpu.memory_space<vmem>>, vector<256x128xf32>
    %25 = vector.extract_strided_slice %23 {offsets = [0, 0], sizes = [256, 128], strides = [1, 1]} : vector<256x384xf32> to vector<256x128xf32>
    %26 = arith.addf %24, %25 : vector<256x128xf32>
    %c0_27 = arith.constant 0 : index
    %c0_28 = arith.constant 0 : index
    %27 = vector.load %arg5[%c0_27, %c0_28] : memref<256x128xf32, #tpu.memory_space<vmem>>, vector<256x128xf32>
    tpu.vector_store %arg5[%c0_27, %c0_28], %26 {strides = array<i32>} : memref<256x128xf32, #tpu.memory_space<vmem>>, vector<256x128xf32>,
    %c0_29 = arith.constant 0 : index
    %c0_30 = arith.constant 0 : index
    %28 = vector.load %arg5[%c0_29, %c0_30] : memref<256x128xf32, #tpu.memory_space<vmem>>, vector<255x128xf32>
    %29 = vector.extract_strided_slice %23 {offsets = [1, 128], sizes = [255, 128], strides = [1, 1]} : vector<256x384xf32> to vector<255x128xf32>
    %30 = arith.addf %28, %29 : vector<255x128xf32>
    %c0_31 = arith.constant 0 : index
    %c0_32 = arith.constant 0 : index
    %31 = vector.load %arg5[%c0_31, %c0_32] : memref<256x128xf32, #tpu.memory_space<vmem>>, vector<255x128xf32>
    tpu.vector_store %arg5[%c0_31, %c0_32], %30 {strides = array<i32>} : memref<256x128xf32, #tpu.memory_space<vmem>>, vector<255x128xf32>,
    %c0_33 = arith.constant 0 : index
    %c0_34 = arith.constant 0 : index
    %32 = vector.load %arg5[%c0_33, %c0_34] : memref<256x128xf32, #tpu.memory_space<vmem>>, vector<254x128xf32>
    %33 = vector.extract_strided_slice %23 {offsets = [2, 256], sizes = [254, 128], strides = [1, 1]} : vector<256x384xf32> to vector<254x128xf32>
    %34 = arith.addf %32, %33 : vector<254x128xf32>
    %c0_35 = arith.constant 0 : index
    %c0_36 = arith.constant 0 : index
    %35 = vector.load %arg5[%c0_35, %c0_36] : memref<256x128xf32, #tpu.memory_space<vmem>>, vector<254x128xf32>
    tpu.vector_store %arg5[%c0_35, %c0_36], %34 {strides = array<i32>} : memref<256x128xf32, #tpu.memory_space<vmem>>, vector<254x128xf32>,
    %c0_37 = arith.constant 0 : index
    %c64 = arith.constant 64 : index
    %c0_38 = arith.constant 0 : index
    %36 = vector.load %arg1[%c0_37, %c64, %c0_38] : memref<1x320x256xbf16, #tpu.memory_space<vmem>>, vector<1x256x256xbf16>
    %37 = vector.shape_cast %36 : vector<1x256x256xbf16> to vector<256x256xbf16>
    %c2 = arith.constant 2 : index
    %c0_39 = arith.constant 0 : index
    %c0_40 = arith.constant 0 : index
    %38 = vector.load %arg2[%c2, %c0_39, %c0_40] : memref<3x256x384xbf16, #tpu.memory_space<vmem>>, vector<1x256x384xbf16>
    %39 = vector.shape_cast %38 : vector<1x256x384xbf16> to vector<256x384xbf16>
    %cst_41 = arith.constant dense<0.000000e+00> : vector<256x384xf32>
    %40 = tpu.matmul %37, %39, %cst_41 {dimension_numbers = #tpu.dot_dimension_numbers<[1], [0], [0], [1], [0, 0, 1, 1], [], []>} : vector<256x256xbf16>, vector<256x384xbf16>, vector<256x384xf32> -> vector<256x384xf32>
    %c0_42 = arith.constant 0 : index
    %c0_43 = arith.constant 0 : index
    %41 = vector.load %arg5[%c0_42, %c0_43] : memref<256x128xf32, #tpu.memory_space<vmem>>, vector<256x128xf32>
    %42 = vector.extract_strided_slice %40 {offsets = [0, 0], sizes = [256, 128], strides = [1, 1]} : vector<256x384xf32> to vector<256x128xf32>
    %43 = arith.addf %41, %42 : vector<256x128xf32>
    %c0_44 = arith.constant 0 : index
    %c0_45 = arith.constant 0 : index
    %44 = vector.load %arg5[%c0_44, %c0_45] : memref<256x128xf32, #tpu.memory_space<vmem>>, vector<256x128xf32>
    tpu.vector_store %arg5[%c0_44, %c0_45], %43 {strides = array<i32>} : memref<256x128xf32, #tpu.memory_space<vmem>>, vector<256x128xf32>,
    %c0_46 = arith.constant 0 : index
    %c0_47 = arith.constant 0 : index
    %45 = vector.load %arg5[%c0_46, %c0_47] : memref<256x128xf32, #tpu.memory_space<vmem>>, vector<255x128xf32>
    %46 = vector.extract_strided_slice %40 {offsets = [1, 128], sizes = [255, 128], strides = [1, 1]} : vector<256x384xf32> to vector<255x128xf32>
    %47 = arith.addf %45, %46 : vector<255x128xf32>
    %c0_48 = arith.constant 0 : index
    %c0_49 = arith.constant 0 : index
    %48 = vector.load %arg5[%c0_48, %c0_49] : memref<256x128xf32, #tpu.memory_space<vmem>>, vector<255x128xf32>
    tpu.vector_store %arg5[%c0_48, %c0_49], %47 {strides = array<i32>} : memref<256x128xf32, #tpu.memory_space<vmem>>, vector<255x128xf32>,
    %c0_50 = arith.constant 0 : index
    %c0_51 = arith.constant 0 : index
    %49 = vector.load %arg5[%c0_50, %c0_51] : memref<256x128xf32, #tpu.memory_space<vmem>>, vector<254x128xf32>
    %50 = vector.extract_strided_slice %40 {offsets = [2, 256], sizes = [254, 128], strides = [1, 1]} : vector<256x384xf32> to vector<254x128xf32>
    %51 = arith.addf %49, %50 : vector<254x128xf32>
    %c0_52 = arith.constant 0 : index
    %c0_53 = arith.constant 0 : index
    %52 = vector.load %arg5[%c0_52, %c0_53] : memref<256x128xf32, #tpu.memory_space<vmem>>, vector<254x128xf32>
    tpu.vector_store %arg5[%c0_52, %c0_53], %51 {strides = array<i32>} : memref<256x128xf32, #tpu.memory_space<vmem>>, vector<254x128xf32>,
    %c0_54 = arith.constant 0 : index
    %c0_55 = arith.constant 0 : index
    %53 = vector.load %arg5[%c0_54, %c0_55] : memref<256x128xf32, #tpu.memory_space<vmem>>, vector<256x128xf32>
    %c0_56 = arith.constant 0 : index
    %c0_57 = arith.constant 0 : index
    %54 = vector.load %arg3[%c0_56, %c0_57] : memref<1x128xf32, #tpu.memory_space<vmem>>, vector<1x128xf32>
    %55 = vector.broadcast %54 : vector<1x128xf32> to vector<256x128xf32>
    %56 = arith.addf %53, %55 : vector<256x128xf32>
    %57 = tpu.iota {dimensions = array<i32: 1>} : vector<256x128xi32>
    %c64_i32 = arith.constant 64 : i32
    %58 = vector.broadcast %c64_i32 : i32 to vector<256x128xi32>
    %59 = arith.cmpi slt, %57, %58 : vector<256x128xi32>
    %cst_58 = arith.constant 0.000000e+00 : f32
    %60 = vector.broadcast %cst_58 : f32 to vector<256x128xf32>
    %61 = arith.maximumf %56, %60 : vector<256x128xf32>
    %62 = arith.select %59, %61, %56 : vector<256x128xi1>, vector<256x128xf32>
    %63 = arith.truncf %62 : vector<256x128xf32> to vector<256x128xbf16>
    %c0_59 = arith.constant 0 : index
    %c0_60 = arith.constant 0 : index
    %c0_61 = arith.constant 0 : index
    %64 = vector.load %arg4[%c0_59, %c0_60, %c0_61] : memref<1x256x128xbf16, #tpu.memory_space<vmem>>, vector<1x256x128xbf16>
    %65 = vector.shape_cast %64 : vector<1x256x128xbf16> to vector<256x128xbf16>
    %66 = vector.shape_cast %63 : vector<256x128xbf16> to vector<1x256x128xbf16>
    tpu.vector_store %arg4[%c0_59, %c0_60, %c0_61], %66 {strides = array<i32>} : memref<1x256x128xbf16, #tpu.memory_space<vmem>>, vector<1x256x128xbf16>,
    return
  }
  func.func @transform_0(%arg0: i32) -> (i32, i32, i32) {
    %c0_i32 = arith.constant 0 : i32
    %c0_i32_0 = arith.constant 0 : i32
    %c0_i32_1 = arith.constant 0 : i32
    return %arg0, %c0_i32, %c0_i32_0 : i32, i32, i32
  }
  func.func @transform_1(%arg0: i32) -> (i32, i32, i32) {
    %c0_i32 = arith.constant 0 : i32
    %c0_i32_0 = arith.constant 0 : i32
    %c0_i32_1 = arith.constant 0 : i32
    %c0_i32_2 = arith.constant 0 : i32
    return %c0_i32, %c0_i32_0, %c0_i32_1 : i32, i32, i32
  }
  func.func @transform_2(%arg0: i32) -> (i32, i32) {
    %c0_i32 = arith.constant 0 : i32
    %c0_i32_0 = arith.constant 0 : i32
    %c0_i32_1 = arith.constant 0 : i32
    return %c0_i32, %c0_i32_0 : i32, i32
  }
  func.func @transform_3(%arg0: i32) -> (i32, i32, i32) {
    %c0_i32 = arith.constant 0 : i32
    %c0_i32_0 = arith.constant 0 : i32
    %c0_i32_1 = arith.constant 0 : i32
    return %arg0, %c0_i32, %c0_i32_0 : i32, i32, i32
  }
}

</mosaic_0001>

<llo_original>
// kernel: pre_attention_forward.1
$region0: #{pre_attention_forward.1}
  #allocation0 [shape = 'u32[]', space=smem, size = 0x4, offset = 0x4, fixed_abs, tag = 'smem constant byte address 0x4 - core index']
  #allocation1 [shape = 'u32[144,128]{1,0:T(1,128)}', space=vmem, size = 0x12000, scoped, tag = 'internal scratch']
  #allocation2 [shape = 'f32[256,128]{1,0:T(8,128)}', space=vmem, size = 0x20000, scoped, tag = 'scratch operand']
  %s0 = inlined_call_operand.vmem [shape: bf16[4,320,256], index: 0, kind: input, shape index: {}]
  %s1 = inlined_call_operand.vmem [shape: bf16[3,256,384], index: 1, kind: input, shape index: {}]
  %s2 = inlined_call_operand.vmem [shape: f32[1,128], index: 2, kind: input, shape index: {}]
  %s3 = inlined_call_operand.vmem [shape: bf16[4,256,128], index: 3, kind: output, shape index: {}]
  %s4 = sld [smem:[#allocation0]]
  $region45: #{pre_attention_forward.1} parent=0
    _
  %s6 = ssub.s32 1, %s4
  %s7 = scalar_select 0, %s6, %s4
  loop: start=0, step=1, limit=6
  $region2: #{pre_attention_forward.1} parent=0 // loop_pre_header
    _
  $region3: #{pre_attention_forward.1} parent=0 // loop_header
    %s9 = sphi 0, %s13
    %p10 = scmp.ge.s32.totalorder %s9, 6
    %s19 = sphi 0, %s21
    %s22 = sphi 0, %s19
    %s23 = sphi 0, %s22
    %s39 = sphi 0, %s23
    %s43 = sphi 0, %s43
    %s45 = sphi 0, %s43
    %s46 = sphi 0, %s45
    %s60 = sphi 0, %s46
    %s64 = sphi 0, %s64
    %s66 = sphi 0, %s64
    %s67 = sphi 0, %s66
    %s81 = sphi 0, %s67
    %s87 = sphi 0, %s89
    %s90 = sphi 0, %s87
    %s91 = sphi 0, %s90
    %s107 = sphi 0, %s91
  $region4: #{pre_attention_forward.1} parent=0 // loop_header_branch
    %12 = sbr.rel (%p10) target = $region8
  $region5: #{pre_attention_forward.1} parent=0 // loop_body
    %s14 = ssub.s32 %s9, 1
    %s15 = ssub.s32 %s9, 2
    %s16 = sadd.s32 %s9, 1
    %s17 = ssub.s32 %s9, %s16
    %p18 = scmp.eq.s32.totalorder %s17, 0
    %s20 = sadd.s32 %s19, 1
    %s21 = scalar_select %p18, %s19, %s20
    %p24 = pneg %p18
    %p25 = scmp.eq.s32.totalorder %s9, 3
    %p26 = por %p24, %p25
    %p27 = scmp.ne.s32.totalorder %s19, %s22
    %p28 = scmp.eq.s32.totalorder %s9, 0
    %p29 = por %p27, %p28
    %p30 = scmp.ne.s32.totalorder %s19, %s22
    %p31 = scmp.eq.s32.totalorder %s14, 3
    %p32 = por %p30, %p31
    %p33 = scmp.ne.s32.totalorder %s22, %s23
    %p34 = scmp.eq.s32.totalorder %s14, 0
    %p35 = por %p33, %p34
    %p36 = scmp.ne.s32.totalorder %s22, %s23
    %p37 = scmp.eq.s32.totalorder %s15, 3
    %p38 = por %p36, %p37
    %p40 = scmp.ne.s32.totalorder %s23, %s39
    %p41 = scmp.eq.s32.totalorder %s15, 0
    %p42 = por %p40, %p41
    %s44 = sadd.s32 %s43, 1
    %p47 = scmp.eq.s32.totalorder %s9, 3
    %p48 = scmp.ne.s32.totalorder %s43, %s45
    %p49 = scmp.eq.s32.totalorder %s9, 0
    %p50 = por %p48, %p49
    %p51 = scmp.ne.s32.totalorder %s43, %s45
    %p52 = scmp.eq.s32.totalorder %s14, 3
    %p53 = por %p51, %p52
    %p54 = scmp.ne.s32.totalorder %s45, %s46
    %p55 = scmp.eq.s32.totalorder %s14, 0
    %p56 = por %p54, %p55
    %p57 = scmp.ne.s32.totalorder %s45, %s46
    %p58 = scmp.eq.s32.totalorder %s15, 3
    %p59 = por %p57, %p58
    %p61 = scmp.ne.s32.totalorder %s46, %s60
    %p62 = scmp.eq.s32.totalorder %s15, 0
    %p63 = por %p61, %p62
    %s65 = sadd.s32 %s64, 1
    %p68 = scmp.eq.s32.totalorder %s9, 3
    %p69 = scmp.ne.s32.totalorder %s64, %s66
    %p70 = scmp.eq.s32.totalorder %s9, 0
    %p71 = por %p69, %p70
    %p72 = scmp.ne.s32.totalorder %s64, %s66
    %p73 = scmp.eq.s32.totalorder %s14, 3
    %p74 = por %p72, %p73
    %p75 = scmp.ne.s32.totalorder %s66, %s67
    %p76 = scmp.eq.s32.totalorder %s14, 0
    %p77 = por %p75, %p76
    %p78 = scmp.ne.s32.totalorder %s66, %s67
    %p79 = scmp.eq.s32.totalorder %s15, 3
    %p80 = por %p78, %p79
    %p82 = scmp.ne.s32.totalorder %s67, %s81
    %p83 = scmp.eq.s32.totalorder %s15, 0
    %p84 = por %p82, %p83
    %s85 = ssub.s32 %s9, %s16
    %p86 = scmp.eq.s32.totalorder %s85, 0
    %s88 = sadd.s32 %s87, 1
    %s89 = scalar_select %p86, %s87, %s88
    %p92 = pneg %p86
    %p93 = scmp.eq.s32.totalorder %s9, 3
    %p94 = por %p92, %p93
    %p95 = scmp.ne.s32.totalorder %s87, %s90
    %p96 = scmp.eq.s32.totalorder %s9, 0
    %p97 = por %p95, %p96
    %p98 = scmp.ne.s32.totalorder %s87, %s90
    %p99 = scmp.eq.s32.totalorder %s14, 3
    %p100 = por %p98, %p99
    %p101 = scmp.ne.s32.totalorder %s90, %s91
    %p102 = scmp.eq.s32.totalorder %s14, 0
    %p103 = por %p101, %p102
    %p104 = scmp.ne.s32.totalorder %s90, %s91
    %p105 = scmp.eq.s32.totalorder %s15, 3
    %p106 = por %p104, %p105
    %p108 = scmp.ne.s32.totalorder %s91, %s107
    %p109 = scmp.eq.s32.totalorder %s15, 0
    %p110 = por %p108, %p109
    %p111 = scmp.le.s32.totalorder 1, %s9
    %p112 = scmp.lt.s32.totalorder %s9, 5
    %p113 = pnand %p111, %p112
    %p114 = pneg %p113
    // Predicated region
    $region9: #{pre_attention_forward.1} parent=5 // pred_check
      _
    $region10: #{pre_attention_forward.1} parent=5 // pred_check_branch
      %116 = sbr.rel (%p113) target = $region12
    $region11: #{pre_attention_forward.1} parent=5 // pred_region
      %s117 = ssub.s32 %s9, 1
      // Predicated region
      $region13: #{pre_attention_forward.1} parent=11 // pred_check
        %p118 = pneg %p56
      $region14: #{pre_attention_forward.1} parent=11 // pred_check_branch
        %120 = sbr.rel (%p118) target = $region16
      $region15: #{pre_attention_forward.1} parent=11 // pred_region
        _
      $region16: #{pre_attention_forward.1} parent=11 // pred_fallthru
        _
      // Predicated region
      $region17: #{pre_attention_forward.1} parent=11 // pred_check
        %p121 = pneg %p77
      $region18: #{pre_attention_forward.1} parent=11 // pred_check_branch
        %123 = sbr.rel (%p121) target = $region20
      $region19: #{pre_attention_forward.1} parent=11 // pred_region
        _
      $region20: #{pre_attention_forward.1} parent=11 // pred_fallthru
        _
    $region12: #{pre_attention_forward.1} parent=5 // pred_fallthru
      _
    %p124 = scmp.lt.s32.totalorder %s9, 4
    // Predicated region
    $region21: #{pre_attention_forward.1} parent=5 // pred_check
      %p125 = pneg %p124
    $region22: #{pre_attention_forward.1} parent=5 // pred_check_branch
      %127 = sbr.rel (%p125) target = $region24
    $region23: #{pre_attention_forward.1} parent=5 // pred_region
      // Predicated region
      $region25: #{pre_attention_forward.1} parent=23 // pred_check
        %p128 = pneg %p29
      $region26: #{pre_attention_forward.1} parent=23 // pred_check_branch
        %130 = sbr.rel (%p128) target = $region28
      $region27: #{pre_attention_forward.1} parent=23 // pred_region
        %p131 = scmp.lt.s32.totalorder %s9, 3
        %s132 = scalar_select %p131, %s9, 3
        %s133 = smul.addr %s132, 80
        %s134 = smul.addr %s133, 4
        %s135 = scalar_lea.vmem %s0, %s134
      $region28: #{pre_attention_forward.1} parent=23 // pred_fallthru
        _
    $region24: #{pre_attention_forward.1} parent=5 // pred_fallthru
      _
    %p136 = scmp.le.s32.totalorder 1, %s9
    %p137 = scmp.lt.s32.totalorder %s9, 5
    %p138 = pnand %p136, %p137
    %p139 = pneg %p138
    // Predicated region
    $region29: #{pre_attention_forward.1} parent=5 // pred_check
      _
    $region30: #{pre_attention_forward.1} parent=5 // pred_check_branch
      %141 = sbr.rel (%p138) target = $region32
    $region31: #{pre_attention_forward.1} parent=5 // pred_region
      %s142 = ssub.s32 %s9, 1
      %p143 = scmp.lt.s32.totalorder %s14, 3
      %s144 = scalar_select %p143, %s14, 3
      %s145 = smul.addr %s144, 80
      %s146 = smul.addr %s145, 4
      %s147 = scalar_lea.vmem %s0, %s146
      %p148 = pneg %p35
      %p149 = pneg %p32
      %p150 = pneg %p56
      %p151 = pneg %p53
      %p152 = pneg %p77
      %p153 = pneg %p74
      %p154 = pneg %p103
      %p155 = pneg %p100
      %p156 = scmp.lt.s32.totalorder %s14, 3
      %s157 = scalar_select %p156, %s14, 3
      %s158 = smul.addr %s157, 32
      %s159 = smul.addr %s158, 4
      %s160 = scalar_lea.vmem %s3, %s159
      %p161 = scmp.lt.s32.totalorder %s14, 3
      %s162 = scalar_select %p161, %s14, 3
      %s163 = smul.addr %s162, 80
      %s164 = smul.addr %s163, 4
      %s165 = scalar_lea.vmem %s0, %s164
      %p166 = scmp.lt.s32.totalorder %s14, 3
      %s167 = scalar_select %p166, %s14, 3
      %s168 = smul.addr %s167, 32
      %s169 = smul.addr %s168, 4
      %s170 = scalar_lea.vmem %s3, %s169
      %172 = vst [vmem:[#allocation2] sm:$0xff] 0.0
      %173 = vst [vmem:[#allocation2 + $0x8] sm:$0xff] 0.0
      %174 = vst [vmem:[#allocation2 + $0x10] sm:$0xff] 0.0
      %175 = vst [vmem:[#allocation2 + $0x18] sm:$0xff] 0.0
      %176 = vst [vmem:[#allocation2 + $0x20] sm:$0xff] 0.0
      %177 = vst [vmem:[#allocation2 + $0x28] sm:$0xff] 0.0
      %178 = vst [vmem:[#allocation2 + $0x30] sm:$0xff] 0.0
      %179 = vst [vmem:[#allocation2 + $0x38] sm:$0xff] 0.0
      %180 = vst [vmem:[#allocation2 + $0x40] sm:$0xff] 0.0
      %181 = vst [vmem:[#allocation2 + $0x48] sm:$0xff] 0.0
      %182 = vst [vmem:[#allocation2 + $0x50] sm:$0xff] 0.0
      %183 = vst [vmem:[#allocation2 + $0x58] sm:$0xff] 0.0
      %184 = vst [vmem:[#allocation2 + $0x60] sm:$0xff] 0.0
      %185 = vst [vmem:[#allocation2 + $0x68] sm:$0xff] 0.0
      %186 = vst [vmem:[#allocation2 + $0x70] sm:$0xff] 0.0
      %187 = vst [vmem:[#allocation2 + $0x78] sm:$0xff] 0.0
      %188 = vst [vmem:[#allocation2 + $0x80] sm:$0xff] 0.0
      %189 = vst [vmem:[#allocation2 + $0x88] sm:$0xff] 0.0
      %190 = vst [vmem:[#allocation2 + $0x90] sm:$0xff] 0.0
      %191 = vst [vmem:[#allocation2 + $0x98] sm:$0xff] 0.0
      %192 = vst [vmem:[#allocation2 + $0xa0] sm:$0xff] 0.0
      %193 = vst [vmem:[#allocation2 + $0xa8] sm:$0xff] 0.0
      %194 = vst [vmem:[#allocation2 + $0xb0] sm:$0xff] 0.0
      %195 = vst [vmem:[#allocation2 + $0xb8] sm:$0xff] 0.0
      %196 = vst [vmem:[#allocation2 + $0xc0] sm:$0xff] 0.0
      %197 = vst [vmem:[#allocation2 + $0xc8] sm:$0xff] 0.0
      %198 = vst [vmem:[#allocation2 + $0xd0] sm:$0xff] 0.0
      %199 = vst [vmem:[#allocation2 + $0xd8] sm:$0xff] 0.0
      %200 = vst [vmem:[#allocation2 + $0xe0] sm:$0xff] 0.0
      %201 = vst [vmem:[#allocation2 + $0xe8] sm:$0xff] 0.0
      %202 = vst [vmem:[#allocation2 + $0xf0] sm:$0xff] 0.0
      %203 = vst [vmem:[#allocation2 + $0xf8] sm:$0xff] 0.0
      %v204 = vld [vmem:[%s165] sm:$0xff]
      %v205 = vld [vmem:[%s165 + $0x8] sm:$0xff]
      %v206 = vld [vmem:[%s165 + $0x10] sm:$0xff]
      %v207 = vld [vmem:[%s165 + $0x18] sm:$0xff]
      %v208 = vld [vmem:[%s165 + $0x20] sm:$0xff]
      %v209 = vld [vmem:[%s165 + $0x28] sm:$0xff]
      %v210 = vld [vmem:[%s165 + $0x30] sm:$0xff]
      %v211 = vld [vmem:[%s165 + $0x38] sm:$0xff]
      %v212 = vld [vmem:[%s165 + $0x40] sm:$0xff]
      %v213 = vld [vmem:[%s165 + $0x48] sm:$0xff]
      %v214 = vld [vmem:[%s165 + $0x50] sm:$0xff]
      %v215 = vld [vmem:[%s165 + $0x58] sm:$0xff]
      %v216 = vld [vmem:[%s165 + $0x60] sm:$0xff]
      %v217 = vld [vmem:[%s165 + $0x68] sm:$0xff]
      %v218 = vld [vmem:[%s165 + $0x70] sm:$0xff]
      %v219 = vld [vmem:[%s165 + $0x78] sm:$0xff]
      %v220 = vld [vmem:[%s165 + $0x80] sm:$0xff]
      %v221 = vld [vmem:[%s165 + $0x88] sm:$0xff]
      %v222 = vld [vmem:[%s165 + $0x90] sm:$0xff]
      %v223 = vld [vmem:[%s165 + $0x98] sm:$0xff]
      %v224 = vld [vmem:[%s165 + $0xa0] sm:$0xff]
      %v225 = vld [vmem:[%s165 + $0xa8] sm:$0xff]
      %v226 = vld [vmem:[%s165 + $0xb0] sm:$0xff]
      %v227 = vld [vmem:[%s165 + $0xb8] sm:$0xff]
      %v228 = vld [vmem:[%s165 + $0xc0] sm:$0xff]
      %v229 = vld [vmem:[%s165 + $0xc8] sm:$0xff]
      %v230 = vld [vmem:[%s165 + $0xd0] sm:$0xff]
      %v231 = vld [vmem:[%s165 + $0xd8] sm:$0xff]
      %v232 = vld [vmem:[%s165 + $0xe0] sm:$0xff]
      %v233 = vld [vmem:[%s165 + $0xe8] sm:$0xff]
      %v234 = vld [vmem:[%s165 + $0xf0] sm:$0xff]
      %v235 = vld [vmem:[%s165 + $0xf8] sm:$0xff]
      %v236 = vld [vmem:[%s1] sm:$0xff]
      %v237 = vld [vmem:[%s1 + $0x8] sm:$0xf]
      %v238 = vld [vmem:[%s1 + $0xc] sm:$0xff]
      %v239 = vld [vmem:[%s1 + $0x14] sm:$0xf]
      %v240 = vld [vmem:[%s1 + $0x18] sm:$0xff]
      %v241 = vld [vmem:[%s1 + $0x20] sm:$0xf]
      %v242 = vld [vmem:[%s1 + $0x24] sm:$0xff]
      %v243 = vld [vmem:[%s1 + $0x2c] sm:$0xf]
      %v244 = vld [vmem:[%s1 + $0x30] sm:$0xff]
      %v245 = vld [vmem:[%s1 + $0x38] sm:$0xf]
      %v246 = vld [vmem:[%s1 + $0x3c] sm:$0xff]
      %v247 = vld [vmem:[%s1 + $0x44] sm:$0xf]
      %v248 = vld [vmem:[%s1 + $0x48] sm:$0xff]
      %v249 = vld [vmem:[%s1 + $0x50] sm:$0xf]
      %v250 = vld [vmem:[%s1 + $0x54] sm:$0xff]
      %v251 = vld [vmem:[%s1 + $0x5c] sm:$0xf]
      %v252 = vld [vmem:[%s1 + $0x60] sm:$0xff]
      %v253 = vld [vmem:[%s1 + $0x68] sm:$0xf]
      %v254 = vld [vmem:[%s1 + $0x6c] sm:$0xff]
      %v255 = vld [vmem:[%s1 + $0x74] sm:$0xf]
      %v256 = vld [vmem:[%s1 + $0x78] sm:$0xff]
      %v257 = vld [vmem:[%s1 + $0x80] sm:$0xf]
      %v258 = vld [vmem:[%s1 + $0x84] sm:$0xff]
      %v259 = vld [vmem:[%s1 + $0x8c] sm:$0xf]
      %v260 = vld [vmem:[%s1 + $0x90] sm:$0xff]
      %v261 = vld [vmem:[%s1 + $0x98] sm:$0xf]
      %v262 = vld [vmem:[%s1 + $0x9c] sm:$0xff]
      %v263 = vld [vmem:[%s1 + $0xa4] sm:$0xf]
      %v264 = vld [vmem:[%s1 + $0xa8] sm:$0xff]
      %v265 = vld [vmem:[%s1 + $0xb0] sm:$0xf]
      %v266 = vld [vmem:[%s1 + $0xb4] sm:$0xff]
      %v267 = vld [vmem:[%s1 + $0xbc] sm:$0xf]
      %v268 = vld [vmem:[%s1 + $0xc0] sm:$0xff]
      %v269 = vld [vmem:[%s1 + $0xc8] sm:$0xf]
      %v270 = vld [vmem:[%s1 + $0xcc] sm:$0xff]
      %v271 = vld [vmem:[%s1 + $0xd4] sm:$0xf]
      %v272 = vld [vmem:[%s1 + $0xd8] sm:$0xff]
      %v273 = vld [vmem:[%s1 + $0xe0] sm:$0xf]
      %v274 = vld [vmem:[%s1 + $0xe4] sm:$0xff]
      %v275 = vld [vmem:[%s1 + $0xec] sm:$0xf]
      %v276 = vld [vmem:[%s1 + $0xf0] sm:$0xff]
      %v277 = vld [vmem:[%s1 + $0xf8] sm:$0xf]
      %v278 = vld [vmem:[%s1 + $0xfc] sm:$0xff]
      %v279 = vld [vmem:[%s1 + $0x104] sm:$0xf]
      %v280 = vld [vmem:[%s1 + $0x108] sm:$0xff]
      %v281 = vld [vmem:[%s1 + $0x110] sm:$0xf]
      %v282 = vld [vmem:[%s1 + $0x114] sm:$0xff]
      %v283 = vld [vmem:[%s1 + $0x11c] sm:$0xf]
      %v284 = vld [vmem:[%s1 + $0x120] sm:$0xff]
      %v285 = vld [vmem:[%s1 + $0x128] sm:$0xf]
      %v286 = vld [vmem:[%s1 + $0x12c] sm:$0xff]
      %v287 = vld [vmem:[%s1 + $0x134] sm:$0xf]
      %v288 = vld [vmem:[%s1 + $0x138] sm:$0xff]
      %v289 = vld [vmem:[%s1 + $0x140] sm:$0xf]
      %v290 = vld [vmem:[%s1 + $0x144] sm:$0xff]
      %v291 = vld [vmem:[%s1 + $0x14c] sm:$0xf]
      %v292 = vld [vmem:[%s1 + $0x150] sm:$0xff]
      %v293 = vld [vmem:[%s1 + $0x158] sm:$0xf]
      %v294 = vld [vmem:[%s1 + $0x15c] sm:$0xff]
      %v295 = vld [vmem:[%s1 + $0x164] sm:$0xf]
      %v296 = vld [vmem:[%s1 + $0x168] sm:$0xff]
      %v297 = vld [vmem:[%s1 + $0x170] sm:$0xf]
      %v298 = vld [vmem:[%s1 + $0x174] sm:$0xff]
      %v299 = vld [vmem:[%s1 + $0x17c] sm:$0xf]
      %v332 = vunpack.c.l.b16 %v204
      %v333 = vunpack.c.h.b16 %v204
      %v334 = vunpack.c.l.b16 %v205
      %v335 = vunpack.c.h.b16 %v205
      %v336 = vunpack.c.l.b16 %v206
      %v337 = vunpack.c.h.b16 %v206
      %v338 = vunpack.c.l.b16 %v207
      %v339 = vunpack.c.h.b16 %v207
      %v340 = vunpack.c.l.b16 %v208
      %v341 = vunpack.c.h.b16 %v208
      %v342 = vunpack.c.l.b16 %v209
      %v343 = vunpack.c.h.b16 %v209
      %v344 = vunpack.c.l.b16 %v210
      %v345 = vunpack.c.h.b16 %v210
      %v346 = vunpack.c.l.b16 %v211
      %v347 = vunpack.c.h.b16 %v211
      %v348 = vunpack.c.l.b16 %v212
      %v349 = vunpack.c.h.b16 %v212
      %v350 = vunpack.c.l.b16 %v213
      %v351 = vunpack.c.h.b16 %v213
      %v352 = vunpack.c.l.b16 %v214
      %v353 = vunpack.c.h.b16 %v214
      %v354 = vunpack.c.l.b16 %v215
      %v355 = vunpack.c.h.b16 %v215
      %v356 = vunpack.c.l.b16 %v216
      %v357 = vunpack.c.h.b16 %v216
      %v358 = vunpack.c.l.b16 %v217
      %v359 = vunpack.c.h.b16 %v217
      %v360 = vunpack.c.l.b16 %v218
      %v361 = vunpack.c.h.b16 %v218
      %v362 = vunpack.c.l.b16 %v219
      %v363 = vunpack.c.h.b16 %v219
      %v364 = vunpack.c.l.b16 %v220
      %v365 = vunpack.c.h.b16 %v220
      %v366 = vunpack.c.l.b16 %v221
      %v367 = vunpack.c.h.b16 %v221
      %v368 = vunpack.c.l.b16 %v222
      %v369 = vunpack.c.h.b16 %v222
      %v370 = vunpack.c.l.b16 %v223
      %v371 = vunpack.c.h.b16 %v223
      %v372 = vunpack.c.l.b16 %v224
      %v373 = vunpack.c.h.b16 %v224
      %v374 = vunpack.c.l.b16 %v225
      %v375 = vunpack.c.h.b16 %v225
      %v376 = vunpack.c.l.b16 %v226
      %v377 = vunpack.c.h.b16 %v226
      %v378 = vunpack.c.l.b16 %v227
      %v379 = vunpack.c.h.b16 %v227
      %v380 = vunpack.c.l.b16 %v228
      %v381 = vunpack.c.h.b16 %v228
      %v382 = vunpack.c.l.b16 %v229
      %v383 = vunpack.c.h.b16 %v229
      %v384 = vunpack.c.l.b16 %v230
      %v385 = vunpack.c.h.b16 %v230
      %v386 = vunpack.c.l.b16 %v231
      %v387 = vunpack.c.h.b16 %v231
      %v388 = vunpack.c.l.b16 %v232
      %v389 = vunpack.c.h.b16 %v232
      %v390 = vunpack.c.l.b16 %v233
      %v391 = vunpack.c.h.b16 %v233
      %v392 = vunpack.c.l.b16 %v234
      %v393 = vunpack.c.h.b16 %v234
      %v394 = vunpack.c.l.b16 %v235
      %v395 = vunpack.c.h.b16 %v235
      %v396 = vpack.c.b16 %v334, %v332
      %v397 = vpack.c.b16 %v335, %v333
      %v398 = vpack.c.b16 %v338, %v336
      %v399 = vpack.c.b16 %v339, %v337
      %v400 = vpack.c.b16 %v342, %v340
      %v401 = vpack.c.b16 %v343, %v341
      %v402 = vpack.c.b16 %v346, %v344
      %v403 = vpack.c.b16 %v347, %v345
      %v404 = vpack.c.b16 %v350, %v348
      %v405 = vpack.c.b16 %v351, %v349
      %v406 = vpack.c.b16 %v354, %v352
      %v407 = vpack.c.b16 %v355, %v353
      %v408 = vpack.c.b16 %v358, %v356
      %v409 = vpack.c.b16 %v359, %v357
      %v410 = vpack.c.b16 %v362, %v360
      %v411 = vpack.c.b16 %v363, %v361
      %v412 = vpack.c.b16 %v366, %v364
      %v413 = vpack.c.b16 %v367, %v365
      %v414 = vpack.c.b16 %v370, %v368
      %v415 = vpack.c.b16 %v371, %v369
      %v416 = vpack.c.b16 %v374, %v372
      %v417 = vpack.c.b16 %v375, %v373
      %v418 = vpack.c.b16 %v378, %v376
      %v419 = vpack.c.b16 %v379, %v377
      %v420 = vpack.c.b16 %v382, %v380
      %v421 = vpack.c.b16 %v383, %v381
      %v422 = vpack.c.b16 %v386, %v384
      %v423 = vpack.c.b16 %v387, %v385
      %v424 = vpack.c.b16 %v390, %v388
      %v425 = vpack.c.b16 %v391, %v389
      %v426 = vpack.c.b16 %v394, %v392
      %v427 = vpack.c.b16 %v395, %v393
      %v524 = vunpack.c.l.b16 %v236
      %v525 = vunpack.c.h.b16 %v236
      %v526 = vunpack.c.l.b16 %v237
      %v527 = vunpack.c.l.b16 %v238
      %v528 = vunpack.c.h.b16 %v238
      %v529 = vunpack.c.l.b16 %v239
      %v530 = vunpack.c.l.b16 %v240
      %v531 = vunpack.c.h.b16 %v240
      %v532 = vunpack.c.l.b16 %v241
      %v533 = vunpack.c.l.b16 %v242
      %v534 = vunpack.c.h.b16 %v242
      %v535 = vunpack.c.l.b16 %v243
      %v536 = vunpack.c.l.b16 %v244
      %v537 = vunpack.c.h.b16 %v244
      %v538 = vunpack.c.l.b16 %v245
      %v539 = vunpack.c.l.b16 %v246
      %v540 = vunpack.c.h.b16 %v246
      %v541 = vunpack.c.l.b16 %v247
      %v542 = vunpack.c.l.b16 %v248
      %v543 = vunpack.c.h.b16 %v248
      %v544 = vunpack.c.l.b16 %v249
      %v545 = vunpack.c.l.b16 %v250
      %v546 = vunpack.c.h.b16 %v250
      %v547 = vunpack.c.l.b16 %v251
      %v548 = vunpack.c.l.b16 %v252
      %v549 = vunpack.c.h.b16 %v252
      %v550 = vunpack.c.l.b16 %v253
      %v551 = vunpack.c.l.b16 %v254
      %v552 = vunpack.c.h.b16 %v254
      %v553 = vunpack.c.l.b16 %v255
      %v554 = vunpack.c.l.b16 %v256
      %v555 = vunpack.c.h.b16 %v256
      %v556 = vunpack.c.l.b16 %v257
      %v557 = vunpack.c.l.b16 %v258
      %v558 = vunpack.c.h.b16 %v258
      %v559 = vunpack.c.l.b16 %v259
      %v560 = vunpack.c.l.b16 %v260
      %v561 = vunpack.c.h.b16 %v260
      %v562 = vunpack.c.l.b16 %v261
      %v563 = vunpack.c.l.b16 %v262
      %v564 = vunpack.c.h.b16 %v262
      %v565 = vunpack.c.l.b16 %v263
      %v566 = vunpack.c.l.b16 %v264
      %v567 = vunpack.c.h.b16 %v264
      %v568 = vunpack.c.l.b16 %v265
      %v569 = vunpack.c.l.b16 %v266
      %v570 = vunpack.c.h.b16 %v266
      %v571 = vunpack.c.l.b16 %v267
      %v572 = vunpack.c.l.b16 %v268
      %v573 = vunpack.c.h.b16 %v268
      %v574 = vunpack.c.l.b16 %v269
      %v575 = vunpack.c.l.b16 %v270
      %v576 = vunpack.c.h.b16 %v270
      %v577 = vunpack.c.l.b16 %v271
      %v578 = vunpack.c.l.b16 %v272
      %v579 = vunpack.c.h.b16 %v272
      %v580 = vunpack.c.l.b16 %v273
      %v581 = vunpack.c.l.b16 %v274
      %v582 = vunpack.c.h.b16 %v274
      %v583 = vunpack.c.l.b16 %v275
      %v584 = vunpack.c.l.b16 %v276
      %v585 = vunpack.c.h.b16 %v276
      %v586 = vunpack.c.l.b16 %v277
      %v587 = vunpack.c.l.b16 %v278
      %v588 = vunpack.c.h.b16 %v278
      %v589 = vunpack.c.l.b16 %v279
      %v590 = vunpack.c.l.b16 %v280
      %v591 = vunpack.c.h.b16 %v280
      %v592 = vunpack.c.l.b16 %v281
      %v593 = vunpack.c.l.b16 %v282
      %v594 = vunpack.c.h.b16 %v282
      %v595 = vunpack.c.l.b16 %v283
      %v596 = vunpack.c.l.b16 %v284
      %v597 = vunpack.c.h.b16 %v284
      %v598 = vunpack.c.l.b16 %v285
      %v599 = vunpack.c.l.b16 %v286
      %v600 = vunpack.c.h.b16 %v286
      %v601 = vunpack.c.l.b16 %v287
      %v602 = vunpack.c.l.b16 %v288
      %v603 = vunpack.c.h.b16 %v288
      %v604 = vunpack.c.l.b16 %v289
      %v605 = vunpack.c.l.b16 %v290
      %v606 = vunpack.c.h.b16 %v290
      %v607 = vunpack.c.l.b16 %v291
      %v608 = vunpack.c.l.b16 %v292
      %v609 = vunpack.c.h.b16 %v292
      %v610 = vunpack.c.l.b16 %v293
      %v611 = vunpack.c.l.b16 %v294
      %v612 = vunpack.c.h.b16 %v294
      %v613 = vunpack.c.l.b16 %v295
      %v614 = vunpack.c.l.b16 %v296
      %v615 = vunpack.c.h.b16 %v296
      %v616 = vunpack.c.l.b16 %v297
      %v617 = vunpack.c.l.b16 %v298
      %v618 = vunpack.c.h.b16 %v298
      %v619 = vunpack.c.l.b16 %v299
      %v620 = vpack.c.b16 %v527, %v524
      %v621 = vpack.c.b16 %v528, %v525
      %v622 = vpack.c.b16 %v529, %v526
      %v623 = vpack.c.b16 %v533, %v530
      %v624 = vpack.c.b16 %v534, %v531
      %v625 = vpack.c.b16 %v535, %v532
      %v626 = vpack.c.b16 %v539, %v536
      %v627 = vpack.c.b16 %v540, %v537
      %v628 = vpack.c.b16 %v541, %v538
      %v629 = vpack.c.b16 %v545, %v542
      %v630 = vpack.c.b16 %v546, %v543
      %v631 = vpack.c.b16 %v547, %v544
      %v632 = vpack.c.b16 %v551, %v548
      %v633 = vpack.c.b16 %v552, %v549
      %v634 = vpack.c.b16 %v553, %v550
      %v635 = vpack.c.b16 %v557, %v554
      %v636 = vpack.c.b16 %v558, %v555
      %v637 = vpack.c.b16 %v559, %v556
      %v638 = vpack.c.b16 %v563, %v560
      %v639 = vpack.c.b16 %v564, %v561
      %v640 = vpack.c.b16 %v565, %v562
      %v641 = vpack.c.b16 %v569, %v566
      %v642 = vpack.c.b16 %v570, %v567
      %v643 = vpack.c.b16 %v571, %v568
      %v644 = vpack.c.b16 %v575, %v572
      %v645 = vpack.c.b16 %v576, %v573
      %v646 = vpack.c.b16 %v577, %v574
      %v647 = vpack.c.b16 %v581, %v578
      %v648 = vpack.c.b16 %v582, %v579
      %v649 = vpack.c.b16 %v583, %v580
      %v650 = vpack.c.b16 %v587, %v584
      %v651 = vpack.c.b16 %v588, %v585
      %v652 = vpack.c.b16 %v589, %v586
      %v653 = vpack.c.b16 %v593, %v590
      %v654 = vpack.c.b16 %v594, %v591
      %v655 = vpack.c.b16 %v595, %v592
      %v656 = vpack.c.b16 %v599, %v596
      %v657 = vpack.c.b16 %v600, %v597
      %v658 = vpack.c.b16 %v601, %v598
      %v659 = vpack.c.b16 %v605, %v602
      %v660 = vpack.c.b16 %v606, %v603
      %v661 = vpack.c.b16 %v607, %v604
      %v662 = vpack.c.b16 %v611, %v608
      %v663 = vpack.c.b16 %v612, %v609
      %v664 = vpack.c.b16 %v613, %v610
      %v665 = vpack.c.b16 %v617, %v614
      %v666 = vpack.c.b16 %v618, %v615
      %v667 = vpack.c.b16 %v619, %v616
      %716 = vmatprep.subr.bf16.mxu0 %v621
      %717 = vmatpush1.bf16.msra.mxu0 %v620
      %718 = vmatprep.subr.bf16.mxu0 %v624
      %719 = vmatpush1.bf16.msra.mxu0 %v623
      %720 = vmatprep.subr.bf16.mxu0 %v627
      %721 = vmatpush1.bf16.msra.mxu0 %v626
      %722 = vmatprep.subr.bf16.mxu0 %v630
      %723 = vmatpush1.bf16.msra.mxu0 %v629
      %724 = vmatprep.subr.bf16.mxu0 %v633
      %725 = vmatpush1.bf16.msra.mxu0 %v632
      %726 = vmatprep.subr.bf16.mxu0 %v636
      %727 = vmatpush1.bf16.msra.mxu0 %v635
      %728 = vmatprep.subr.bf16.mxu0 %v639
      %729 = vmatpush1.bf16.msra.mxu0 %v638
      %730 = vmatprep.subr.bf16.mxu0 %v642
      %731 = vmatpush1.bf16.msra.mxu0 %v641
      %732 = vmatprep.subr.bf16.mxu0 %v645
      %733 = vmatpush1.bf16.msra.mxu0 %v644
      %734 = vmatprep.subr.bf16.mxu0 %v648
      %735 = vmatpush1.bf16.msra.mxu0 %v647
      %736 = vmatprep.subr.bf16.mxu0 %v651
      %737 = vmatpush1.bf16.msra.mxu0 %v650
      %738 = vmatprep.subr.bf16.mxu0 %v654
      %739 = vmatpush1.bf16.msra.mxu0 %v653
      %740 = vmatprep.subr.bf16.mxu0 %v657
      %741 = vmatpush1.bf16.msra.mxu0 %v656
      %742 = vmatprep.subr.bf16.mxu0 %v660
      %743 = vmatpush1.bf16.msra.mxu0 %v659
      %744 = vmatprep.subr.bf16.mxu0 %v663
      %745 = vmatpush1.bf16.msra.mxu0 %v662
      %746 = vmatprep.subr.bf16.mxu0 %v666
      %747 = vmatpush1.bf16.msra.mxu0 %v665
      %748 = vmatprep.mubr.bf16.mxu0 %v397
      %749 = vmatmul.mubr.bf16.gmra.mrb[0].mxu0 %v396
      %v750 = vpop.f32.mrb[0].mxu0
      %v751 = vadd.f32 0.0, %v750
      %v752 = vpop.f32.mrb[0].mxu0
      %v753 = vadd.f32 0.0, %v752
      %v754 = vpop.f32.mrb[0].mxu0
      %v755 = vadd.f32 0.0, %v754
      %v756 = vpop.f32.mrb[0].mxu0
      %v757 = vadd.f32 0.0, %v756
      %758 = vmatprep.mubr.bf16.mxu0 %v399
      %759 = vmatmul.mubr.bf16.gmra.mrb[0].mxu0 %v398
      %v760 = vpop.f32.mrb[0].mxu0
      %v761 = vadd.f32 0.0, %v760
      %v762 = vpop.f32.mrb[0].mxu0
      %v763 = vadd.f32 0.0, %v762
      %v764 = vpop.f32.mrb[0].mxu0
      %v765 = vadd.f32 0.0, %v764
      %v766 = vpop.f32.mrb[0].mxu0
      %v767 = vadd.f32 0.0, %v766
      %768 = vmatprep.mubr.bf16.mxu0 %v401
      %769 = vmatmul.mubr.bf16.gmra.mrb[0].mxu0 %v400
      %v770 = vpop.f32.mrb[0].mxu0
      %v771 = vadd.f32 0.0, %v770
      %v772 = vpop.f32.mrb[0].mxu0
      %v773 = vadd.f32 0.0, %v772
      %v774 = vpop.f32.mrb[0].mxu0
      %v775 = vadd.f32 0.0, %v774
      %v776 = vpop.f32.mrb[0].mxu0
      %v777 = vadd.f32 0.0, %v776
      %778 = vmatprep.mubr.bf16.mxu0 %v403
      %779 = vmatmul.mubr.bf16.gmra.mrb[0].mxu0 %v402
      %v780 = vpop.f32.mrb[0].mxu0
      %v781 = vadd.f32 0.0, %v780
      %v782 = vpop.f32.mrb[0].mxu0
      %v783 = vadd.f32 0.0, %v782
      %v784 = vpop.f32.mrb[0].mxu0
      %v785 = vadd.f32 0.0, %v784
      %v786 = vpop.f32.mrb[0].mxu0
      %v787 = vadd.f32 0.0, %v786
      %788 = vmatprep.mubr.bf16.mxu0 %v405
      %789 = vmatmul.mubr.bf16.gmra.mrb[0].mxu0 %v404
      %v790 = vpop.f32.mrb[0].mxu0
      %v791 = vadd.f32 0.0, %v790
      %v792 = vpop.f32.mrb[0].mxu0
      %v793 = vadd.f32 0.0, %v792
      %v794 = vpop.f32.mrb[0].mxu0
      %v795 = vadd.f32 0.0, %v794
      %v796 = vpop.f32.mrb[0].mxu0
      %v797 = vadd.f32 0.0, %v796
      %798 = vmatprep.mubr.bf16.mxu0 %v407
      %799 = vmatmul.mubr.bf16.gmra.mrb[0].mxu0 %v406
      %v800 = vpop.f32.mrb[0].mxu0
      %v801 = vadd.f32 0.0, %v800
      %v802 = vpop.f32.mrb[0].mxu0
      %v803 = vadd.f32 0.0, %v802
      %v804 = vpop.f32.mrb[0].mxu0
      %v805 = vadd.f32 0.0, %v804
      %v806 = vpop.f32.mrb[0].mxu0
      %v807 = vadd.f32 0.0, %v806
      %808 = vmatprep.mubr.bf16.mxu0 %v409
      %809 = vmatmul.mubr.bf16.gmra.mrb[0].mxu0 %v408
      %v810 = vpop.f32.mrb[0].mxu0
      %v811 = vadd.f32 0.0, %v810
      %v812 = vpop.f32.mrb[0].mxu0
      %v813 = vadd.f32 0.0, %v812
      %v814 = vpop.f32.mrb[0].mxu0
      %v815 = vadd.f32 0.0, %v814
      %v816 = vpop.f32.mrb[0].mxu0
      %v817 = vadd.f32 0.0, %v816
      %818 = vmatprep.mubr.bf16.mxu0 %v411
      %819 = vmatmul.mubr.bf16.gmra.mrb[0].mxu0 %v410
      %v820 = vpop.f32.mrb[0].mxu0
      %v821 = vadd.f32 0.0, %v820
      %v822 = vpop.f32.mrb[0].mxu0
      %v823 = vadd.f32 0.0, %v822
      %v824 = vpop.f32.mrb[0].mxu0
      %v825 = vadd.f32 0.0, %v824
      %v826 = vpop.f32.mrb[0].mxu0
      %v827 = vadd.f32 0.0, %v826
      %828 = vmatprep.mubr.bf16.mxu0 %v413
      %829 = vmatmul.mubr.bf16.gmra.mrb[0].mxu0 %v412
      %v830 = vpop.f32.mrb[0].mxu0
      %v831 = vadd.f32 0.0, %v830
      %v832 = vpop.f32.mrb[0].mxu0
      %v833 = vadd.f32 0.0, %v832
      %v834 = vpop.f32.mrb[0].mxu0
      %v835 = vadd.f32 0.0, %v834
      %v836 = vpop.f32.mrb[0].mxu0
      %v837 = vadd.f32 0.0, %v836
      %838 = vmatprep.mubr.bf16.mxu0 %v415
      %839 = vmatmul.mubr.bf16.gmra.mrb[0].mxu0 %v414
      %v840 = vpop.f32.mrb[0].mxu0
      %v841 = vadd.f32 0.0, %v840
      %v842 = vpop.f32.mrb[0].mxu0
      %v843 = vadd.f32 0.0, %v842
      %v844 = vpop.f32.mrb[0].mxu0
      %v845 = vadd.f32 0.0, %v844
      %v846 = vpop.f32.mrb[0].mxu0
      %v847 = vadd.f32 0.0, %v846
      %848 = vmatprep.mubr.bf16.mxu0 %v417
      %849 = vmatmul.mubr.bf16.gmra.mrb[0].mxu0 %v416
      %v850 = vpop.f32.mrb[0].mxu0
      %v851 = vadd.f32 0.0, %v850
      %v852 = vpop.f32.mrb[0].mxu0
      %v853 = vadd.f32 0.0, %v852
      %v854 = vpop.f32.mrb[0].mxu0
      %v855 = vadd.f32 0.0, %v854
      %v856 = vpop.f32.mrb[0].mxu0
      %v857 = vadd.f32 0.0, %v856
      %858 = vmatprep.mubr.bf16.mxu0 %v419
      %859 = vmatmul.mubr.bf16.gmra.mrb[0].mxu0 %v418
      %v860 = vpop.f32.mrb[0].mxu0
      %v861 = vadd.f32 0.0, %v860
      %v862 = vpop.f32.mrb[0].mxu0
      %v863 = vadd.f32 0.0, %v862
      %v864 = vpop.f32.mrb[0].mxu0
      %v865 = vadd.f32 0.0, %v864
      %v866 = vpop.f32.mrb[0].mxu0
      %v867 = vadd.f32 0.0, %v866
      %868 = vmatprep.mubr.bf16.mxu0 %v421
      %869 = vmatmul.mubr.bf16.gmra.mrb[0].mxu0 %v420
      %v870 = vpop.f32.mrb[0].mxu0
      %v871 = vadd.f32 0.0, %v870
      %v872 = vpop.f32.mrb[0].mxu0
      %v873 = vadd.f32 0.0, %v872
      %v874 = vpop.f32.mrb[0].mxu0
      %v875 = vadd.f32 0.0, %v874
      %v876 = vpop.f32.mrb[0].mxu0
      %v877 = vadd.f32 0.0, %v876
      %878 = vmatprep.mubr.bf16.mxu0 %v423
      %879 = vmatmul.mubr.bf16.gmra.mrb[0].mxu0 %v422
      %v880 = vpop.f32.mrb[0].mxu0
      %v881 = vadd.f32 0.0, %v880
      %v882 = vpop.f32.mrb[0].mxu0
      %v883 = vadd.f32 0.0, %v882
      %v884 = vpop.f32.mrb[0].mxu0
      %v885 = vadd.f32 0.0, %v884
      %v886 = vpop.f32.mrb[0].mxu0
      %v887 = vadd.f32 0.0, %v886
      %888 = vmatprep.mubr.bf16.mxu0 %v425
      %889 = vmatmul.mubr.bf16.gmra.mrb[0].mxu0 %v424
      %v890 = vpop.f32.mrb[0].mxu0
      %v891 = vadd.f32 0.0, %v890
      %v892 = vpop.f32.mrb[0].mxu0
      %v893 = vadd.f32 0.0, %v892
      %v894 = vpop.f32.mrb[0].mxu0
      %v895 = vadd.f32 0.0, %v894
      %v896 = vpop.f32.mrb[0].mxu0
      %v897 = vadd.f32 0.0, %v896
      %898 = vmatprep.mubr.bf16.mxu0 %v427
      %899 = vmatmul.mubr.bf16.gmra.mrb[0].mxu0 %v426
      %v900 = vpop.f32.mrb[0].mxu0
      %v901 = vadd.f32 0.0, %v900
      %v902 = vpop.f32.mrb[0].mxu0
      %v903 = vadd.f32 0.0, %v902
      %v904 = vpop.f32.mrb[0].mxu0
      %v905 = vadd.f32 0.0, %v904
      %v906 = vpop.f32.mrb[0].mxu0
      %v907 = vadd.f32 0.0, %v906
      %908 = vdwg.mxu0
      %909 = vmatprep.subr.bf16.mxu0 0
      %910 = vmatpush1.bf16.msra.mxu0 %v622
      %911 = vmatprep.subr.bf16.mxu0 0
      %912 = vmatpush1.bf16.msra.mxu0 %v625
      %913 = vmatprep.subr.bf16.mxu0 0
      %914 = vmatpush1.bf16.msra.mxu0 %v628
      %915 = vmatprep.subr.bf16.mxu0 0
      %916 = vmatpush1.bf16.msra.mxu0 %v631
      %917 = vmatprep.subr.bf16.mxu0 0
      %918 = vmatpush1.bf16.msra.mxu0 %v634
      %919 = vmatprep.subr.bf16.mxu0 0
      %920 = vmatpush1.bf16.msra.mxu0 %v637
      %921 = vmatprep.subr.bf16.mxu0 0
      %922 = vmatpush1.bf16.msra.mxu0 %v640
      %923 = vmatprep.subr.bf16.mxu0 0
      %924 = vmatpush1.bf16.msra.mxu0 %v643
      %925 = vmatprep.subr.bf16.mxu0 0
      %926 = vmatpush1.bf16.msra.mxu0 %v646
      %927 = vmatprep.subr.bf16.mxu0 0
      %928 = vmatpush1.bf16.msra.mxu0 %v649
      %929 = vmatprep.subr.bf16.mxu0 0
      %930 = vmatpush1.bf16.msra.mxu0 %v652
      %931 = vmatprep.subr.bf16.mxu0 0
      %932 = vmatpush1.bf16.msra.mxu0 %v655
      %933 = vmatprep.subr.bf16.mxu0 0
      %934 = vmatpush1.bf16.msra.mxu0 %v658
      %935 = vmatprep.subr.bf16.mxu0 0
      %936 = vmatpush1.bf16.msra.mxu0 %v661
      %937 = vmatprep.subr.bf16.mxu0 0
      %938 = vmatpush1.bf16.msra.mxu0 %v664
      %939 = vmatprep.subr.bf16.mxu0 0
      %940 = vmatpush1.bf16.msra.mxu0 %v667
      %941 = vmatprep.mubr.bf16.mxu0 %v397
      %942 = vmatmul.mubr.bf16.gmra.mrb[0].mxu0 %v396
      %v943 = vpop.f32.mrb[0].mxu0
      %v944 = vadd.f32 0.0, %v943
      %v945 = vpop.f32.mrb[0].mxu0
      %v946 = vpop.f32.mrb[0].mxu0
      %v947 = vadd.f32 0.0, %v946
      %v948 = vpop.f32.mrb[0].mxu0
      %949 = vmatprep.mubr.bf16.mxu0 %v399
      %950 = vmatmul.mubr.bf16.gmra.mrb[0].mxu0 %v398
      %v951 = vpop.f32.mrb[0].mxu0
      %v952 = vadd.f32 0.0, %v951
      %v953 = vpop.f32.mrb[0].mxu0
      %v954 = vpop.f32.mrb[0].mxu0
      %v955 = vadd.f32 0.0, %v954
      %v956 = vpop.f32.mrb[0].mxu0
      %957 = vmatprep.mubr.bf16.mxu0 %v401
      %958 = vmatmul.mubr.bf16.gmra.mrb[0].mxu0 %v400
      %v959 = vpop.f32.mrb[0].mxu0
      %v960 = vadd.f32 0.0, %v959
      %v961 = vpop.f32.mrb[0].mxu0
      %v962 = vpop.f32.mrb[0].mxu0
      %v963 = vadd.f32 0.0, %v962
      %v964 = vpop.f32.mrb[0].mxu0
      %965 = vmatprep.mubr.bf16.mxu0 %v403
      %966 = vmatmul.mubr.bf16.gmra.mrb[0].mxu0 %v402
      %v967 = vpop.f32.mrb[0].mxu0
      %v968 = vadd.f32 0.0, %v967
      %v969 = vpop.f32.mrb[0].mxu0
      %v970 = vpop.f32.mrb[0].mxu0
      %v971 = vadd.f32 0.0, %v970
      %v972 = vpop.f32.mrb[0].mxu0
      %973 = vmatprep.mubr.bf16.mxu0 %v405
      %974 = vmatmul.mubr.bf16.gmra.mrb[0].mxu0 %v404
      %v975 = vpop.f32.mrb[0].mxu0
      %v976 = vadd.f32 0.0, %v975
      %v977 = vpop.f32.mrb[0].mxu0
      %v978 = vpop.f32.mrb[0].mxu0
      %v979 = vadd.f32 0.0, %v978
      %v980 = vpop.f32.mrb[0].mxu0
      %981 = vmatprep.mubr.bf16.mxu0 %v407
      %982 = vmatmul.mubr.bf16.gmra.mrb[0].mxu0 %v406
      %v983 = vpop.f32.mrb[0].mxu0
      %v984 = vadd.f32 0.0, %v983
      %v985 = vpop.f32.mrb[0].mxu0
      %v986 = vpop.f32.mrb[0].mxu0
      %v987 = vadd.f32 0.0, %v986
      %v988 = vpop.f32.mrb[0].mxu0
      %989 = vmatprep.mubr.bf16.mxu0 %v409
      %990 = vmatmul.mubr.bf16.gmra.mrb[0].mxu0 %v408
      %v991 = vpop.f32.mrb[0].mxu0
      %v992 = vadd.f32 0.0, %v991
      %v993 = vpop.f32.mrb[0].mxu0
      %v994 = vpop.f32.mrb[0].mxu0
      %v995 = vadd.f32 0.0, %v994
      %v996 = vpop.f32.mrb[0].mxu0
      %997 = vmatprep.mubr.bf16.mxu0 %v411
      %998 = vmatmul.mubr.bf16.gmra.mrb[0].mxu0 %v410
      %v999 = vpop.f32.mrb[0].mxu0
      %v1000 = vadd.f32 0.0, %v999
      %v1001 = vpop.f32.mrb[0].mxu0
      %v1002 = vpop.f32.mrb[0].mxu0
      %v1003 = vadd.f32 0.0, %v1002
      %v1004 = vpop.f32.mrb[0].mxu0
      %1005 = vmatprep.mubr.bf16.mxu0 %v413
      %1006 = vmatmul.mubr.bf16.gmra.mrb[0].mxu0 %v412
      %v1007 = vpop.f32.mrb[0].mxu0
      %v1008 = vadd.f32 0.0, %v1007
      %v1009 = vpop.f32.mrb[0].mxu0
      %v1010 = vpop.f32.mrb[0].mxu0
      %v1011 = vadd.f32 0.0, %v1010
      %v1012 = vpop.f32.mrb[0].mxu0
      %1013 = vmatprep.mubr.bf16.mxu0 %v415
      %1014 = vmatmul.mubr.bf16.gmra.mrb[0].mxu0 %v414
      %v1015 = vpop.f32.mrb[0].mxu0
      %v1016 = vadd.f32 0.0, %v1015
      %v1017 = vpop.f32.mrb[0].mxu0
      %v1018 = vpop.f32.mrb[0].mxu0
      %v1019 = vadd.f32 0.0, %v1018
      %v1020 = vpop.f32.mrb[0].mxu0
      %1021 = vmatprep.mubr.bf16.mxu0 %v417
      %1022 = vmatmul.mubr.bf16.gmra.mrb[0].mxu0 %v416
      %v1023 = vpop.f32.mrb[0].mxu0
      %v1024 = vadd.f32 0.0, %v1023
      %v1025 = vpop.f32.mrb[0].mxu0
      %v1026 = vpop.f32.mrb[0].mxu0
      %v1027 = vadd.f32 0.0, %v1026
      %v1028 = vpop.f32.mrb[0].mxu0
      %1029 = vmatprep.mubr.bf16.mxu0 %v419
      %1030 = vmatmul.mubr.bf16.gmra.mrb[0].mxu0 %v418
      %v1031 = vpop.f32.mrb[0].mxu0
      %v1032 = vadd.f32 0.0, %v1031
      %v1033 = vpop.f32.mrb[0].mxu0
      %v1034 = vpop.f32.mrb[0].mxu0
      %v1035 = vadd.f32 0.0, %v1034
      %v1036 = vpop.f32.mrb[0].mxu0
      %1037 = vmatprep.mubr.bf16.mxu0 %v421
      %1038 = vmatmul.mubr.bf16.gmra.mrb[0].mxu0 %v420
      %v1039 = vpop.f32.mrb[0].mxu0
      %v1040 = vadd.f32 0.0, %v1039
      %v1041 = vpop.f32.mrb[0].mxu0
      %v1042 = vpop.f32.mrb[0].mxu0
      %v1043 = vadd.f32 0.0, %v1042
      %v1044 = vpop.f32.mrb[0].mxu0
      %1045 = vmatprep.mubr.bf16.mxu0 %v423
      %1046 = vmatmul.mubr.bf16.gmra.mrb[0].mxu0 %v422
      %v1047 = vpop.f32.mrb[0].mxu0
      %v1048 = vadd.f32 0.0, %v1047
      %v1049 = vpop.f32.mrb[0].mxu0
      %v1050 = vpop.f32.mrb[0].mxu0
      %v1051 = vadd.f32 0.0, %v1050
      %v1052 = vpop.f32.mrb[0].mxu0
      %1053 = vmatprep.mubr.bf16.mxu0 %v425
      %1054 = vmatmul.mubr.bf16.gmra.mrb[0].mxu0 %v424
      %v1055 = vpop.f32.mrb[0].mxu0
      %v1056 = vadd.f32 0.0, %v1055
      %v1057 = vpop.f32.mrb[0].mxu0
      %v1058 = vpop.f32.mrb[0].mxu0
      %v1059 = vadd.f32 0.0, %v1058
      %v1060 = vpop.f32.mrb[0].mxu0
      %1061 = vmatprep.mubr.bf16.mxu0 %v427
      %1062 = vmatmul.mubr.bf16.gmra.mrb[0].mxu0 %v426
      %v1063 = vpop.f32.mrb[0].mxu0
      %v1064 = vadd.f32 0.0, %v1063
      %v1065 = vpop.f32.mrb[0].mxu0
      %v1066 = vpop.f32.mrb[0].mxu0
      %v1067 = vadd.f32 0.0, %v1066
      %v1068 = vpop.f32.mrb[0].mxu0
      %1069 = vdwg.mxu0
      %v1070 = vld [vmem:[#allocation2] sm:$0xff]
      %v1071 = vld [vmem:[#allocation2 + $0x8] sm:$0xff]
      %v1072 = vld [vmem:[#allocation2 + $0x10] sm:$0xff]
      %v1073 = vld [vmem:[#allocation2 + $0x18] sm:$0xff]
      %v1074 = vld [vmem:[#allocation2 + $0x20] sm:$0xff]
      %v1075 = vld [vmem:[#allocation2 + $0x28] sm:$0xff]
      %v1076 = vld [vmem:[#allocation2 + $0x30] sm:$0xff]
      %v1077 = vld [vmem:[#allocation2 + $0x38] sm:$0xff]
      %v1078 = vld [vmem:[#allocation2 + $0x40] sm:$0xff]
      %v1079 = vld [vmem:[#allocation2 + $0x48] sm:$0xff]
      %v1080 = vld [vmem:[#allocation2 + $0x50] sm:$0xff]
      %v1081 = vld [vmem:[#allocation2 + $0x58] sm:$0xff]
      %v1082 = vld [vmem:[#allocation2 + $0x60] sm:$0xff]
      %v1083 = vld [vmem:[#allocation2 + $0x68] sm:$0xff]
      %v1084 = vld [vmem:[#allocation2 + $0x70] sm:$0xff]
      %v1085 = vld [vmem:[#allocation2 + $0x78] sm:$0xff]
      %v1086 = vld [vmem:[#allocation2 + $0x80] sm:$0xff]
      %v1087 = vld [vmem:[#allocation2 + $0x88] sm:$0xff]
      %v1088 = vld [vmem:[#allocation2 + $0x90] sm:$0xff]
      %v1089 = vld [vmem:[#allocation2 + $0x98] sm:$0xff]
      %v1090 = vld [vmem:[#allocation2 + $0xa0] sm:$0xff]
      %v1091 = vld [vmem:[#allocation2 + $0xa8] sm:$0xff]
      %v1092 = vld [vmem:[#allocation2 + $0xb0] sm:$0xff]
      %v1093 = vld [vmem:[#allocation2 + $0xb8] sm:$0xff]
      %v1094 = vld [vmem:[#allocation2 + $0xc0] sm:$0xff]
      %v1095 = vld [vmem:[#allocation2 + $0xc8] sm:$0xff]
      %v1096 = vld [vmem:[#allocation2 + $0xd0] sm:$0xff]
      %v1097 = vld [vmem:[#allocation2 + $0xd8] sm:$0xff]
      %v1098 = vld [vmem:[#allocation2 + $0xe0] sm:$0xff]
      %v1099 = vld [vmem:[#allocation2 + $0xe8] sm:$0xff]
      %v1100 = vld [vmem:[#allocation2 + $0xf0] sm:$0xff]
      %v1101 = vld [vmem:[#allocation2 + $0xf8] sm:$0xff]
      %v1102 = vadd.f32 %v1070, %v751
      %v1103 = vadd.f32 %v1071, %v755
      %v1104 = vadd.f32 %v1072, %v761
      %v1105 = vadd.f32 %v1073, %v765
      %v1106 = vadd.f32 %v1074, %v771
      %v1107 = vadd.f32 %v1075, %v775
      %v1108 = vadd.f32 %v1076, %v781
      %v1109 = vadd.f32 %v1077, %v785
      %v1110 = vadd.f32 %v1078, %v791
      %v1111 = vadd.f32 %v1079, %v795
      %v1112 = vadd.f32 %v1080, %v801
      %v1113 = vadd.f32 %v1081, %v805
      %v1114 = vadd.f32 %v1082, %v811
      %v1115 = vadd.f32 %v1083, %v815
      %v1116 = vadd.f32 %v1084, %v821
      %v1117 = vadd.f32 %v1085, %v825
      %v1118 = vadd.f32 %v1086, %v831
      %v1119 = vadd.f32 %v1087, %v835
      %v1120 = vadd.f32 %v1088, %v841
      %v1121 = vadd.f32 %v1089, %v845
      %v1122 = vadd.f32 %v1090, %v851
      %v1123 = vadd.f32 %v1091, %v855
      %v1124 = vadd.f32 %v1092, %v861
      %v1125 = vadd.f32 %v1093, %v865
      %v1126 = vadd.f32 %v1094, %v871
      %v1127 = vadd.f32 %v1095, %v875
      %v1128 = vadd.f32 %v1096, %v881
      %v1129 = vadd.f32 %v1097, %v885
      %v1130 = vadd.f32 %v1098, %v891
      %v1131 = vadd.f32 %v1099, %v895
      %v1132 = vadd.f32 %v1100, %v901
      %v1133 = vadd.f32 %v1101, %v905
      %1134 = vst [vmem:[#allocation2] sm:$0xff] %v1102
      %1135 = vst [vmem:[#allocation2 + $0x8] sm:$0xff] %v1103
      %1136 = vst [vmem:[#allocation2 + $0x10] sm:$0xff] %v1104
      %1137 = vst [vmem:[#allocation2 + $0x18] sm:$0xff] %v1105
      %1138 = vst [vmem:[#allocation2 + $0x20] sm:$0xff] %v1106
      %1139 = vst [vmem:[#allocation2 + $0x28] sm:$0xff] %v1107
      %1140 = vst [vmem:[#allocation2 + $0x30] sm:$0xff] %v1108
      %1141 = vst [vmem:[#allocation2 + $0x38] sm:$0xff] %v1109
      %1142 = vst [vmem:[#allocation2 + $0x40] sm:$0xff] %v1110
      %1143 = vst [vmem:[#allocation2 + $0x48] sm:$0xff] %v1111
      %1144 = vst [vmem:[#allocation2 + $0x50] sm:$0xff] %v1112
      %1145 = vst [vmem:[#allocation2 + $0x58] sm:$0xff] %v1113
      %1146 = vst [vmem:[#allocation2 + $0x60] sm:$0xff] %v1114
      %1147 = vst [vmem:[#allocation2 + $0x68] sm:$0xff] %v1115
      %1148 = vst [vmem:[#allocation2 + $0x70] sm:$0xff] %v1116
      %1149 = vst [vmem:[#allocation2 + $0x78] sm:$0xff] %v1117
      %1150 = vst [vmem:[#allocation2 + $0x80] sm:$0xff] %v1118
      %1151 = vst [vmem:[#allocation2 + $0x88] sm:$0xff] %v1119
      %1152 = vst [vmem:[#allocation2 + $0x90] sm:$0xff] %v1120
      %1153 = vst [vmem:[#allocation2 + $0x98] sm:$0xff] %v1121
      %1154 = vst [vmem:[#allocation2 + $0xa0] sm:$0xff] %v1122
      %1155 = vst [vmem:[#allocation2 + $0xa8] sm:$0xff] %v1123
      %1156 = vst [vmem:[#allocation2 + $0xb0] sm:$0xff] %v1124
      %1157 = vst [vmem:[#allocation2 + $0xb8] sm:$0xff] %v1125
      %1158 = vst [vmem:[#allocation2 + $0xc0] sm:$0xff] %v1126
      %1159 = vst [vmem:[#allocation2 + $0xc8] sm:$0xff] %v1127
      %1160 = vst [vmem:[#allocation2 + $0xd0] sm:$0xff] %v1128
      %1161 = vst [vmem:[#allocation2 + $0xd8] sm:$0xff] %v1129
      %1162 = vst [vmem:[#allocation2 + $0xe0] sm:$0xff] %v1130
      %1163 = vst [vmem:[#allocation2 + $0xe8] sm:$0xff] %v1131
      %1164 = vst [vmem:[#allocation2 + $0xf0] sm:$0xff] %v1132
      %1165 = vst [vmem:[#allocation2 + $0xf8] sm:$0xff] %v1133
      %v1166 = vld [vmem:[#allocation2] sm:$0xff]
      %v1167 = vld [vmem:[#allocation2 + $0x8] sm:$0xff]
      %v1168 = vld [vmem:[#allocation2 + $0x10] sm:$0xff]
      %v1169 = vld [vmem:[#allocation2 + $0x18] sm:$0xff]
      %v1170 = vld [vmem:[#allocation2 + $0x20] sm:$0xff]
      %v1171 = vld [vmem:[#allocation2 + $0x28] sm:$0xff]
      %v1172 = vld [vmem:[#allocation2 + $0x30] sm:$0xff]
      %v1173 = vld [vmem:[#allocation2 + $0x38] sm:$0xff]
      %v1174 = vld [vmem:[#allocation2 + $0x40] sm:$0xff]
      %v1175 = vld [vmem:[#allocation2 + $0x48] sm:$0xff]
      %v1176 = vld [vmem:[#allocation2 + $0x50] sm:$0xff]
      %v1177 = vld [vmem:[#allocation2 + $0x58] sm:$0xff]
      %v1178 = vld [vmem:[#allocation2 + $0x60] sm:$0xff]
      %v1179 = vld [vmem:[#allocation2 + $0x68] sm:$0xff]
      %v1180 = vld [vmem:[#allocation2 + $0x70] sm:$0xff]
      %v1181 = vld [vmem:[#allocation2 + $0x78] sm:$0xff]
      %v1182 = vld [vmem:[#allocation2 + $0x80] sm:$0xff]
      %v1183 = vld [vmem:[#allocation2 + $0x88] sm:$0xff]
      %v1184 = vld [vmem:[#allocation2 + $0x90] sm:$0xff]
      %v1185 = vld [vmem:[#allocation2 + $0x98] sm:$0xff]
      %v1186 = vld [vmem:[#allocation2 + $0xa0] sm:$0xff]
      %v1187 = vld [vmem:[#allocation2 + $0xa8] sm:$0xff]
      %v1188 = vld [vmem:[#allocation2 + $0xb0] sm:$0xff]
      %v1189 = vld [vmem:[#allocation2 + $0xb8] sm:$0xff]
      %v1190 = vld [vmem:[#allocation2 + $0xc0] sm:$0xff]
      %v1191 = vld [vmem:[#allocation2 + $0xc8] sm:$0xff]
      %v1192 = vld [vmem:[#allocation2 + $0xd0] sm:$0xff]
      %v1193 = vld [vmem:[#allocation2 + $0xd8] sm:$0xff]
      %v1194 = vld [vmem:[#allocation2 + $0xe0] sm:$0xff]
      %v1195 = vld [vmem:[#allocation2 + $0xe8] sm:$0xff]
      %v1196 = vld [vmem:[#allocation2 + $0xf0] sm:$0xff]
      %v1197 = vld [vmem:[#allocation2 + $0xf8] sm:$0x7f]
      %vm1230 = vcmask 1046528
      %v1231 = vrot.slane %v753, 1
      %v1232 = vrot.slane %v757, 1
      %v1233 = vsel %vm1230, %v1231, %v1232
      %v1234 = vrot.slane %v763, 1
      %v1235 = vsel %vm1230, %v1232, %v1234
      %v1236 = vrot.slane %v767, 1
      %v1237 = vsel %vm1230, %v1234, %v1236
      %v1238 = vrot.slane %v773, 1
      %v1239 = vsel %vm1230, %v1236, %v1238
      %v1240 = vrot.slane %v777, 1
      %v1241 = vsel %vm1230, %v1238, %v1240
      %v1242 = vrot.slane %v783, 1
      %v1243 = vsel %vm1230, %v1240, %v1242
      %v1244 = vrot.slane %v787, 1
      %v1245 = vsel %vm1230, %v1242, %v1244
      %v1246 = vrot.slane %v793, 1
      %v1247 = vsel %vm1230, %v1244, %v1246
      %v1248 = vrot.slane %v797, 1
      %v1249 = vsel %vm1230, %v1246, %v1248
      %v1250 = vrot.slane %v803, 1
      %v1251 = vsel %vm1230, %v1248, %v1250
      %v1252 = vrot.slane %v807, 1
      %v1253 = vsel %vm1230, %v1250, %v1252
      %v1254 = vrot.slane %v813, 1
      %v1255 = vsel %vm1230, %v1252, %v1254
      %v1256 = vrot.slane %v817, 1
      %v1257 = vsel %vm1230, %v1254, %v1256
      %v1258 = vrot.slane %v823, 1
      %v1259 = vsel %vm1230, %v1256, %v1258
      %v1260 = vrot.slane %v827, 1
      %v1261 = vsel %vm1230, %v1258, %v1260
      %v1262 = vrot.slane %v833, 1
      %v1263 = vsel %vm1230, %v1260, %v1262
      %v1264 = vrot.slane %v837, 1
      %v1265 = vsel %vm1230, %v1262, %v1264
      %v1266 = vrot.slane %v843, 1
      %v1267 = vsel %vm1230, %v1264, %v1266
      %v1268 = vrot.slane %v847, 1
      %v1269 = vsel %vm1230, %v1266, %v1268
      %v1270 = vrot.slane %v853, 1
      %v1271 = vsel %vm1230, %v1268, %v1270
      %v1272 = vrot.slane %v857, 1
      %v1273 = vsel %vm1230, %v1270, %v1272
      %v1274 = vrot.slane %v863, 1
      %v1275 = vsel %vm1230, %v1272, %v1274
      %v1276 = vrot.slane %v867, 1
      %v1277 = vsel %vm1230, %v1274, %v1276
      %v1278 = vrot.slane %v873, 1
      %v1279 = vsel %vm1230, %v1276, %v1278
      %v1280 = vrot.slane %v877, 1
      %v1281 = vsel %vm1230, %v1278, %v1280
      %v1282 = vrot.slane %v883, 1
      %v1283 = vsel %vm1230, %v1280, %v1282
      %v1284 = vrot.slane %v887, 1
      %v1285 = vsel %vm1230, %v1282, %v1284
      %v1286 = vrot.slane %v893, 1
      %v1287 = vsel %vm1230, %v1284, %v1286
      %v1288 = vrot.slane %v897, 1
      %v1289 = vsel %vm1230, %v1286, %v1288
      %v1290 = vrot.slane %v903, 1
      %v1291 = vsel %vm1230, %v1288, %v1290
      %v1292 = vrot.slane %v907, 1
      %v1293 = vsel %vm1230, %v1290, %v1292
      %v1326 = vadd.f32 %v1166, %v1233
      %v1327 = vadd.f32 %v1167, %v1235
      %v1328 = vadd.f32 %v1168, %v1237
      %v1329 = vadd.f32 %v1169, %v1239
      %v1330 = vadd.f32 %v1170, %v1241
      %v1331 = vadd.f32 %v1171, %v1243
      %v1332 = vadd.f32 %v1172, %v1245
      %v1333 = vadd.f32 %v1173, %v1247
      %v1334 = vadd.f32 %v1174, %v1249
      %v1335 = vadd.f32 %v1175, %v1251
      %v1336 = vadd.f32 %v1176, %v1253
      %v1337 = vadd.f32 %v1177, %v1255
      %v1338 = vadd.f32 %v1178, %v1257
      %v1339 = vadd.f32 %v1179, %v1259
      %v1340 = vadd.f32 %v1180, %v1261
      %v1341 = vadd.f32 %v1181, %v1263
      %v1342 = vadd.f32 %v1182, %v1265
      %v1343 = vadd.f32 %v1183, %v1267
      %v1344 = vadd.f32 %v1184, %v1269
      %v1345 = vadd.f32 %v1185, %v1271
      %v1346 = vadd.f32 %v1186, %v1273
      %v1347 = vadd.f32 %v1187, %v1275
      %v1348 = vadd.f32 %v1188, %v1277
      %v1349 = vadd.f32 %v1189, %v1279
      %v1350 = vadd.f32 %v1190, %v1281
      %v1351 = vadd.f32 %v1191, %v1283
      %v1352 = vadd.f32 %v1192, %v1285
      %v1353 = vadd.f32 %v1193, %v1287
      %v1354 = vadd.f32 %v1194, %v1289
      %v1355 = vadd.f32 %v1195, %v1291
      %v1356 = vadd.f32 %v1196, %v1293
      %v1357 = vadd.f32 %v1197, %v1292
      %1358 = vst [vmem:[#allocation2] sm:$0xff] %v1326
      %1359 = vst [vmem:[#allocation2 + $0x8] sm:$0xff] %v1327
      %1360 = vst [vmem:[#allocation2 + $0x10] sm:$0xff] %v1328
      %1361 = vst [vmem:[#allocation2 + $0x18] sm:$0xff] %v1329
      %1362 = vst [vmem:[#allocation2 + $0x20] sm:$0xff] %v1330
      %1363 = vst [vmem:[#allocation2 + $0x28] sm:$0xff] %v1331
      %1364 = vst [vmem:[#allocation2 + $0x30] sm:$0xff] %v1332
      %1365 = vst [vmem:[#allocation2 + $0x38] sm:$0xff] %v1333
      %1366 = vst [vmem:[#allocation2 + $0x40] sm:$0xff] %v1334
      %1367 = vst [vmem:[#allocation2 + $0x48] sm:$0xff] %v1335
      %1368 = vst [vmem:[#allocation2 + $0x50] sm:$0xff] %v1336
      %1369 = vst [vmem:[#allocation2 + $0x58] sm:$0xff] %v1337
      %1370 = vst [vmem:[#allocation2 + $0x60] sm:$0xff] %v1338
      %1371 = vst [vmem:[#allocation2 + $0x68] sm:$0xff] %v1339
      %1372 = vst [vmem:[#allocation2 + $0x70] sm:$0xff] %v1340
      %1373 = vst [vmem:[#allocation2 + $0x78] sm:$0xff] %v1341
      %1374 = vst [vmem:[#allocation2 + $0x80] sm:$0xff] %v1342
      %1375 = vst [vmem:[#allocation2 + $0x88] sm:$0xff] %v1343
      %1376 = vst [vmem:[#allocation2 + $0x90] sm:$0xff] %v1344
      %1377 = vst [vmem:[#allocation2 + $0x98] sm:$0xff] %v1345
      %1378 = vst [vmem:[#allocation2 + $0xa0] sm:$0xff] %v1346
      %1379 = vst [vmem:[#allocation2 + $0xa8] sm:$0xff] %v1347
      %1380 = vst [vmem:[#allocation2 + $0xb0] sm:$0xff] %v1348
      %1381 = vst [vmem:[#allocation2 + $0xb8] sm:$0xff] %v1349
      %1382 = vst [vmem:[#allocation2 + $0xc0] sm:$0xff] %v1350
      %1383 = vst [vmem:[#allocation2 + $0xc8] sm:$0xff] %v1351
      %1384 = vst [vmem:[#allocation2 + $0xd0] sm:$0xff] %v1352
      %1385 = vst [vmem:[#allocation2 + $0xd8] sm:$0xff] %v1353
      %1386 = vst [vmem:[#allocation2 + $0xe0] sm:$0xff] %v1354
      %1387 = vst [vmem:[#allocation2 + $0xe8] sm:$0xff] %v1355
      %1388 = vst [vmem:[#allocation2 + $0xf0] sm:$0xff] %v1356
      %1389 = vst [vmem:[#allocation2 + $0xf8] sm:$0x7f] %v1357
      %v1390 = vld [vmem:[#allocation2] sm:$0xff]
      %v1391 = vld [vmem:[#allocation2 + $0x8] sm:$0xff]
      %v1392 = vld [vmem:[#allocation2 + $0x10] sm:$0xff]
      %v1393 = vld [vmem:[#allocation2 + $0x18] sm:$0xff]
      %v1394 = vld [vmem:[#allocation2 + $0x20] sm:$0xff]
      %v1395 = vld [vmem:[#allocation2 + $0x28] sm:$0xff]
      %v1396 = vld [vmem:[#allocation2 + $0x30] sm:$0xff]
      %v1397 = vld [vmem:[#allocation2 + $0x38] sm:$0xff]
      %v1398 = vld [vmem:[#allocation2 + $0x40] sm:$0xff]
      %v1399 = vld [vmem:[#allocation2 + $0x48] sm:$0xff]
      %v1400 = vld [vmem:[#allocation2 + $0x50] sm:$0xff]
      %v1401 = vld [vmem:[#allocation2 + $0x58] sm:$0xff]
      %v1402 = vld [vmem:[#allocation2 + $0x60] sm:$0xff]
      %v1403 = vld [vmem:[#allocation2 + $0x68] sm:$0xff]
      %v1404 = vld [vmem:[#allocation2 + $0x70] sm:$0xff]
      %v1405 = vld [vmem:[#allocation2 + $0x78] sm:$0xff]
      %v1406 = vld [vmem:[#allocation2 + $0x80] sm:$0xff]
      %v1407 = vld [vmem:[#allocation2 + $0x88] sm:$0xff]
      %v1408 = vld [vmem:[#allocation2 + $0x90] sm:$0xff]
      %v1409 = vld [vmem:[#allocation2 + $0x98] sm:$0xff]
      %v1410 = vld [vmem:[#allocation2 + $0xa0] sm:$0xff]
      %v1411 = vld [vmem:[#allocation2 + $0xa8] sm:$0xff]
      %v1412 = vld [vmem:[#allocation2 + $0xb0] sm:$0xff]
      %v1413 = vld [vmem:[#allocation2 + $0xb8] sm:$0xff]
      %v1414 = vld [vmem:[#allocation2 + $0xc0] sm:$0xff]
      %v1415 = vld [vmem:[#allocation2 + $0xc8] sm:$0xff]
      %v1416 = vld [vmem:[#allocation2 + $0xd0] sm:$0xff]
      %v1417 = vld [vmem:[#allocation2 + $0xd8] sm:$0xff]
      %v1418 = vld [vmem:[#allocation2 + $0xe0] sm:$0xff]
      %v1419 = vld [vmem:[#allocation2 + $0xe8] sm:$0xff]
      %v1420 = vld [vmem:[#allocation2 + $0xf0] sm:$0xff]
      %v1421 = vld [vmem:[#allocation2 + $0xf8] sm:$0x3f]
      %vm1454 = vcmask 1045504
      %v1455 = vrot.slane %v944, 2
      %v1456 = vrot.slane %v947, 2
      %v1457 = vsel %vm1454, %v1455, %v1456
      %v1458 = vrot.slane %v952, 2
      %v1459 = vsel %vm1454, %v1456, %v1458
      %v1460 = vrot.slane %v955, 2
      %v1461 = vsel %vm1454, %v1458, %v1460
      %v1462 = vrot.slane %v960, 2
      %v1463 = vsel %vm1454, %v1460, %v1462
      %v1464 = vrot.slane %v963, 2
      %v1465 = vsel %vm1454, %v1462, %v1464
      %v1466 = vrot.slane %v968, 2
      %v1467 = vsel %vm1454, %v1464, %v1466
      %v1468 = vrot.slane %v971, 2
      %v1469 = vsel %vm1454, %v1466, %v1468
      %v1470 = vrot.slane %v976, 2
      %v1471 = vsel %vm1454, %v1468, %v1470
      %v1472 = vrot.slane %v979, 2
      %v1473 = vsel %vm1454, %v1470, %v1472
      %v1474 = vrot.slane %v984, 2
      %v1475 = vsel %vm1454, %v1472, %v1474
      %v1476 = vrot.slane %v987, 2
      %v1477 = vsel %vm1454, %v1474, %v1476
      %v1478 = vrot.slane %v992, 2
      %v1479 = vsel %vm1454, %v1476, %v1478
      %v1480 = vrot.slane %v995, 2
      %v1481 = vsel %vm1454, %v1478, %v1480
      %v1482 = vrot.slane %v1000, 2
      %v1483 = vsel %vm1454, %v1480, %v1482
      %v1484 = vrot.slane %v1003, 2
      %v1485 = vsel %vm1454, %v1482, %v1484
      %v1486 = vrot.slane %v1008, 2
      %v1487 = vsel %vm1454, %v1484, %v1486
      %v1488 = vrot.slane %v1011, 2
      %v1489 = vsel %vm1454, %v1486, %v1488
      %v1490 = vrot.slane %v1016, 2
      %v1491 = vsel %vm1454, %v1488, %v1490
      %v1492 = vrot.slane %v1019, 2
      %v1493 = vsel %vm1454, %v1490, %v1492
      %v1494 = vrot.slane %v1024, 2
      %v1495 = vsel %vm1454, %v1492, %v1494
      %v1496 = vrot.slane %v1027, 2
      %v1497 = vsel %vm1454, %v1494, %v1496
      %v1498 = vrot.slane %v1032, 2
      %v1499 = vsel %vm1454, %v1496, %v1498
      %v1500 = vrot.slane %v1035, 2
      %v1501 = vsel %vm1454, %v1498, %v1500
      %v1502 = vrot.slane %v1040, 2
      %v1503 = vsel %vm1454, %v1500, %v1502
      %v1504 = vrot.slane %v1043, 2
      %v1505 = vsel %vm1454, %v1502, %v1504
      %v1506 = vrot.slane %v1048, 2
      %v1507 = vsel %vm1454, %v1504, %v1506
      %v1508 = vrot.slane %v1051, 2
      %v1509 = vsel %vm1454, %v1506, %v1508
      %v1510 = vrot.slane %v1056, 2
      %v1511 = vsel %vm1454, %v1508, %v1510
      %v1512 = vrot.slane %v1059, 2
      %v1513 = vsel %vm1454, %v1510, %v1512
      %v1514 = vrot.slane %v1064, 2
      %v1515 = vsel %vm1454, %v1512, %v1514
      %v1516 = vrot.slane %v1067, 2
      %v1517 = vsel %vm1454, %v1514, %v1516
      %v1550 = vadd.f32 %v1390, %v1457
      %v1551 = vadd.f32 %v1391, %v1459
      %v1552 = vadd.f32 %v1392, %v1461
      %v1553 = vadd.f32 %v1393, %v1463
      %v1554 = vadd.f32 %v1394, %v1465
      %v1555 = vadd.f32 %v1395, %v1467
      %v1556 = vadd.f32 %v1396, %v1469
      %v1557 = vadd.f32 %v1397, %v1471
      %v1558 = vadd.f32 %v1398, %v1473
      %v1559 = vadd.f32 %v1399, %v1475
      %v1560 = vadd.f32 %v1400, %v1477
      %v1561 = vadd.f32 %v1401, %v1479
      %v1562 = vadd.f32 %v1402, %v1481
      %v1563 = vadd.f32 %v1403, %v1483
      %v1564 = vadd.f32 %v1404, %v1485
      %v1565 = vadd.f32 %v1405, %v1487
      %v1566 = vadd.f32 %v1406, %v1489
      %v1567 = vadd.f32 %v1407, %v1491
      %v1568 = vadd.f32 %v1408, %v1493
      %v1569 = vadd.f32 %v1409, %v1495
      %v1570 = vadd.f32 %v1410, %v1497
      %v1571 = vadd.f32 %v1411, %v1499
      %v1572 = vadd.f32 %v1412, %v1501
      %v1573 = vadd.f32 %v1413, %v1503
      %v1574 = vadd.f32 %v1414, %v1505
      %v1575 = vadd.f32 %v1415, %v1507
      %v1576 = vadd.f32 %v1416, %v1509
      %v1577 = vadd.f32 %v1417, %v1511
      %v1578 = vadd.f32 %v1418, %v1513
      %v1579 = vadd.f32 %v1419, %v1515
      %v1580 = vadd.f32 %v1420, %v1517
      %v1581 = vadd.f32 %v1421, %v1516
      %1582 = vst [vmem:[#allocation2] sm:$0xff] %v1550
      %1583 = vst [vmem:[#allocation2 + $0x8] sm:$0xff] %v1551
      %1584 = vst [vmem:[#allocation2 + $0x10] sm:$0xff] %v1552
      %1585 = vst [vmem:[#allocation2 + $0x18] sm:$0xff] %v1553
      %1586 = vst [vmem:[#allocation2 + $0x20] sm:$0xff] %v1554
      %1587 = vst [vmem:[#allocation2 + $0x28] sm:$0xff] %v1555
      %1588 = vst [vmem:[#allocation2 + $0x30] sm:$0xff] %v1556
      %1589 = vst [vmem:[#allocation2 + $0x38] sm:$0xff] %v1557
      %1590 = vst [vmem:[#allocation2 + $0x40] sm:$0xff] %v1558
      %1591 = vst [vmem:[#allocation2 + $0x48] sm:$0xff] %v1559
      %1592 = vst [vmem:[#allocation2 + $0x50] sm:$0xff] %v1560
      %1593 = vst [vmem:[#allocation2 + $0x58] sm:$0xff] %v1561
      %1594 = vst [vmem:[#allocation2 + $0x60] sm:$0xff] %v1562
      %1595 = vst [vmem:[#allocation2 + $0x68] sm:$0xff] %v1563
      %1596 = vst [vmem:[#allocation2 + $0x70] sm:$0xff] %v1564
      %1597 = vst [vmem:[#allocation2 + $0x78] sm:$0xff] %v1565
      %1598 = vst [vmem:[#allocation2 + $0x80] sm:$0xff] %v1566
      %1599 = vst [vmem:[#allocation2 + $0x88] sm:$0xff] %v1567
      %1600 = vst [vmem:[#allocation2 + $0x90] sm:$0xff] %v1568
      %1601 = vst [vmem:[#allocation2 + $0x98] sm:$0xff] %v1569
      %1602 = vst [vmem:[#allocation2 + $0xa0] sm:$0xff] %v1570
      %1603 = vst [vmem:[#allocation2 + $0xa8] sm:$0xff] %v1571
      %1604 = vst [vmem:[#allocation2 + $0xb0] sm:$0xff] %v1572
      %1605 = vst [vmem:[#allocation2 + $0xb8] sm:$0xff] %v1573
      %1606 = vst [vmem:[#allocation2 + $0xc0] sm:$0xff] %v1574
      %1607 = vst [vmem:[#allocation2 + $0xc8] sm:$0xff] %v1575
      %1608 = vst [vmem:[#allocation2 + $0xd0] sm:$0xff] %v1576
      %1609 = vst [vmem:[#allocation2 + $0xd8] sm:$0xff] %v1577
      %1610 = vst [vmem:[#allocation2 + $0xe0] sm:$0xff] %v1578
      %1611 = vst [vmem:[#allocation2 + $0xe8] sm:$0xff] %v1579
      %1612 = vst [vmem:[#allocation2 + $0xf0] sm:$0xff] %v1580
      %1613 = vst [vmem:[#allocation2 + $0xf8] sm:$0x3f] %v1581
      %v1614 = vld [vmem:[%s165 + $0x20] sm:$0xff]
      %v1615 = vld [vmem:[%s165 + $0x28] sm:$0xff]
      %v1616 = vld [vmem:[%s165 + $0x30] sm:$0xff]
      %v1617 = vld [vmem:[%s165 + $0x38] sm:$0xff]
      %v1618 = vld [vmem:[%s165 + $0x40] sm:$0xff]
      %v1619 = vld [vmem:[%s165 + $0x48] sm:$0xff]
      %v1620 = vld [vmem:[%s165 + $0x50] sm:$0xff]
      %v1621 = vld [vmem:[%s165 + $0x58] sm:$0xff]
      %v1622 = vld [vmem:[%s165 + $0x60] sm:$0xff]
      %v1623 = vld [vmem:[%s165 + $0x68] sm:$0xff]
      %v1624 = vld [vmem:[%s165 + $0x70] sm:$0xff]
      %v1625 = vld [vmem:[%s165 + $0x78] sm:$0xff]
      %v1626 = vld [vmem:[%s165 + $0x80] sm:$0xff]
      %v1627 = vld [vmem:[%s165 + $0x88] sm:$0xff]
      %v1628 = vld [vmem:[%s165 + $0x90] sm:$0xff]
      %v1629 = vld [vmem:[%s165 + $0x98] sm:$0xff]
      %v1630 = vld [vmem:[%s165 + $0xa0] sm:$0xff]
      %v1631 = vld [vmem:[%s165 + $0xa8] sm:$0xff]
      %v1632 = vld [vmem:[%s165 + $0xb0] sm:$0xff]
      %v1633 = vld [vmem:[%s165 + $0xb8] sm:$0xff]
      %v1634 = vld [vmem:[%s165 + $0xc0] sm:$0xff]
      %v1635 = vld [vmem:[%s165 + $0xc8] sm:$0xff]
      %v1636 = vld [vmem:[%s165 + $0xd0] sm:$0xff]
      %v1637 = vld [vmem:[%s165 + $0xd8] sm:$0xff]
      %v1638 = vld [vmem:[%s165 + $0xe0] sm:$0xff]
      %v1639 = vld [vmem:[%s165 + $0xe8] sm:$0xff]
      %v1640 = vld [vmem:[%s165 + $0xf0] sm:$0xff]
      %v1641 = vld [vmem:[%s165 + $0xf8] sm:$0xff]
      %v1642 = vld [vmem:[%s165 + $0x100] sm:$0xff]
      %v1643 = vld [vmem:[%s165 + $0x108] sm:$0xff]
      %v1644 = vld [vmem:[%s165 + $0x110] sm:$0xff]
      %v1645 = vld [vmem:[%s165 + $0x118] sm:$0xff]
      %s1646 = scalar_lea.vmem %s1, 384
      %v1647 = vld [vmem:[%s1646] sm:$0xff]
      %v1648 = vld [vmem:[%s1646 + $0x8] sm:$0xf]
      %v1649 = vld [vmem:[%s1646 + $0xc] sm:$0xff]
      %v1650 = vld [vmem:[%s1646 + $0x14] sm:$0xf]
      %v1651 = vld [vmem:[%s1646 + $0x18] sm:$0xff]
      %v1652 = vld [vmem:[%s1646 + $0x20] sm:$0xf]
      %v1653 = vld [vmem:[%s1646 + $0x24] sm:$0xff]
      %v1654 = vld [vmem:[%s1646 + $0x2c] sm:$0xf]
      %v1655 = vld [vmem:[%s1646 + $0x30] sm:$0xff]
      %v1656 = vld [vmem:[%s1646 + $0x38] sm:$0xf]
      %v1657 = vld [vmem:[%s1646 + $0x3c] sm:$0xff]
      %v1658 = vld [vmem:[%s1646 + $0x44] sm:$0xf]
      %v1659 = vld [vmem:[%s1646 + $0x48] sm:$0xff]
      %v1660 = vld [vmem:[%s1646 + $0x50] sm:$0xf]
      %v1661 = vld [vmem:[%s1646 + $0x54] sm:$0xff]
      %v1662 = vld [vmem:[%s1646 + $0x5c] sm:$0xf]
      %v1663 = vld [vmem:[%s1646 + $0x60] sm:$0xff]
      %v1664 = vld [vmem:[%s1646 + $0x68] sm:$0xf]
      %v1665 = vld [vmem:[%s1646 + $0x6c] sm:$0xff]
      %v1666 = vld [vmem:[%s1646 + $0x74] sm:$0xf]
      %v1667 = vld [vmem:[%s1646 + $0x78] sm:$0xff]
      %v1668 = vld [vmem:[%s1646 + $0x80] sm:$0xf]
      %v1669 = vld [vmem:[%s1646 + $0x84] sm:$0xff]
      %v1670 = vld [vmem:[%s1646 + $0x8c] sm:$0xf]
      %v1671 = vld [vmem:[%s1646 + $0x90] sm:$0xff]
      %v1672 = vld [vmem:[%s1646 + $0x98] sm:$0xf]
      %v1673 = vld [vmem:[%s1646 + $0x9c] sm:$0xff]
      %v1674 = vld [vmem:[%s1646 + $0xa4] sm:$0xf]
      %v1675 = vld [vmem:[%s1646 + $0xa8] sm:$0xff]
      %v1676 = vld [vmem:[%s1646 + $0xb0] sm:$0xf]
      %v1677 = vld [vmem:[%s1646 + $0xb4] sm:$0xff]
      %v1678 = vld [vmem:[%s1646 + $0xbc] sm:$0xf]
      %v1679 = vld [vmem:[%s1646 + $0xc0] sm:$0xff]
      %v1680 = vld [vmem:[%s1646 + $0xc8] sm:$0xf]
      %v1681 = vld [vmem:[%s1646 + $0xcc] sm:$0xff]
      %v1682 = vld [vmem:[%s1646 + $0xd4] sm:$0xf]
      %v1683 = vld [vmem:[%s1646 + $0xd8] sm:$0xff]
      %v1684 = vld [vmem:[%s1646 + $0xe0] sm:$0xf]
      %v1685 = vld [vmem:[%s1646 + $0xe4] sm:$0xff]
      %v1686 = vld [vmem:[%s1646 + $0xec] sm:$0xf]
      %v1687 = vld [vmem:[%s1646 + $0xf0] sm:$0xff]
      %v1688 = vld [vmem:[%s1646 + $0xf8] sm:$0xf]
      %v1689 = vld [vmem:[%s1646 + $0xfc] sm:$0xff]
      %v1690 = vld [vmem:[%s1646 + $0x104] sm:$0xf]
      %v1691 = vld [vmem:[%s1646 + $0x108] sm:$0xff]
      %v1692 = vld [vmem:[%s1646 + $0x110] sm:$0xf]
      %v1693 = vld [vmem:[%s1646 + $0x114] sm:$0xff]
      %v1694 = vld [vmem:[%s1646 + $0x11c] sm:$0xf]
      %v1695 = vld [vmem:[%s1646 + $0x120] sm:$0xff]
      %v1696 = vld [vmem:[%s1646 + $0x128] sm:$0xf]
      %v1697 = vld [vmem:[%s1646 + $0x12c] sm:$0xff]
      %v1698 = vld [vmem:[%s1646 + $0x134] sm:$0xf]
      %v1699 = vld [vmem:[%s1646 + $0x138] sm:$0xff]
      %v1700 = vld [vmem:[%s1646 + $0x140] sm:$0xf]
      %v1701 = vld [vmem:[%s1646 + $0x144] sm:$0xff]
      %v1702 = vld [vmem:[%s1646 + $0x14c] sm:$0xf]
      %v1703 = vld [vmem:[%s1646 + $0x150] sm:$0xff]
      %v1704 = vld [vmem:[%s1646 + $0x158] sm:$0xf]
      %v1705 = vld [vmem:[%s1646 + $0x15c] sm:$0xff]
      %v1706 = vld [vmem:[%s1646 + $0x164] sm:$0xf]
      %v1707 = vld [vmem:[%s1646 + $0x168] sm:$0xff]
      %v1708 = vld [vmem:[%s1646 + $0x170] sm:$0xf]
      %v1709 = vld [vmem:[%s1646 + $0x174] sm:$0xff]
      %v1710 = vld [vmem:[%s1646 + $0x17c] sm:$0xf]
      %v1743 = vunpack.c.l.b16 %v1614
      %v1744 = vunpack.c.h.b16 %v1614
      %v1745 = vunpack.c.l.b16 %v1615
      %v1746 = vunpack.c.h.b16 %v1615
      %v1747 = vunpack.c.l.b16 %v1616
      %v1748 = vunpack.c.h.b16 %v1616
      %v1749 = vunpack.c.l.b16 %v1617
      %v1750 = vunpack.c.h.b16 %v1617
      %v1751 = vunpack.c.l.b16 %v1618
      %v1752 = vunpack.c.h.b16 %v1618
      %v1753 = vunpack.c.l.b16 %v1619
      %v1754 = vunpack.c.h.b16 %v1619
      %v1755 = vunpack.c.l.b16 %v1620
      %v1756 = vunpack.c.h.b16 %v1620
      %v1757 = vunpack.c.l.b16 %v1621
      %v1758 = vunpack.c.h.b16 %v1621
      %v1759 = vunpack.c.l.b16 %v1622
      %v1760 = vunpack.c.h.b16 %v1622
      %v1761 = vunpack.c.l.b16 %v1623
      %v1762 = vunpack.c.h.b16 %v1623
      %v1763 = vunpack.c.l.b16 %v1624
      %v1764 = vunpack.c.h.b16 %v1624
      %v1765 = vunpack.c.l.b16 %v1625
      %v1766 = vunpack.c.h.b16 %v1625
      %v1767 = vunpack.c.l.b16 %v1626
      %v1768 = vunpack.c.h.b16 %v1626
      %v1769 = vunpack.c.l.b16 %v1627
      %v1770 = vunpack.c.h.b16 %v1627
      %v1771 = vunpack.c.l.b16 %v1628
      %v1772 = vunpack.c.h.b16 %v1628
      %v1773 = vunpack.c.l.b16 %v1629
      %v1774 = vunpack.c.h.b16 %v1629
      %v1775 = vunpack.c.l.b16 %v1630
      %v1776 = vunpack.c.h.b16 %v1630
      %v1777 = vunpack.c.l.b16 %v1631
      %v1778 = vunpack.c.h.b16 %v1631
      %v1779 = vunpack.c.l.b16 %v1632
      %v1780 = vunpack.c.h.b16 %v1632
      %v1781 = vunpack.c.l.b16 %v1633
      %v1782 = vunpack.c.h.b16 %v1633
      %v1783 = vunpack.c.l.b16 %v1634
      %v1784 = vunpack.c.h.b16 %v1634
      %v1785 = vunpack.c.l.b16 %v1635
      %v1786 = vunpack.c.h.b16 %v1635
      %v1787 = vunpack.c.l.b16 %v1636
      %v1788 = vunpack.c.h.b16 %v1636
      %v1789 = vunpack.c.l.b16 %v1637
      %v1790 = vunpack.c.h.b16 %v1637
      %v1791 = vunpack.c.l.b16 %v1638
      %v1792 = vunpack.c.h.b16 %v1638
      %v1793 = vunpack.c.l.b16 %v1639
      %v1794 = vunpack.c.h.b16 %v1639
      %v1795 = vunpack.c.l.b16 %v1640
      %v1796 = vunpack.c.h.b16 %v1640
      %v1797 = vunpack.c.l.b16 %v1641
      %v1798 = vunpack.c.h.b16 %v1641
      %v1799 = vunpack.c.l.b16 %v1642
      %v1800 = vunpack.c.h.b16 %v1642
      %v1801 = vunpack.c.l.b16 %v1643
      %v1802 = vunpack.c.h.b16 %v1643
      %v1803 = vunpack.c.l.b16 %v1644
      %v1804 = vunpack.c.h.b16 %v1644
      %v1805 = vunpack.c.l.b16 %v1645
      %v1806 = vunpack.c.h.b16 %v1645
      %v1807 = vpack.c.b16 %v1745, %v1743
      %v1808 = vpack.c.b16 %v1746, %v1744
      %v1809 = vpack.c.b16 %v1749, %v1747
      %v1810 = vpack.c.b16 %v1750, %v1748
      %v1811 = vpack.c.b16 %v1753, %v1751
      %v1812 = vpack.c.b16 %v1754, %v1752
      %v1813 = vpack.c.b16 %v1757, %v1755
      %v1814 = vpack.c.b16 %v1758, %v1756
      %v1815 = vpack.c.b16 %v1761, %v1759
      %v1816 = vpack.c.b16 %v1762, %v1760
      %v1817 = vpack.c.b16 %v1765, %v1763
      %v1818 = vpack.c.b16 %v1766, %v1764
      %v1819 = vpack.c.b16 %v1769, %v1767
      %v1820 = vpack.c.b16 %v1770, %v1768
      %v1821 = vpack.c.b16 %v1773, %v1771
      %v1822 = vpack.c.b16 %v1774, %v1772
      %v1823 = vpack.c.b16 %v1777, %v1775
      %v1824 = vpack.c.b16 %v1778, %v1776
      %v1825 = vpack.c.b16 %v1781, %v1779
      %v1826 = vpack.c.b16 %v1782, %v1780
      %v1827 = vpack.c.b16 %v1785, %v1783
      %v1828 = vpack.c.b16 %v1786, %v1784
      %v1829 = vpack.c.b16 %v1789, %v1787
      %v1830 = vpack.c.b16 %v1790, %v1788
      %v1831 = vpack.c.b16 %v1793, %v1791
      %v1832 = vpack.c.b16 %v1794, %v1792
      %v1833 = vpack.c.b16 %v1797, %v1795
      %v1834 = vpack.c.b16 %v1798, %v1796
      %v1835 = vpack.c.b16 %v1801, %v1799
      %v1836 = vpack.c.b16 %v1802, %v1800
      %v1837 = vpack.c.b16 %v1805, %v1803
      %v1838 = vpack.c.b16 %v1806, %v1804
      %v1935 = vunpack.c.l.b16 %v1647
      %v1936 = vunpack.c.h.b16 %v1647
      %v1937 = vunpack.c.l.b16 %v1648
      %v1938 = vunpack.c.l.b16 %v1649
      %v1939 = vunpack.c.h.b16 %v1649
      %v1940 = vunpack.c.l.b16 %v1650
      %v1941 = vunpack.c.l.b16 %v1651
      %v1942 = vunpack.c.h.b16 %v1651
      %v1943 = vunpack.c.l.b16 %v1652
      %v1944 = vunpack.c.l.b16 %v1653
      %v1945 = vunpack.c.h.b16 %v1653
      %v1946 = vunpack.c.l.b16 %v1654
      %v1947 = vunpack.c.l.b16 %v1655
      %v1948 = vunpack.c.h.b16 %v1655
      %v1949 = vunpack.c.l.b16 %v1656
      %v1950 = vunpack.c.l.b16 %v1657
      %v1951 = vunpack.c.h.b16 %v1657
      %v1952 = vunpack.c.l.b16 %v1658
      %v1953 = vunpack.c.l.b16 %v1659
      %v1954 = vunpack.c.h.b16 %v1659
      %v1955 = vunpack.c.l.b16 %v1660
      %v1956 = vunpack.c.l.b16 %v1661
      %v1957 = vunpack.c.h.b16 %v1661
      %v1958 = vunpack.c.l.b16 %v1662
      %v1959 = vunpack.c.l.b16 %v1663
      %v1960 = vunpack.c.h.b16 %v1663
      %v1961 = vunpack.c.l.b16 %v1664
      %v1962 = vunpack.c.l.b16 %v1665
      %v1963 = vunpack.c.h.b16 %v1665
      %v1964 = vunpack.c.l.b16 %v1666
      %v1965 = vunpack.c.l.b16 %v1667
      %v1966 = vunpack.c.h.b16 %v1667
      %v1967 = vunpack.c.l.b16 %v1668
      %v1968 = vunpack.c.l.b16 %v1669
      %v1969 = vunpack.c.h.b16 %v1669
      %v1970 = vunpack.c.l.b16 %v1670
      %v1971 = vunpack.c.l.b16 %v1671
      %v1972 = vunpack.c.h.b16 %v1671
      %v1973 = vunpack.c.l.b16 %v1672
      %v1974 = vunpack.c.l.b16 %v1673
      %v1975 = vunpack.c.h.b16 %v1673
      %v1976 = vunpack.c.l.b16 %v1674
      %v1977 = vunpack.c.l.b16 %v1675
      %v1978 = vunpack.c.h.b16 %v1675
      %v1979 = vunpack.c.l.b16 %v1676
      %v1980 = vunpack.c.l.b16 %v1677
      %v1981 = vunpack.c.h.b16 %v1677
      %v1982 = vunpack.c.l.b16 %v1678
      %v1983 = vunpack.c.l.b16 %v1679
      %v1984 = vunpack.c.h.b16 %v1679
      %v1985 = vunpack.c.l.b16 %v1680
      %v1986 = vunpack.c.l.b16 %v1681
      %v1987 = vunpack.c.h.b16 %v1681
      %v1988 = vunpack.c.l.b16 %v1682
      %v1989 = vunpack.c.l.b16 %v1683
      %v1990 = vunpack.c.h.b16 %v1683
      %v1991 = vunpack.c.l.b16 %v1684
      %v1992 = vunpack.c.l.b16 %v1685
      %v1993 = vunpack.c.h.b16 %v1685
      %v1994 = vunpack.c.l.b16 %v1686
      %v1995 = vunpack.c.l.b16 %v1687
      %v1996 = vunpack.c.h.b16 %v1687
      %v1997 = vunpack.c.l.b16 %v1688
      %v1998 = vunpack.c.l.b16 %v1689
      %v1999 = vunpack.c.h.b16 %v1689
      %v2000 = vunpack.c.l.b16 %v1690
      %v2001 = vunpack.c.l.b16 %v1691
      %v2002 = vunpack.c.h.b16 %v1691
      %v2003 = vunpack.c.l.b16 %v1692
      %v2004 = vunpack.c.l.b16 %v1693
      %v2005 = vunpack.c.h.b16 %v1693
      %v2006 = vunpack.c.l.b16 %v1694
      %v2007 = vunpack.c.l.b16 %v1695
      %v2008 = vunpack.c.h.b16 %v1695
      %v2009 = vunpack.c.l.b16 %v1696
      %v2010 = vunpack.c.l.b16 %v1697
      %v2011 = vunpack.c.h.b16 %v1697
      %v2012 = vunpack.c.l.b16 %v1698
      %v2013 = vunpack.c.l.b16 %v1699
      %v2014 = vunpack.c.h.b16 %v1699
      %v2015 = vunpack.c.l.b16 %v1700
      %v2016 = vunpack.c.l.b16 %v1701
      %v2017 = vunpack.c.h.b16 %v1701
      %v2018 = vunpack.c.l.b16 %v1702
      %v2019 = vunpack.c.l.b16 %v1703
      %v2020 = vunpack.c.h.b16 %v1703
      %v2021 = vunpack.c.l.b16 %v1704
      %v2022 = vunpack.c.l.b16 %v1705
      %v2023 = vunpack.c.h.b16 %v1705
      %v2024 = vunpack.c.l.b16 %v1706
      %v2025 = vunpack.c.l.b16 %v1707
      %v2026 = vunpack.c.h.b16 %v1707
      %v2027 = vunpack.c.l.b16 %v1708
      %v2028 = vunpack.c.l.b16 %v1709
      %v2029 = vunpack.c.h.b16 %v1709
      %v2030 = vunpack.c.l.b16 %v1710
      %v2031 = vpack.c.b16 %v1938, %v1935
      %v2032 = vpack.c.b16 %v1939, %v1936
      %v2033 = vpack.c.b16 %v1940, %v1937
      %v2034 = vpack.c.b16 %v1944, %v1941
      %v2035 = vpack.c.b16 %v1945, %v1942
      %v2036 = vpack.c.b16 %v1946, %v1943
      %v2037 = vpack.c.b16 %v1950, %v1947
      %v2038 = vpack.c.b16 %v1951, %v1948
      %v2039 = vpack.c.b16 %v1952, %v1949
      %v2040 = vpack.c.b16 %v1956, %v1953
      %v2041 = vpack.c.b16 %v1957, %v1954
      %v2042 = vpack.c.b16 %v1958, %v1955
      %v2043 = vpack.c.b16 %v1962, %v1959
      %v2044 = vpack.c.b16 %v1963, %v1960
      %v2045 = vpack.c.b16 %v1964, %v1961
      %v2046 = vpack.c.b16 %v1968, %v1965
      %v2047 = vpack.c.b16 %v1969, %v1966
      %v2048 = vpack.c.b16 %v1970, %v1967
      %v2049 = vpack.c.b16 %v1974, %v1971
      %v2050 = vpack.c.b16 %v1975, %v1972
      %v2051 = vpack.c.b16 %v1976, %v1973
      %v2052 = vpack.c.b16 %v1980, %v1977
      %v2053 = vpack.c.b16 %v1981, %v1978
      %v2054 = vpack.c.b16 %v1982, %v1979
      %v2055 = vpack.c.b16 %v1986, %v1983
      %v2056 = vpack.c.b16 %v1987, %v1984
      %v2057 = vpack.c.b16 %v1988, %v1985
      %v2058 = vpack.c.b16 %v1992, %v1989
      %v2059 = vpack.c.b16 %v1993, %v1990
      %v2060 = vpack.c.b16 %v1994, %v1991
      %v2061 = vpack.c.b16 %v1998, %v1995
      %v2062 = vpack.c.b16 %v1999, %v1996
      %v2063 = vpack.c.b16 %v2000, %v1997
      %v2064 = vpack.c.b16 %v2004, %v2001
      %v2065 = vpack.c.b16 %v2005, %v2002
      %v2066 = vpack.c.b16 %v2006, %v2003
      %v2067 = vpack.c.b16 %v2010, %v2007
      %v2068 = vpack.c.b16 %v2011, %v2008
      %v2069 = vpack.c.b16 %v2012, %v2009
      %v2070 = vpack.c.b16 %v2016, %v2013
      %v2071 = vpack.c.b16 %v2017, %v2014
      %v2072 = vpack.c.b16 %v2018, %v2015
      %v2073 = vpack.c.b16 %v2022, %v2019
      %v2074 = vpack.c.b16 %v2023, %v2020
      %v2075 = vpack.c.b16 %v2024, %v2021
      %v2076 = vpack.c.b16 %v2028, %v2025
      %v2077 = vpack.c.b16 %v2029, %v2026
      %v2078 = vpack.c.b16 %v2030, %v2027
      %2127 = vmatprep.subr.bf16.mxu0 %v2032
      %2128 = vmatpush1.bf16.msra.mxu0 %v2031
      %2129 = vmatprep.subr.bf16.mxu0 %v2035
      %2130 = vmatpush1.bf16.msra.mxu0 %v2034
      %2131 = vmatprep.subr.bf16.mxu0 %v2038
      %2132 = vmatpush1.bf16.msra.mxu0 %v2037
      %2133 = vmatprep.subr.bf16.mxu0 %v2041
      %2134 = vmatpush1.bf16.msra.mxu0 %v2040
      %2135 = vmatprep.subr.bf16.mxu0 %v2044
      %2136 = vmatpush1.bf16.msra.mxu0 %v2043
      %2137 = vmatprep.subr.bf16.mxu0 %v2047
      %2138 = vmatpush1.bf16.msra.mxu0 %v2046
      %2139 = vmatprep.subr.bf16.mxu0 %v2050
      %2140 = vmatpush1.bf16.msra.mxu0 %v2049
      %2141 = vmatprep.subr.bf16.mxu0 %v2053
      %2142 = vmatpush1.bf16.msra.mxu0 %v2052
      %2143 = vmatprep.subr.bf16.mxu0 %v2056
      %2144 = vmatpush1.bf16.msra.mxu0 %v2055
      %2145 = vmatprep.subr.bf16.mxu0 %v2059
      %2146 = vmatpush1.bf16.msra.mxu0 %v2058
      %2147 = vmatprep.subr.bf16.mxu0 %v2062
      %2148 = vmatpush1.bf16.msra.mxu0 %v2061
      %2149 = vmatprep.subr.bf16.mxu0 %v2065
      %2150 = vmatpush1.bf16.msra.mxu0 %v2064
      %2151 = vmatprep.subr.bf16.mxu0 %v2068
      %2152 = vmatpush1.bf16.msra.mxu0 %v2067
      %2153 = vmatprep.subr.bf16.mxu0 %v2071
      %2154 = vmatpush1.bf16.msra.mxu0 %v2070
      %2155 = vmatprep.subr.bf16.mxu0 %v2074
      %2156 = vmatpush1.bf16.msra.mxu0 %v2073
      %2157 = vmatprep.subr.bf16.mxu0 %v2077
      %2158 = vmatpush1.bf16.msra.mxu0 %v2076
      %2159 = vmatprep.mubr.bf16.mxu0 %v1808
      %2160 = vmatmul.mubr.bf16.gmra.mrb[0].mxu0 %v1807
      %v2161 = vpop.f32.mrb[0].mxu0
      %v2162 = vadd.f32 0.0, %v2161
      %v2163 = vpop.f32.mrb[0].mxu0
      %v2164 = vadd.f32 0.0, %v2163
      %v2165 = vpop.f32.mrb[0].mxu0
      %v2166 = vadd.f32 0.0, %v2165
      %v2167 = vpop.f32.mrb[0].mxu0
      %v2168 = vadd.f32 0.0, %v2167
      %2169 = vmatprep.mubr.bf16.mxu0 %v1810
      %2170 = vmatmul.mubr.bf16.gmra.mrb[0].mxu0 %v1809
      %v2171 = vpop.f32.mrb[0].mxu0
      %v2172 = vadd.f32 0.0, %v2171
      %v2173 = vpop.f32.mrb[0].mxu0
      %v2174 = vadd.f32 0.0, %v2173
      %v2175 = vpop.f32.mrb[0].mxu0
      %v2176 = vadd.f32 0.0, %v2175
      %v2177 = vpop.f32.mrb[0].mxu0
      %v2178 = vadd.f32 0.0, %v2177
      %2179 = vmatprep.mubr.bf16.mxu0 %v1812
      %2180 = vmatmul.mubr.bf16.gmra.mrb[0].mxu0 %v1811
      %v2181 = vpop.f32.mrb[0].mxu0
      %v2182 = vadd.f32 0.0, %v2181
      %v2183 = vpop.f32.mrb[0].mxu0
      %v2184 = vadd.f32 0.0, %v2183
      %v2185 = vpop.f32.mrb[0].mxu0
      %v2186 = vadd.f32 0.0, %v2185
      %v2187 = vpop.f32.mrb[0].mxu0
      %v2188 = vadd.f32 0.0, %v2187
      %2189 = vmatprep.mubr.bf16.mxu0 %v1814
      %2190 = vmatmul.mubr.bf16.gmra.mrb[0].mxu0 %v1813
      %v2191 = vpop.f32.mrb[0].mxu0
      %v2192 = vadd.f32 0.0, %v2191
      %v2193 = vpop.f32.mrb[0].mxu0
      %v2194 = vadd.f32 0.0, %v2193
      %v2195 = vpop.f32.mrb[0].mxu0
      %v2196 = vadd.f32 0.0, %v2195
      %v2197 = vpop.f32.mrb[0].mxu0
      %v2198 = vadd.f32 0.0, %v2197
      %2199 = vmatprep.mubr.bf16.mxu0 %v1816
      %2200 = vmatmul.mubr.bf16.gmra.mrb[0].mxu0 %v1815
      %v2201 = vpop.f32.mrb[0].mxu0
      %v2202 = vadd.f32 0.0, %v2201
      %v2203 = vpop.f32.mrb[0].mxu0
      %v2204 = vadd.f32 0.0, %v2203
      %v2205 = vpop.f32.mrb[0].mxu0
      %v2206 = vadd.f32 0.0, %v2205
      %v2207 = vpop.f32.mrb[0].mxu0
      %v2208 = vadd.f32 0.0, %v2207
      %2209 = vmatprep.mubr.bf16.mxu0 %v1818
      %2210 = vmatmul.mubr.bf16.gmra.mrb[0].mxu0 %v1817
      %v2211 = vpop.f32.mrb[0].mxu0
      %v2212 = vadd.f32 0.0, %v2211
      %v2213 = vpop.f32.mrb[0].mxu0
      %v2214 = vadd.f32 0.0, %v2213
      %v2215 = vpop.f32.mrb[0].mxu0
      %v2216 = vadd.f32 0.0, %v2215
      %v2217 = vpop.f32.mrb[0].mxu0
      %v2218 = vadd.f32 0.0, %v2217
      %2219 = vmatprep.mubr.bf16.mxu0 %v1820
      %2220 = vmatmul.mubr.bf16.gmra.mrb[0].mxu0 %v1819
      %v2221 = vpop.f32.mrb[0].mxu0
      %v2222 = vadd.f32 0.0, %v2221
      %v2223 = vpop.f32.mrb[0].mxu0
      %v2224 = vadd.f32 0.0, %v2223
      %v2225 = vpop.f32.mrb[0].mxu0
      %v2226 = vadd.f32 0.0, %v2225
      %v2227 = vpop.f32.mrb[0].mxu0
      %v2228 = vadd.f32 0.0, %v2227
      %2229 = vmatprep.mubr.bf16.mxu0 %v1822
      %2230 = vmatmul.mubr.bf16.gmra.mrb[0].mxu0 %v1821
      %v2231 = vpop.f32.mrb[0].mxu0
      %v2232 = vadd.f32 0.0, %v2231
      %v2233 = vpop.f32.mrb[0].mxu0
      %v2234 = vadd.f32 0.0, %v2233
      %v2235 = vpop.f32.mrb[0].mxu0
      %v2236 = vadd.f32 0.0, %v2235
      %v2237 = vpop.f32.mrb[0].mxu0
      %v2238 = vadd.f32 0.0, %v2237
      %2239 = vmatprep.mubr.bf16.mxu0 %v1824
      %2240 = vmatmul.mubr.bf16.gmra.mrb[0].mxu0 %v1823
      %v2241 = vpop.f32.mrb[0].mxu0
      %v2242 = vadd.f32 0.0, %v2241
      %v2243 = vpop.f32.mrb[0].mxu0
      %v2244 = vadd.f32 0.0, %v2243
      %v2245 = vpop.f32.mrb[0].mxu0
      %v2246 = vadd.f32 0.0, %v2245
      %v2247 = vpop.f32.mrb[0].mxu0
      %v2248 = vadd.f32 0.0, %v2247
      %2249 = vmatprep.mubr.bf16.mxu0 %v1826
      %2250 = vmatmul.mubr.bf16.gmra.mrb[0].mxu0 %v1825
      %v2251 = vpop.f32.mrb[0].mxu0
      %v2252 = vadd.f32 0.0, %v2251
      %v2253 = vpop.f32.mrb[0].mxu0
      %v2254 = vadd.f32 0.0, %v2253
      %v2255 = vpop.f32.mrb[0].mxu0
      %v2256 = vadd.f32 0.0, %v2255
      %v2257 = vpop.f32.mrb[0].mxu0
      %v2258 = vadd.f32 0.0, %v2257
      %2259 = vmatprep.mubr.bf16.mxu0 %v1828
      %2260 = vmatmul.mubr.bf16.gmra.mrb[0].mxu0 %v1827
      %v2261 = vpop.f32.mrb[0].mxu0
      %v2262 = vadd.f32 0.0, %v2261
      %v2263 = vpop.f32.mrb[0].mxu0
      %v2264 = vadd.f32 0.0, %v2263
      %v2265 = vpop.f32.mrb[0].mxu0
      %v2266 = vadd.f32 0.0, %v2265
      %v2267 = vpop.f32.mrb[0].mxu0
      %v2268 = vadd.f32 0.0, %v2267
      %2269 = vmatprep.mubr.bf16.mxu0 %v1830
      %2270 = vmatmul.mubr.bf16.gmra.mrb[0].mxu0 %v1829
      %v2271 = vpop.f32.mrb[0].mxu0
      %v2272 = vadd.f32 0.0, %v2271
      %v2273 = vpop.f32.mrb[0].mxu0
      %v2274 = vadd.f32 0.0, %v2273
      %v2275 = vpop.f32.mrb[0].mxu0
      %v2276 = vadd.f32 0.0, %v2275
      %v2277 = vpop.f32.mrb[0].mxu0
      %v2278 = vadd.f32 0.0, %v2277
      %2279 = vmatprep.mubr.bf16.mxu0 %v1832
      %2280 = vmatmul.mubr.bf16.gmra.mrb[0].mxu0 %v1831
      %v2281 = vpop.f32.mrb[0].mxu0
      %v2282 = vadd.f32 0.0, %v2281
      %v2283 = vpop.f32.mrb[0].mxu0
      %v2284 = vadd.f32 0.0, %v2283
      %v2285 = vpop.f32.mrb[0].mxu0
      %v2286 = vadd.f32 0.0, %v2285
      %v2287 = vpop.f32.mrb[0].mxu0
      %v2288 = vadd.f32 0.0, %v2287
      %2289 = vmatprep.mubr.bf16.mxu0 %v1834
      %2290 = vmatmul.mubr.bf16.gmra.mrb[0].mxu0 %v1833
      %v2291 = vpop.f32.mrb[0].mxu0
      %v2292 = vadd.f32 0.0, %v2291
      %v2293 = vpop.f32.mrb[0].mxu0
      %v2294 = vadd.f32 0.0, %v2293
      %v2295 = vpop.f32.mrb[0].mxu0
      %v2296 = vadd.f32 0.0, %v2295
      %v2297 = vpop.f32.mrb[0].mxu0
      %v2298 = vadd.f32 0.0, %v2297
      %2299 = vmatprep.mubr.bf16.mxu0 %v1836
      %2300 = vmatmul.mubr.bf16.gmra.mrb[0].mxu0 %v1835
      %v2301 = vpop.f32.mrb[0].mxu0
      %v2302 = vadd.f32 0.0, %v2301
      %v2303 = vpop.f32.mrb[0].mxu0
      %v2304 = vadd.f32 0.0, %v2303
      %v2305 = vpop.f32.mrb[0].mxu0
      %v2306 = vadd.f32 0.0, %v2305
      %v2307 = vpop.f32.mrb[0].mxu0
      %v2308 = vadd.f32 0.0, %v2307
      %2309 = vmatprep.mubr.bf16.mxu0 %v1838
      %2310 = vmatmul.mubr.bf16.gmra.mrb[0].mxu0 %v1837
      %v2311 = vpop.f32.mrb[0].mxu0
      %v2312 = vadd.f32 0.0, %v2311
      %v2313 = vpop.f32.mrb[0].mxu0
      %v2314 = vadd.f32 0.0, %v2313
      %v2315 = vpop.f32.mrb[0].mxu0
      %v2316 = vadd.f32 0.0, %v2315
      %v2317 = vpop.f32.mrb[0].mxu0
      %v2318 = vadd.f32 0.0, %v2317
      %2319 = vdwg.mxu0
      %2320 = vmatprep.subr.bf16.mxu0 0
      %2321 = vmatpush1.bf16.msra.mxu0 %v2033
      %2322 = vmatprep.subr.bf16.mxu0 0
      %2323 = vmatpush1.bf16.msra.mxu0 %v2036
      %2324 = vmatprep.subr.bf16.mxu0 0
      %2325 = vmatpush1.bf16.msra.mxu0 %v2039
      %2326 = vmatprep.subr.bf16.mxu0 0
      %2327 = vmatpush1.bf16.msra.mxu0 %v2042
      %2328 = vmatprep.subr.bf16.mxu0 0
      %2329 = vmatpush1.bf16.msra.mxu0 %v2045
      %2330 = vmatprep.subr.bf16.mxu0 0
      %2331 = vmatpush1.bf16.msra.mxu0 %v2048
      %2332 = vmatprep.subr.bf16.mxu0 0
      %2333 = vmatpush1.bf16.msra.mxu0 %v2051
      %2334 = vmatprep.subr.bf16.mxu0 0
      %2335 = vmatpush1.bf16.msra.mxu0 %v2054
      %2336 = vmatprep.subr.bf16.mxu0 0
      %2337 = vmatpush1.bf16.msra.mxu0 %v2057
      %2338 = vmatprep.subr.bf16.mxu0 0
      %2339 = vmatpush1.bf16.msra.mxu0 %v2060
      %2340 = vmatprep.subr.bf16.mxu0 0
      %2341 = vmatpush1.bf16.msra.mxu0 %v2063
      %2342 = vmatprep.subr.bf16.mxu0 0
      %2343 = vmatpush1.bf16.msra.mxu0 %v2066
      %2344 = vmatprep.subr.bf16.mxu0 0
      %2345 = vmatpush1.bf16.msra.mxu0 %v2069
      %2346 = vmatprep.subr.bf16.mxu0 0
      %2347 = vmatpush1.bf16.msra.mxu0 %v2072
      %2348 = vmatprep.subr.bf16.mxu0 0
      %2349 = vmatpush1.bf16.msra.mxu0 %v2075
      %2350 = vmatprep.subr.bf16.mxu0 0
      %2351 = vmatpush1.bf16.msra.mxu0 %v2078
      %2352 = vmatprep.mubr.bf16.mxu0 %v1808
      %2353 = vmatmul.mubr.bf16.gmra.mrb[0].mxu0 %v1807
      %v2354 = vpop.f32.mrb[0].mxu0
      %v2355 = vadd.f32 0.0, %v2354
      %v2356 = vpop.f32.mrb[0].mxu0
      %v2357 = vpop.f32.mrb[0].mxu0
      %v2358 = vadd.f32 0.0, %v2357
      %v2359 = vpop.f32.mrb[0].mxu0
      %2360 = vmatprep.mubr.bf16.mxu0 %v1810
      %2361 = vmatmul.mubr.bf16.gmra.mrb[0].mxu0 %v1809
      %v2362 = vpop.f32.mrb[0].mxu0
      %v2363 = vadd.f32 0.0, %v2362
      %v2364 = vpop.f32.mrb[0].mxu0
      %v2365 = vpop.f32.mrb[0].mxu0
      %v2366 = vadd.f32 0.0, %v2365
      %v2367 = vpop.f32.mrb[0].mxu0
      %2368 = vmatprep.mubr.bf16.mxu0 %v1812
      %2369 = vmatmul.mubr.bf16.gmra.mrb[0].mxu0 %v1811
      %v2370 = vpop.f32.mrb[0].mxu0
      %v2371 = vadd.f32 0.0, %v2370
      %v2372 = vpop.f32.mrb[0].mxu0
      %v2373 = vpop.f32.mrb[0].mxu0
      %v2374 = vadd.f32 0.0, %v2373
      %v2375 = vpop.f32.mrb[0].mxu0
      %2376 = vmatprep.mubr.bf16.mxu0 %v1814
      %2377 = vmatmul.mubr.bf16.gmra.mrb[0].mxu0 %v1813
      %v2378 = vpop.f32.mrb[0].mxu0
      %v2379 = vadd.f32 0.0, %v2378
      %v2380 = vpop.f32.mrb[0].mxu0
      %v2381 = vpop.f32.mrb[0].mxu0
      %v2382 = vadd.f32 0.0, %v2381
      %v2383 = vpop.f32.mrb[0].mxu0
      %2384 = vmatprep.mubr.bf16.mxu0 %v1816
      %2385 = vmatmul.mubr.bf16.gmra.mrb[0].mxu0 %v1815
      %v2386 = vpop.f32.mrb[0].mxu0
      %v2387 = vadd.f32 0.0, %v2386
      %v2388 = vpop.f32.mrb[0].mxu0
      %v2389 = vpop.f32.mrb[0].mxu0
      %v2390 = vadd.f32 0.0, %v2389
      %v2391 = vpop.f32.mrb[0].mxu0
      %2392 = vmatprep.mubr.bf16.mxu0 %v1818
      %2393 = vmatmul.mubr.bf16.gmra.mrb[0].mxu0 %v1817
      %v2394 = vpop.f32.mrb[0].mxu0
      %v2395 = vadd.f32 0.0, %v2394
      %v2396 = vpop.f32.mrb[0].mxu0
      %v2397 = vpop.f32.mrb[0].mxu0
      %v2398 = vadd.f32 0.0, %v2397
      %v2399 = vpop.f32.mrb[0].mxu0
      %2400 = vmatprep.mubr.bf16.mxu0 %v1820
      %2401 = vmatmul.mubr.bf16.gmra.mrb[0].mxu0 %v1819
      %v2402 = vpop.f32.mrb[0].mxu0
      %v2403 = vadd.f32 0.0, %v2402
      %v2404 = vpop.f32.mrb[0].mxu0
      %v2405 = vpop.f32.mrb[0].mxu0
      %v2406 = vadd.f32 0.0, %v2405
      %v2407 = vpop.f32.mrb[0].mxu0
      %2408 = vmatprep.mubr.bf16.mxu0 %v1822
      %2409 = vmatmul.mubr.bf16.gmra.mrb[0].mxu0 %v1821
      %v2410 = vpop.f32.mrb[0].mxu0
      %v2411 = vadd.f32 0.0, %v2410
      %v2412 = vpop.f32.mrb[0].mxu0
      %v2413 = vpop.f32.mrb[0].mxu0
      %v2414 = vadd.f32 0.0, %v2413
      %v2415 = vpop.f32.mrb[0].mxu0
      %2416 = vmatprep.mubr.bf16.mxu0 %v1824
      %2417 = vmatmul.mubr.bf16.gmra.mrb[0].mxu0 %v1823
      %v2418 = vpop.f32.mrb[0].mxu0
      %v2419 = vadd.f32 0.0, %v2418
      %v2420 = vpop.f32.mrb[0].mxu0
      %v2421 = vpop.f32.mrb[0].mxu0
      %v2422 = vadd.f32 0.0, %v2421
      %v2423 = vpop.f32.mrb[0].mxu0
      %2424 = vmatprep.mubr.bf16.mxu0 %v1826
      %2425 = vmatmul.mubr.bf16.gmra.mrb[0].mxu0 %v1825
      %v2426 = vpop.f32.mrb[0].mxu0
      %v2427 = vadd.f32 0.0, %v2426
      %v2428 = vpop.f32.mrb[0].mxu0
      %v2429 = vpop.f32.mrb[0].mxu0
      %v2430 = vadd.f32 0.0, %v2429
      %v2431 = vpop.f32.mrb[0].mxu0
      %2432 = vmatprep.mubr.bf16.mxu0 %v1828
      %2433 = vmatmul.mubr.bf16.gmra.mrb[0].mxu0 %v1827
      %v2434 = vpop.f32.mrb[0].mxu0
      %v2435 = vadd.f32 0.0, %v2434
      %v2436 = vpop.f32.mrb[0].mxu0
      %v2437 = vpop.f32.mrb[0].mxu0
      %v2438 = vadd.f32 0.0, %v2437
      %v2439 = vpop.f32.mrb[0].mxu0
      %2440 = vmatprep.mubr.bf16.mxu0 %v1830
      %2441 = vmatmul.mubr.bf16.gmra.mrb[0].mxu0 %v1829
      %v2442 = vpop.f32.mrb[0].mxu0
      %v2443 = vadd.f32 0.0, %v2442
      %v2444 = vpop.f32.mrb[0].mxu0
      %v2445 = vpop.f32.mrb[0].mxu0
      %v2446 = vadd.f32 0.0, %v2445
      %v2447 = vpop.f32.mrb[0].mxu0
      %2448 = vmatprep.mubr.bf16.mxu0 %v1832
      %2449 = vmatmul.mubr.bf16.gmra.mrb[0].mxu0 %v1831
      %v2450 = vpop.f32.mrb[0].mxu0
      %v2451 = vadd.f32 0.0, %v2450
      %v2452 = vpop.f32.mrb[0].mxu0
      %v2453 = vpop.f32.mrb[0].mxu0
      %v2454 = vadd.f32 0.0, %v2453
      %v2455 = vpop.f32.mrb[0].mxu0
      %2456 = vmatprep.mubr.bf16.mxu0 %v1834
      %2457 = vmatmul.mubr.bf16.gmra.mrb[0].mxu0 %v1833
      %v2458 = vpop.f32.mrb[0].mxu0
      %v2459 = vadd.f32 0.0, %v2458
      %v2460 = vpop.f32.mrb[0].mxu0
      %v2461 = vpop.f32.mrb[0].mxu0
      %v2462 = vadd.f32 0.0, %v2461
      %v2463 = vpop.f32.mrb[0].mxu0
      %2464 = vmatprep.mubr.bf16.mxu0 %v1836
      %2465 = vmatmul.mubr.bf16.gmra.mrb[0].mxu0 %v1835
      %v2466 = vpop.f32.mrb[0].mxu0
      %v2467 = vadd.f32 0.0, %v2466
      %v2468 = vpop.f32.mrb[0].mxu0
      %v2469 = vpop.f32.mrb[0].mxu0
      %v2470 = vadd.f32 0.0, %v2469
      %v2471 = vpop.f32.mrb[0].mxu0
      %2472 = vmatprep.mubr.bf16.mxu0 %v1838
      %2473 = vmatmul.mubr.bf16.gmra.mrb[0].mxu0 %v1837
      %v2474 = vpop.f32.mrb[0].mxu0
      %v2475 = vadd.f32 0.0, %v2474
      %v2476 = vpop.f32.mrb[0].mxu0
      %v2477 = vpop.f32.mrb[0].mxu0
      %v2478 = vadd.f32 0.0, %v2477
      %v2479 = vpop.f32.mrb[0].mxu0
      %2480 = vdwg.mxu0
      %v2481 = vld [vmem:[#allocation2] sm:$0xff]
      %v2482 = vld [vmem:[#allocation2 + $0x8] sm:$0xff]
      %v2483 = vld [vmem:[#allocation2 + $0x10] sm:$0xff]
      %v2484 = vld [vmem:[#allocation2 + $0x18] sm:$0xff]
      %v2485 = vld [vmem:[#allocation2 + $0x20] sm:$0xff]
      %v2486 = vld [vmem:[#allocation2 + $0x28] sm:$0xff]
      %v2487 = vld [vmem:[#allocation2 + $0x30] sm:$0xff]
      %v2488 = vld [vmem:[#allocation2 + $0x38] sm:$0xff]
      %v2489 = vld [vmem:[#allocation2 + $0x40] sm:$0xff]
      %v2490 = vld [vmem:[#allocation2 + $0x48] sm:$0xff]
      %v2491 = vld [vmem:[#allocation2 + $0x50] sm:$0xff]
      %v2492 = vld [vmem:[#allocation2 + $0x58] sm:$0xff]
      %v2493 = vld [vmem:[#allocation2 + $0x60] sm:$0xff]
      %v2494 = vld [vmem:[#allocation2 + $0x68] sm:$0xff]
      %v2495 = vld [vmem:[#allocation2 + $0x70] sm:$0xff]
      %v2496 = vld [vmem:[#allocation2 + $0x78] sm:$0xff]
      %v2497 = vld [vmem:[#allocation2 + $0x80] sm:$0xff]
      %v2498 = vld [vmem:[#allocation2 + $0x88] sm:$0xff]
      %v2499 = vld [vmem:[#allocation2 + $0x90] sm:$0xff]
      %v2500 = vld [vmem:[#allocation2 + $0x98] sm:$0xff]
      %v2501 = vld [vmem:[#allocation2 + $0xa0] sm:$0xff]
      %v2502 = vld [vmem:[#allocation2 + $0xa8] sm:$0xff]
      %v2503 = vld [vmem:[#allocation2 + $0xb0] sm:$0xff]
      %v2504 = vld [vmem:[#allocation2 + $0xb8] sm:$0xff]
      %v2505 = vld [vmem:[#allocation2 + $0xc0] sm:$0xff]
      %v2506 = vld [vmem:[#allocation2 + $0xc8] sm:$0xff]
      %v2507 = vld [vmem:[#allocation2 + $0xd0] sm:$0xff]
      %v2508 = vld [vmem:[#allocation2 + $0xd8] sm:$0xff]
      %v2509 = vld [vmem:[#allocation2 + $0xe0] sm:$0xff]
      %v2510 = vld [vmem:[#allocation2 + $0xe8] sm:$0xff]
      %v2511 = vld [vmem:[#allocation2 + $0xf0] sm:$0xff]
      %v2512 = vld [vmem:[#allocation2 + $0xf8] sm:$0xff]
      %v2513 = vadd.f32 %v2481, %v2162
      %v2514 = vadd.f32 %v2482, %v2166
      %v2515 = vadd.f32 %v2483, %v2172
      %v2516 = vadd.f32 %v2484, %v2176
      %v2517 = vadd.f32 %v2485, %v2182
      %v2518 = vadd.f32 %v2486, %v2186
      %v2519 = vadd.f32 %v2487, %v2192
      %v2520 = vadd.f32 %v2488, %v2196
      %v2521 = vadd.f32 %v2489, %v2202
      %v2522 = vadd.f32 %v2490, %v2206
      %v2523 = vadd.f32 %v2491, %v2212
      %v2524 = vadd.f32 %v2492, %v2216
      %v2525 = vadd.f32 %v2493, %v2222
      %v2526 = vadd.f32 %v2494, %v2226
      %v2527 = vadd.f32 %v2495, %v2232
      %v2528 = vadd.f32 %v2496, %v2236
      %v2529 = vadd.f32 %v2497, %v2242
      %v2530 = vadd.f32 %v2498, %v2246
      %v2531 = vadd.f32 %v2499, %v2252
      %v2532 = vadd.f32 %v2500, %v2256
      %v2533 = vadd.f32 %v2501, %v2262
      %v2534 = vadd.f32 %v2502, %v2266
      %v2535 = vadd.f32 %v2503, %v2272
      %v2536 = vadd.f32 %v2504, %v2276
      %v2537 = vadd.f32 %v2505, %v2282
      %v2538 = vadd.f32 %v2506, %v2286
      %v2539 = vadd.f32 %v2507, %v2292
      %v2540 = vadd.f32 %v2508, %v2296
      %v2541 = vadd.f32 %v2509, %v2302
      %v2542 = vadd.f32 %v2510, %v2306
      %v2543 = vadd.f32 %v2511, %v2312
      %v2544 = vadd.f32 %v2512, %v2316
      %2545 = vst [vmem:[#allocation2] sm:$0xff] %v2513
      %2546 = vst [vmem:[#allocation2 + $0x8] sm:$0xff] %v2514
      %2547 = vst [vmem:[#allocation2 + $0x10] sm:$0xff] %v2515
      %2548 = vst [vmem:[#allocation2 + $0x18] sm:$0xff] %v2516
      %2549 = vst [vmem:[#allocation2 + $0x20] sm:$0xff] %v2517
      %2550 = vst [vmem:[#allocation2 + $0x28] sm:$0xff] %v2518
      %2551 = vst [vmem:[#allocation2 + $0x30] sm:$0xff] %v2519
      %2552 = vst [vmem:[#allocation2 + $0x38] sm:$0xff] %v2520
      %2553 = vst [vmem:[#allocation2 + $0x40] sm:$0xff] %v2521
      %2554 = vst [vmem:[#allocation2 + $0x48] sm:$0xff] %v2522
      %2555 = vst [vmem:[#allocation2 + $0x50] sm:$0xff] %v2523
      %2556 = vst [vmem:[#allocation2 + $0x58] sm:$0xff] %v2524
      %2557 = vst [vmem:[#allocation2 + $0x60] sm:$0xff] %v2525
      %2558 = vst [vmem:[#allocation2 + $0x68] sm:$0xff] %v2526
      %2559 = vst [vmem:[#allocation2 + $0x70] sm:$0xff] %v2527
      %2560 = vst [vmem:[#allocation2 + $0x78] sm:$0xff] %v2528
      %2561 = vst [vmem:[#allocation2 + $0x80] sm:$0xff] %v2529
      %2562 = vst [vmem:[#allocation2 + $0x88] sm:$0xff] %v2530
      %2563 = vst [vmem:[#allocation2 + $0x90] sm:$0xff] %v2531
      %2564 = vst [vmem:[#allocation2 + $0x98] sm:$0xff] %v2532
      %2565 = vst [vmem:[#allocation2 + $0xa0] sm:$0xff] %v2533
      %2566 = vst [vmem:[#allocation2 + $0xa8] sm:$0xff] %v2534
      %2567 = vst [vmem:[#allocation2 + $0xb0] sm:$0xff] %v2535
      %2568 = vst [vmem:[#allocation2 + $0xb8] sm:$0xff] %v2536
      %2569 = vst [vmem:[#allocation2 + $0xc0] sm:$0xff] %v2537
      %2570 = vst [vmem:[#allocation2 + $0xc8] sm:$0xff] %v2538
      %2571 = vst [vmem:[#allocation2 + $0xd0] sm:$0xff] %v2539
      %2572 = vst [vmem:[#allocation2 + $0xd8] sm:$0xff] %v2540
      %2573 = vst [vmem:[#allocation2 + $0xe0] sm:$0xff] %v2541
      %2574 = vst [vmem:[#allocation2 + $0xe8] sm:$0xff] %v2542
      %2575 = vst [vmem:[#allocation2 + $0xf0] sm:$0xff] %v2543
      %2576 = vst [vmem:[#allocation2 + $0xf8] sm:$0xff] %v2544
      %v2577 = vld [vmem:[#allocation2] sm:$0xff]
      %v2578 = vld [vmem:[#allocation2 + $0x8] sm:$0xff]
      %v2579 = vld [vmem:[#allocation2 + $0x10] sm:$0xff]
      %v2580 = vld [vmem:[#allocation2 + $0x18] sm:$0xff]
      %v2581 = vld [vmem:[#allocation2 + $0x20] sm:$0xff]
      %v2582 = vld [vmem:[#allocation2 + $0x28] sm:$0xff]
      %v2583 = vld [vmem:[#allocation2 + $0x30] sm:$0xff]
      %v2584 = vld [vmem:[#allocation2 + $0x38] sm:$0xff]
      %v2585 = vld [vmem:[#allocation2 + $0x40] sm:$0xff]
      %v2586 = vld [vmem:[#allocation2 + $0x48] sm:$0xff]
      %v2587 = vld [vmem:[#allocation2 + $0x50] sm:$0xff]
      %v2588 = vld [vmem:[#allocation2 + $0x58] sm:$0xff]
      %v2589 = vld [vmem:[#allocation2 + $0x60] sm:$0xff]
      %v2590 = vld [vmem:[#allocation2 + $0x68] sm:$0xff]
      %v2591 = vld [vmem:[#allocation2 + $0x70] sm:$0xff]
      %v2592 = vld [vmem:[#allocation2 + $0x78] sm:$0xff]
      %v2593 = vld [vmem:[#allocation2 + $0x80] sm:$0xff]
      %v2594 = vld [vmem:[#allocation2 + $0x88] sm:$0xff]
      %v2595 = vld [vmem:[#allocation2 + $0x90] sm:$0xff]
      %v2596 = vld [vmem:[#allocation2 + $0x98] sm:$0xff]
      %v2597 = vld [vmem:[#allocation2 + $0xa0] sm:$0xff]
      %v2598 = vld [vmem:[#allocation2 + $0xa8] sm:$0xff]
      %v2599 = vld [vmem:[#allocation2 + $0xb0] sm:$0xff]
      %v2600 = vld [vmem:[#allocation2 + $0xb8] sm:$0xff]
      %v2601 = vld [vmem:[#allocation2 + $0xc0] sm:$0xff]
      %v2602 = vld [vmem:[#allocation2 + $0xc8] sm:$0xff]
      %v2603 = vld [vmem:[#allocation2 + $0xd0] sm:$0xff]
      %v2604 = vld [vmem:[#allocation2 + $0xd8] sm:$0xff]
      %v2605 = vld [vmem:[#allocation2 + $0xe0] sm:$0xff]
      %v2606 = vld [vmem:[#allocation2 + $0xe8] sm:$0xff]
      %v2607 = vld [vmem:[#allocation2 + $0xf0] sm:$0xff]
      %v2608 = vld [vmem:[#allocation2 + $0xf8] sm:$0x7f]
      %v2641 = vrot.slane %v2164, 1
      %v2642 = vrot.slane %v2168, 1
      %v2643 = vsel %vm1230, %v2641, %v2642
      %v2644 = vrot.slane %v2174, 1
      %v2645 = vsel %vm1230, %v2642, %v2644
      %v2646 = vrot.slane %v2178, 1
      %v2647 = vsel %vm1230, %v2644, %v2646
      %v2648 = vrot.slane %v2184, 1
      %v2649 = vsel %vm1230, %v2646, %v2648
      %v2650 = vrot.slane %v2188, 1
      %v2651 = vsel %vm1230, %v2648, %v2650
      %v2652 = vrot.slane %v2194, 1
      %v2653 = vsel %vm1230, %v2650, %v2652
      %v2654 = vrot.slane %v2198, 1
      %v2655 = vsel %vm1230, %v2652, %v2654
      %v2656 = vrot.slane %v2204, 1
      %v2657 = vsel %vm1230, %v2654, %v2656
      %v2658 = vrot.slane %v2208, 1
      %v2659 = vsel %vm1230, %v2656, %v2658
      %v2660 = vrot.slane %v2214, 1
      %v2661 = vsel %vm1230, %v2658, %v2660
      %v2662 = vrot.slane %v2218, 1
      %v2663 = vsel %vm1230, %v2660, %v2662
      %v2664 = vrot.slane %v2224, 1
      %v2665 = vsel %vm1230, %v2662, %v2664
      %v2666 = vrot.slane %v2228, 1
      %v2667 = vsel %vm1230, %v2664, %v2666
      %v2668 = vrot.slane %v2234, 1
      %v2669 = vsel %vm1230, %v2666, %v2668
      %v2670 = vrot.slane %v2238, 1
      %v2671 = vsel %vm1230, %v2668, %v2670
      %v2672 = vrot.slane %v2244, 1
      %v2673 = vsel %vm1230, %v2670, %v2672
      %v2674 = vrot.slane %v2248, 1
      %v2675 = vsel %vm1230, %v2672, %v2674
      %v2676 = vrot.slane %v2254, 1
      %v2677 = vsel %vm1230, %v2674, %v2676
      %v2678 = vrot.slane %v2258, 1
      %v2679 = vsel %vm1230, %v2676, %v2678
      %v2680 = vrot.slane %v2264, 1
      %v2681 = vsel %vm1230, %v2678, %v2680
      %v2682 = vrot.slane %v2268, 1
      %v2683 = vsel %vm1230, %v2680, %v2682
      %v2684 = vrot.slane %v2274, 1
      %v2685 = vsel %vm1230, %v2682, %v2684
      %v2686 = vrot.slane %v2278, 1
      %v2687 = vsel %vm1230, %v2684, %v2686
      %v2688 = vrot.slane %v2284, 1
      %v2689 = vsel %vm1230, %v2686, %v2688
      %v2690 = vrot.slane %v2288, 1
      %v2691 = vsel %vm1230, %v2688, %v2690
      %v2692 = vrot.slane %v2294, 1
      %v2693 = vsel %vm1230, %v2690, %v2692
      %v2694 = vrot.slane %v2298, 1
      %v2695 = vsel %vm1230, %v2692, %v2694
      %v2696 = vrot.slane %v2304, 1
      %v2697 = vsel %vm1230, %v2694, %v2696
      %v2698 = vrot.slane %v2308, 1
      %v2699 = vsel %vm1230, %v2696, %v2698
      %v2700 = vrot.slane %v2314, 1
      %v2701 = vsel %vm1230, %v2698, %v2700
      %v2702 = vrot.slane %v2318, 1
      %v2703 = vsel %vm1230, %v2700, %v2702
      %v2736 = vadd.f32 %v2577, %v2643
      %v2737 = vadd.f32 %v2578, %v2645
      %v2738 = vadd.f32 %v2579, %v2647
      %v2739 = vadd.f32 %v2580, %v2649
      %v2740 = vadd.f32 %v2581, %v2651
      %v2741 = vadd.f32 %v2582, %v2653
      %v2742 = vadd.f32 %v2583, %v2655
      %v2743 = vadd.f32 %v2584, %v2657
      %v2744 = vadd.f32 %v2585, %v2659
      %v2745 = vadd.f32 %v2586, %v2661
      %v2746 = vadd.f32 %v2587, %v2663
      %v2747 = vadd.f32 %v2588, %v2665
      %v2748 = vadd.f32 %v2589, %v2667
      %v2749 = vadd.f32 %v2590, %v2669
      %v2750 = vadd.f32 %v2591, %v2671
      %v2751 = vadd.f32 %v2592, %v2673
      %v2752 = vadd.f32 %v2593, %v2675
      %v2753 = vadd.f32 %v2594, %v2677
      %v2754 = vadd.f32 %v2595, %v2679
      %v2755 = vadd.f32 %v2596, %v2681
      %v2756 = vadd.f32 %v2597, %v2683
      %v2757 = vadd.f32 %v2598, %v2685
      %v2758 = vadd.f32 %v2599, %v2687
      %v2759 = vadd.f32 %v2600, %v2689
      %v2760 = vadd.f32 %v2601, %v2691
      %v2761 = vadd.f32 %v2602, %v2693
      %v2762 = vadd.f32 %v2603, %v2695
      %v2763 = vadd.f32 %v2604, %v2697
      %v2764 = vadd.f32 %v2605, %v2699
      %v2765 = vadd.f32 %v2606, %v2701
      %v2766 = vadd.f32 %v2607, %v2703
      %v2767 = vadd.f32 %v2608, %v2702
      %2768 = vst [vmem:[#allocation2] sm:$0xff] %v2736
      %2769 = vst [vmem:[#allocation2 + $0x8] sm:$0xff] %v2737
      %2770 = vst [vmem:[#allocation2 + $0x10] sm:$0xff] %v2738
      %2771 = vst [vmem:[#allocation2 + $0x18] sm:$0xff] %v2739
      %2772 = vst [vmem:[#allocation2 + $0x20] sm:$0xff] %v2740
      %2773 = vst [vmem:[#allocation2 + $0x28] sm:$0xff] %v2741
      %2774 = vst [vmem:[#allocation2 + $0x30] sm:$0xff] %v2742
      %2775 = vst [vmem:[#allocation2 + $0x38] sm:$0xff] %v2743
      %2776 = vst [vmem:[#allocation2 + $0x40] sm:$0xff] %v2744
      %2777 = vst [vmem:[#allocation2 + $0x48] sm:$0xff] %v2745
      %2778 = vst [vmem:[#allocation2 + $0x50] sm:$0xff] %v2746
      %2779 = vst [vmem:[#allocation2 + $0x58] sm:$0xff] %v2747
      %2780 = vst [vmem:[#allocation2 + $0x60] sm:$0xff] %v2748
      %2781 = vst [vmem:[#allocation2 + $0x68] sm:$0xff] %v2749
      %2782 = vst [vmem:[#allocation2 + $0x70] sm:$0xff] %v2750
      %2783 = vst [vmem:[#allocation2 + $0x78] sm:$0xff] %v2751
      %2784 = vst [vmem:[#allocation2 + $0x80] sm:$0xff] %v2752
      %2785 = vst [vmem:[#allocation2 + $0x88] sm:$0xff] %v2753
      %2786 = vst [vmem:[#allocation2 + $0x90] sm:$0xff] %v2754
      %2787 = vst [vmem:[#allocation2 + $0x98] sm:$0xff] %v2755
      %2788 = vst [vmem:[#allocation2 + $0xa0] sm:$0xff] %v2756
      %2789 = vst [vmem:[#allocation2 + $0xa8] sm:$0xff] %v2757
      %2790 = vst [vmem:[#allocation2 + $0xb0] sm:$0xff] %v2758
      %2791 = vst [vmem:[#allocation2 + $0xb8] sm:$0xff] %v2759
      %2792 = vst [vmem:[#allocation2 + $0xc0] sm:$0xff] %v2760
      %2793 = vst [vmem:[#allocation2 + $0xc8] sm:$0xff] %v2761
      %2794 = vst [vmem:[#allocation2 + $0xd0] sm:$0xff] %v2762
      %2795 = vst [vmem:[#allocation2 + $0xd8] sm:$0xff] %v2763
      %2796 = vst [vmem:[#allocation2 + $0xe0] sm:$0xff] %v2764
      %2797 = vst [vmem:[#allocation2 + $0xe8] sm:$0xff] %v2765
      %2798 = vst [vmem:[#allocation2 + $0xf0] sm:$0xff] %v2766
      %2799 = vst [vmem:[#allocation2 + $0xf8] sm:$0x7f] %v2767
      %v2800 = vld [vmem:[#allocation2] sm:$0xff]
      %v2801 = vld [vmem:[#allocation2 + $0x8] sm:$0xff]
      %v2802 = vld [vmem:[#allocation2 + $0x10] sm:$0xff]
      %v2803 = vld [vmem:[#allocation2 + $0x18] sm:$0xff]
      %v2804 = vld [vmem:[#allocation2 + $0x20] sm:$0xff]
      %v2805 = vld [vmem:[#allocation2 + $0x28] sm:$0xff]
      %v2806 = vld [vmem:[#allocation2 + $0x30] sm:$0xff]
      %v2807 = vld [vmem:[#allocation2 + $0x38] sm:$0xff]
      %v2808 = vld [vmem:[#allocation2 + $0x40] sm:$0xff]
      %v2809 = vld [vmem:[#allocation2 + $0x48] sm:$0xff]
      %v2810 = vld [vmem:[#allocation2 + $0x50] sm:$0xff]
      %v2811 = vld [vmem:[#allocation2 + $0x58] sm:$0xff]
      %v2812 = vld [vmem:[#allocation2 + $0x60] sm:$0xff]
      %v2813 = vld [vmem:[#allocation2 + $0x68] sm:$0xff]
      %v2814 = vld [vmem:[#allocation2 + $0x70] sm:$0xff]
      %v2815 = vld [vmem:[#allocation2 + $0x78] sm:$0xff]
      %v2816 = vld [vmem:[#allocation2 + $0x80] sm:$0xff]
      %v2817 = vld [vmem:[#allocation2 + $0x88] sm:$0xff]
      %v2818 = vld [vmem:[#allocation2 + $0x90] sm:$0xff]
      %v2819 = vld [vmem:[#allocation2 + $0x98] sm:$0xff]
      %v2820 = vld [vmem:[#allocation2 + $0xa0] sm:$0xff]
      %v2821 = vld [vmem:[#allocation2 + $0xa8] sm:$0xff]
      %v2822 = vld [vmem:[#allocation2 + $0xb0] sm:$0xff]
      %v2823 = vld [vmem:[#allocation2 + $0xb8] sm:$0xff]
      %v2824 = vld [vmem:[#allocation2 + $0xc0] sm:$0xff]
      %v2825 = vld [vmem:[#allocation2 + $0xc8] sm:$0xff]
      %v2826 = vld [vmem:[#allocation2 + $0xd0] sm:$0xff]
      %v2827 = vld [vmem:[#allocation2 + $0xd8] sm:$0xff]
      %v2828 = vld [vmem:[#allocation2 + $0xe0] sm:$0xff]
      %v2829 = vld [vmem:[#allocation2 + $0xe8] sm:$0xff]
      %v2830 = vld [vmem:[#allocation2 + $0xf0] sm:$0xff]
      %v2831 = vld [vmem:[#allocation2 + $0xf8] sm:$0x3f]
      %v2864 = vrot.slane %v2355, 2
      %v2865 = vrot.slane %v2358, 2
      %v2866 = vsel %vm1454, %v2864, %v2865
      %v2867 = vrot.slane %v2363, 2
      %v2868 = vsel %vm1454, %v2865, %v2867
      %v2869 = vrot.slane %v2366, 2
      %v2870 = vsel %vm1454, %v2867, %v2869
      %v2871 = vrot.slane %v2371, 2
      %v2872 = vsel %vm1454, %v2869, %v2871
      %v2873 = vrot.slane %v2374, 2
      %v2874 = vsel %vm1454, %v2871, %v2873
      %v2875 = vrot.slane %v2379, 2
      %v2876 = vsel %vm1454, %v2873, %v2875
      %v2877 = vrot.slane %v2382, 2
      %v2878 = vsel %vm1454, %v2875, %v2877
      %v2879 = vrot.slane %v2387, 2
      %v2880 = vsel %vm1454, %v2877, %v2879
      %v2881 = vrot.slane %v2390, 2
      %v2882 = vsel %vm1454, %v2879, %v2881
      %v2883 = vrot.slane %v2395, 2
      %v2884 = vsel %vm1454, %v2881, %v2883
      %v2885 = vrot.slane %v2398, 2
      %v2886 = vsel %vm1454, %v2883, %v2885
      %v2887 = vrot.slane %v2403, 2
      %v2888 = vsel %vm1454, %v2885, %v2887
      %v2889 = vrot.slane %v2406, 2
      %v2890 = vsel %vm1454, %v2887, %v2889
      %v2891 = vrot.slane %v2411, 2
      %v2892 = vsel %vm1454, %v2889, %v2891
      %v2893 = vrot.slane %v2414, 2
      %v2894 = vsel %vm1454, %v2891, %v2893
      %v2895 = vrot.slane %v2419, 2
      %v2896 = vsel %vm1454, %v2893, %v2895
      %v2897 = vrot.slane %v2422, 2
      %v2898 = vsel %vm1454, %v2895, %v2897
      %v2899 = vrot.slane %v2427, 2
      %v2900 = vsel %vm1454, %v2897, %v2899
      %v2901 = vrot.slane %v2430, 2
      %v2902 = vsel %vm1454, %v2899, %v2901
      %v2903 = vrot.slane %v2435, 2
      %v2904 = vsel %vm1454, %v2901, %v2903
      %v2905 = vrot.slane %v2438, 2
      %v2906 = vsel %vm1454, %v2903, %v2905
      %v2907 = vrot.slane %v2443, 2
      %v2908 = vsel %vm1454, %v2905, %v2907
      %v2909 = vrot.slane %v2446, 2
      %v2910 = vsel %vm1454, %v2907, %v2909
      %v2911 = vrot.slane %v2451, 2
      %v2912 = vsel %vm1454, %v2909, %v2911
      %v2913 = vrot.slane %v2454, 2
      %v2914 = vsel %vm1454, %v2911, %v2913
      %v2915 = vrot.slane %v2459, 2
      %v2916 = vsel %vm1454, %v2913, %v2915
      %v2917 = vrot.slane %v2462, 2
      %v2918 = vsel %vm1454, %v2915, %v2917
      %v2919 = vrot.slane %v2467, 2
      %v2920 = vsel %vm1454, %v2917, %v2919
      %v2921 = vrot.slane %v2470, 2
      %v2922 = vsel %vm1454, %v2919, %v2921
      %v2923 = vrot.slane %v2475, 2
      %v2924 = vsel %vm1454, %v2921, %v2923
      %v2925 = vrot.slane %v2478, 2
      %v2926 = vsel %vm1454, %v2923, %v2925
      %v2959 = vadd.f32 %v2800, %v2866
      %v2960 = vadd.f32 %v2801, %v2868
      %v2961 = vadd.f32 %v2802, %v2870
      %v2962 = vadd.f32 %v2803, %v2872
      %v2963 = vadd.f32 %v2804, %v2874
      %v2964 = vadd.f32 %v2805, %v2876
      %v2965 = vadd.f32 %v2806, %v2878
      %v2966 = vadd.f32 %v2807, %v2880
      %v2967 = vadd.f32 %v2808, %v2882
      %v2968 = vadd.f32 %v2809, %v2884
      %v2969 = vadd.f32 %v2810, %v2886
      %v2970 = vadd.f32 %v2811, %v2888
      %v2971 = vadd.f32 %v2812, %v2890
      %v2972 = vadd.f32 %v2813, %v2892
      %v2973 = vadd.f32 %v2814, %v2894
      %v2974 = vadd.f32 %v2815, %v2896
      %v2975 = vadd.f32 %v2816, %v2898
      %v2976 = vadd.f32 %v2817, %v2900
      %v2977 = vadd.f32 %v2818, %v2902
      %v2978 = vadd.f32 %v2819, %v2904
      %v2979 = vadd.f32 %v2820, %v2906
      %v2980 = vadd.f32 %v2821, %v2908
      %v2981 = vadd.f32 %v2822, %v2910
      %v2982 = vadd.f32 %v2823, %v2912
      %v2983 = vadd.f32 %v2824, %v2914
      %v2984 = vadd.f32 %v2825, %v2916
      %v2985 = vadd.f32 %v2826, %v2918
      %v2986 = vadd.f32 %v2827, %v2920
      %v2987 = vadd.f32 %v2828, %v2922
      %v2988 = vadd.f32 %v2829, %v2924
      %v2989 = vadd.f32 %v2830, %v2926
      %v2990 = vadd.f32 %v2831, %v2925
      %2991 = vst [vmem:[#allocation2] sm:$0xff] %v2959
      %2992 = vst [vmem:[#allocation2 + $0x8] sm:$0xff] %v2960
      %2993 = vst [vmem:[#allocation2 + $0x10] sm:$0xff] %v2961
      %2994 = vst [vmem:[#allocation2 + $0x18] sm:$0xff] %v2962
      %2995 = vst [vmem:[#allocation2 + $0x20] sm:$0xff] %v2963
      %2996 = vst [vmem:[#allocation2 + $0x28] sm:$0xff] %v2964
      %2997 = vst [vmem:[#allocation2 + $0x30] sm:$0xff] %v2965
      %2998 = vst [vmem:[#allocation2 + $0x38] sm:$0xff] %v2966
      %2999 = vst [vmem:[#allocation2 + $0x40] sm:$0xff] %v2967
      %3000 = vst [vmem:[#allocation2 + $0x48] sm:$0xff] %v2968
      %3001 = vst [vmem:[#allocation2 + $0x50] sm:$0xff] %v2969
      %3002 = vst [vmem:[#allocation2 + $0x58] sm:$0xff] %v2970
      %3003 = vst [vmem:[#allocation2 + $0x60] sm:$0xff] %v2971
      %3004 = vst [vmem:[#allocation2 + $0x68] sm:$0xff] %v2972
      %3005 = vst [vmem:[#allocation2 + $0x70] sm:$0xff] %v2973
      %3006 = vst [vmem:[#allocation2 + $0x78] sm:$0xff] %v2974
      %3007 = vst [vmem:[#allocation2 + $0x80] sm:$0xff] %v2975
      %3008 = vst [vmem:[#allocation2 + $0x88] sm:$0xff] %v2976
      %3009 = vst [vmem:[#allocation2 + $0x90] sm:$0xff] %v2977
      %3010 = vst [vmem:[#allocation2 + $0x98] sm:$0xff] %v2978
      %3011 = vst [vmem:[#allocation2 + $0xa0] sm:$0xff] %v2979
      %3012 = vst [vmem:[#allocation2 + $0xa8] sm:$0xff] %v2980
      %3013 = vst [vmem:[#allocation2 + $0xb0] sm:$0xff] %v2981
      %3014 = vst [vmem:[#allocation2 + $0xb8] sm:$0xff] %v2982
      %3015 = vst [vmem:[#allocation2 + $0xc0] sm:$0xff] %v2983
      %3016 = vst [vmem:[#allocation2 + $0xc8] sm:$0xff] %v2984
      %3017 = vst [vmem:[#allocation2 + $0xd0] sm:$0xff] %v2985
      %3018 = vst [vmem:[#allocation2 + $0xd8] sm:$0xff] %v2986
      %3019 = vst [vmem:[#allocation2 + $0xe0] sm:$0xff] %v2987
      %3020 = vst [vmem:[#allocation2 + $0xe8] sm:$0xff] %v2988
      %3021 = vst [vmem:[#allocation2 + $0xf0] sm:$0xff] %v2989
      %3022 = vst [vmem:[#allocation2 + $0xf8] sm:$0x3f] %v2990
      %v3023 = vld [vmem:[%s165 + $0x40] sm:$0xff]
      %v3024 = vld [vmem:[%s165 + $0x48] sm:$0xff]
      %v3025 = vld [vmem:[%s165 + $0x50] sm:$0xff]
      %v3026 = vld [vmem:[%s165 + $0x58] sm:$0xff]
      %v3027 = vld [vmem:[%s165 + $0x60] sm:$0xff]
      %v3028 = vld [vmem:[%s165 + $0x68] sm:$0xff]
      %v3029 = vld [vmem:[%s165 + $0x70] sm:$0xff]
      %v3030 = vld [vmem:[%s165 + $0x78] sm:$0xff]
      %v3031 = vld [vmem:[%s165 + $0x80] sm:$0xff]
      %v3032 = vld [vmem:[%s165 + $0x88] sm:$0xff]
      %v3033 = vld [vmem:[%s165 + $0x90] sm:$0xff]
      %v3034 = vld [vmem:[%s165 + $0x98] sm:$0xff]
      %v3035 = vld [vmem:[%s165 + $0xa0] sm:$0xff]
      %v3036 = vld [vmem:[%s165 + $0xa8] sm:$0xff]
      %v3037 = vld [vmem:[%s165 + $0xb0] sm:$0xff]
      %v3038 = vld [vmem:[%s165 + $0xb8] sm:$0xff]
      %v3039 = vld [vmem:[%s165 + $0xc0] sm:$0xff]
      %v3040 = vld [vmem:[%s165 + $0xc8] sm:$0xff]
      %v3041 = vld [vmem:[%s165 + $0xd0] sm:$0xff]
      %v3042 = vld [vmem:[%s165 + $0xd8] sm:$0xff]
      %v3043 = vld [vmem:[%s165 + $0xe0] sm:$0xff]
      %v3044 = vld [vmem:[%s165 + $0xe8] sm:$0xff]
      %v3045 = vld [vmem:[%s165 + $0xf0] sm:$0xff]
      %v3046 = vld [vmem:[%s165 + $0xf8] sm:$0xff]
      %v3047 = vld [vmem:[%s165 + $0x100] sm:$0xff]
      %v3048 = vld [vmem:[%s165 + $0x108] sm:$0xff]
      %v3049 = vld [vmem:[%s165 + $0x110] sm:$0xff]
      %v3050 = vld [vmem:[%s165 + $0x118] sm:$0xff]
      %v3051 = vld [vmem:[%s165 + $0x120] sm:$0xff]
      %v3052 = vld [vmem:[%s165 + $0x128] sm:$0xff]
      %v3053 = vld [vmem:[%s165 + $0x130] sm:$0xff]
      %v3054 = vld [vmem:[%s165 + $0x138] sm:$0xff]
      %s3055 = scalar_lea.vmem %s1, 768
      %v3056 = vld [vmem:[%s3055] sm:$0xff]
      %v3057 = vld [vmem:[%s3055 + $0x8] sm:$0xf]
      %v3058 = vld [vmem:[%s3055 + $0xc] sm:$0xff]
      %v3059 = vld [vmem:[%s3055 + $0x14] sm:$0xf]
      %v3060 = vld [vmem:[%s3055 + $0x18] sm:$0xff]
      %v3061 = vld [vmem:[%s3055 + $0x20] sm:$0xf]
      %v3062 = vld [vmem:[%s3055 + $0x24] sm:$0xff]
      %v3063 = vld [vmem:[%s3055 + $0x2c] sm:$0xf]
      %v3064 = vld [vmem:[%s3055 + $0x30] sm:$0xff]
      %v3065 = vld [vmem:[%s3055 + $0x38] sm:$0xf]
      %v3066 = vld [vmem:[%s3055 + $0x3c] sm:$0xff]
      %v3067 = vld [vmem:[%s3055 + $0x44] sm:$0xf]
      %v3068 = vld [vmem:[%s3055 + $0x48] sm:$0xff]
      %v3069 = vld [vmem:[%s3055 + $0x50] sm:$0xf]
      %v3070 = vld [vmem:[%s3055 + $0x54] sm:$0xff]
      %v3071 = vld [vmem:[%s3055 + $0x5c] sm:$0xf]
      %v3072 = vld [vmem:[%s3055 + $0x60] sm:$0xff]
      %v3073 = vld [vmem:[%s3055 + $0x68] sm:$0xf]
      %v3074 = vld [vmem:[%s3055 + $0x6c] sm:$0xff]
      %v3075 = vld [vmem:[%s3055 + $0x74] sm:$0xf]
      %v3076 = vld [vmem:[%s3055 + $0x78] sm:$0xff]
      %v3077 = vld [vmem:[%s3055 + $0x80] sm:$0xf]
      %v3078 = vld [vmem:[%s3055 + $0x84] sm:$0xff]
      %v3079 = vld [vmem:[%s3055 + $0x8c] sm:$0xf]
      %v3080 = vld [vmem:[%s3055 + $0x90] sm:$0xff]
      %v3081 = vld [vmem:[%s3055 + $0x98] sm:$0xf]
      %v3082 = vld [vmem:[%s3055 + $0x9c] sm:$0xff]
      %v3083 = vld [vmem:[%s3055 + $0xa4] sm:$0xf]
      %v3084 = vld [vmem:[%s3055 + $0xa8] sm:$0xff]
      %v3085 = vld [vmem:[%s3055 + $0xb0] sm:$0xf]
      %v3086 = vld [vmem:[%s3055 + $0xb4] sm:$0xff]
      %v3087 = vld [vmem:[%s3055 + $0xbc] sm:$0xf]
      %v3088 = vld [vmem:[%s3055 + $0xc0] sm:$0xff]
      %v3089 = vld [vmem:[%s3055 + $0xc8] sm:$0xf]
      %v3090 = vld [vmem:[%s3055 + $0xcc] sm:$0xff]
      %v3091 = vld [vmem:[%s3055 + $0xd4] sm:$0xf]
      %v3092 = vld [vmem:[%s3055 + $0xd8] sm:$0xff]
      %v3093 = vld [vmem:[%s3055 + $0xe0] sm:$0xf]
      %v3094 = vld [vmem:[%s3055 + $0xe4] sm:$0xff]
      %v3095 = vld [vmem:[%s3055 + $0xec] sm:$0xf]
      %v3096 = vld [vmem:[%s3055 + $0xf0] sm:$0xff]
      %v3097 = vld [vmem:[%s3055 + $0xf8] sm:$0xf]
      %v3098 = vld [vmem:[%s3055 + $0xfc] sm:$0xff]
      %v3099 = vld [vmem:[%s3055 + $0x104] sm:$0xf]
      %v3100 = vld [vmem:[%s3055 + $0x108] sm:$0xff]
      %v3101 = vld [vmem:[%s3055 + $0x110] sm:$0xf]
      %v3102 = vld [vmem:[%s3055 + $0x114] sm:$0xff]
      %v3103 = vld [vmem:[%s3055 + $0x11c] sm:$0xf]
      %v3104 = vld [vmem:[%s3055 + $0x120] sm:$0xff]
      %v3105 = vld [vmem:[%s3055 + $0x128] sm:$0xf]
      %v3106 = vld [vmem:[%s3055 + $0x12c] sm:$0xff]
      %v3107 = vld [vmem:[%s3055 + $0x134] sm:$0xf]
      %v3108 = vld [vmem:[%s3055 + $0x138] sm:$0xff]
      %v3109 = vld [vmem:[%s3055 + $0x140] sm:$0xf]
      %v3110 = vld [vmem:[%s3055 + $0x144] sm:$0xff]
      %v3111 = vld [vmem:[%s3055 + $0x14c] sm:$0xf]
      %v3112 = vld [vmem:[%s3055 + $0x150] sm:$0xff]
      %v3113 = vld [vmem:[%s3055 + $0x158] sm:$0xf]
      %v3114 = vld [vmem:[%s3055 + $0x15c] sm:$0xff]
      %v3115 = vld [vmem:[%s3055 + $0x164] sm:$0xf]
      %v3116 = vld [vmem:[%s3055 + $0x168] sm:$0xff]
      %v3117 = vld [vmem:[%s3055 + $0x170] sm:$0xf]
      %v3118 = vld [vmem:[%s3055 + $0x174] sm:$0xff]
      %v3119 = vld [vmem:[%s3055 + $0x17c] sm:$0xf]
      %v3152 = vunpack.c.l.b16 %v3023
      %v3153 = vunpack.c.h.b16 %v3023
      %v3154 = vunpack.c.l.b16 %v3024
      %v3155 = vunpack.c.h.b16 %v3024
      %v3156 = vunpack.c.l.b16 %v3025
      %v3157 = vunpack.c.h.b16 %v3025
      %v3158 = vunpack.c.l.b16 %v3026
      %v3159 = vunpack.c.h.b16 %v3026
      %v3160 = vunpack.c.l.b16 %v3027
      %v3161 = vunpack.c.h.b16 %v3027
      %v3162 = vunpack.c.l.b16 %v3028
      %v3163 = vunpack.c.h.b16 %v3028
      %v3164 = vunpack.c.l.b16 %v3029
      %v3165 = vunpack.c.h.b16 %v3029
      %v3166 = vunpack.c.l.b16 %v3030
      %v3167 = vunpack.c.h.b16 %v3030
      %v3168 = vunpack.c.l.b16 %v3031
      %v3169 = vunpack.c.h.b16 %v3031
      %v3170 = vunpack.c.l.b16 %v3032
      %v3171 = vunpack.c.h.b16 %v3032
      %v3172 = vunpack.c.l.b16 %v3033
      %v3173 = vunpack.c.h.b16 %v3033
      %v3174 = vunpack.c.l.b16 %v3034
      %v3175 = vunpack.c.h.b16 %v3034
      %v3176 = vunpack.c.l.b16 %v3035
      %v3177 = vunpack.c.h.b16 %v3035
      %v3178 = vunpack.c.l.b16 %v3036
      %v3179 = vunpack.c.h.b16 %v3036
      %v3180 = vunpack.c.l.b16 %v3037
      %v3181 = vunpack.c.h.b16 %v3037
      %v3182 = vunpack.c.l.b16 %v3038
      %v3183 = vunpack.c.h.b16 %v3038
      %v3184 = vunpack.c.l.b16 %v3039
      %v3185 = vunpack.c.h.b16 %v3039
      %v3186 = vunpack.c.l.b16 %v3040
      %v3187 = vunpack.c.h.b16 %v3040
      %v3188 = vunpack.c.l.b16 %v3041
      %v3189 = vunpack.c.h.b16 %v3041
      %v3190 = vunpack.c.l.b16 %v3042
      %v3191 = vunpack.c.h.b16 %v3042
      %v3192 = vunpack.c.l.b16 %v3043
      %v3193 = vunpack.c.h.b16 %v3043
      %v3194 = vunpack.c.l.b16 %v3044
      %v3195 = vunpack.c.h.b16 %v3044
      %v3196 = vunpack.c.l.b16 %v3045
      %v3197 = vunpack.c.h.b16 %v3045
      %v3198 = vunpack.c.l.b16 %v3046
      %v3199 = vunpack.c.h.b16 %v3046
      %v3200 = vunpack.c.l.b16 %v3047
      %v3201 = vunpack.c.h.b16 %v3047
      %v3202 = vunpack.c.l.b16 %v3048
      %v3203 = vunpack.c.h.b16 %v3048
      %v3204 = vunpack.c.l.b16 %v3049
      %v3205 = vunpack.c.h.b16 %v3049
      %v3206 = vunpack.c.l.b16 %v3050
      %v3207 = vunpack.c.h.b16 %v3050
      %v3208 = vunpack.c.l.b16 %v3051
      %v3209 = vunpack.c.h.b16 %v3051
      %v3210 = vunpack.c.l.b16 %v3052
      %v3211 = vunpack.c.h.b16 %v3052
      %v3212 = vunpack.c.l.b16 %v3053
      %v3213 = vunpack.c.h.b16 %v3053
      %v3214 = vunpack.c.l.b16 %v3054
      %v3215 = vunpack.c.h.b16 %v3054
      %v3216 = vpack.c.b16 %v3154, %v3152
      %v3217 = vpack.c.b16 %v3155, %v3153
      %v3218 = vpack.c.b16 %v3158, %v3156
      %v3219 = vpack.c.b16 %v3159, %v3157
      %v3220 = vpack.c.b16 %v3162, %v3160
      %v3221 = vpack.c.b16 %v3163, %v3161
      %v3222 = vpack.c.b16 %v3166, %v3164
      %v3223 = vpack.c.b16 %v3167, %v3165
      %v3224 = vpack.c.b16 %v3170, %v3168
      %v3225 = vpack.c.b16 %v3171, %v3169
      %v3226 = vpack.c.b16 %v3174, %v3172
      %v3227 = vpack.c.b16 %v3175, %v3173
      %v3228 = vpack.c.b16 %v3178, %v3176
      %v3229 = vpack.c.b16 %v3179, %v3177
      %v3230 = vpack.c.b16 %v3182, %v3180
      %v3231 = vpack.c.b16 %v3183, %v3181
      %v3232 = vpack.c.b16 %v3186, %v3184
      %v3233 = vpack.c.b16 %v3187, %v3185
      %v3234 = vpack.c.b16 %v3190, %v3188
      %v3235 = vpack.c.b16 %v3191, %v3189
      %v3236 = vpack.c.b16 %v3194, %v3192
      %v3237 = vpack.c.b16 %v3195, %v3193
      %v3238 = vpack.c.b16 %v3198, %v3196
      %v3239 = vpack.c.b16 %v3199, %v3197
      %v3240 = vpack.c.b16 %v3202, %v3200
      %v3241 = vpack.c.b16 %v3203, %v3201
      %v3242 = vpack.c.b16 %v3206, %v3204
      %v3243 = vpack.c.b16 %v3207, %v3205
      %v3244 = vpack.c.b16 %v3210, %v3208
      %v3245 = vpack.c.b16 %v3211, %v3209
      %v3246 = vpack.c.b16 %v3214, %v3212
      %v3247 = vpack.c.b16 %v3215, %v3213
      %v3344 = vunpack.c.l.b16 %v3056
      %v3345 = vunpack.c.h.b16 %v3056
      %v3346 = vunpack.c.l.b16 %v3057
      %v3347 = vunpack.c.l.b16 %v3058
      %v3348 = vunpack.c.h.b16 %v3058
      %v3349 = vunpack.c.l.b16 %v3059
      %v3350 = vunpack.c.l.b16 %v3060
      %v3351 = vunpack.c.h.b16 %v3060
      %v3352 = vunpack.c.l.b16 %v3061
      %v3353 = vunpack.c.l.b16 %v3062
      %v3354 = vunpack.c.h.b16 %v3062
      %v3355 = vunpack.c.l.b16 %v3063
      %v3356 = vunpack.c.l.b16 %v3064
      %v3357 = vunpack.c.h.b16 %v3064
      %v3358 = vunpack.c.l.b16 %v3065
      %v3359 = vunpack.c.l.b16 %v3066
      %v3360 = vunpack.c.h.b16 %v3066
      %v3361 = vunpack.c.l.b16 %v3067
      %v3362 = vunpack.c.l.b16 %v3068
      %v3363 = vunpack.c.h.b16 %v3068
      %v3364 = vunpack.c.l.b16 %v3069
      %v3365 = vunpack.c.l.b16 %v3070
      %v3366 = vunpack.c.h.b16 %v3070
      %v3367 = vunpack.c.l.b16 %v3071
      %v3368 = vunpack.c.l.b16 %v3072
      %v3369 = vunpack.c.h.b16 %v3072
      %v3370 = vunpack.c.l.b16 %v3073
      %v3371 = vunpack.c.l.b16 %v3074
      %v3372 = vunpack.c.h.b16 %v3074
      %v3373 = vunpack.c.l.b16 %v3075
      %v3374 = vunpack.c.l.b16 %v3076
      %v3375 = vunpack.c.h.b16 %v3076
      %v3376 = vunpack.c.l.b16 %v3077
      %v3377 = vunpack.c.l.b16 %v3078
      %v3378 = vunpack.c.h.b16 %v3078
      %v3379 = vunpack.c.l.b16 %v3079
      %v3380 = vunpack.c.l.b16 %v3080
      %v3381 = vunpack.c.h.b16 %v3080
      %v3382 = vunpack.c.l.b16 %v3081
      %v3383 = vunpack.c.l.b16 %v3082
      %v3384 = vunpack.c.h.b16 %v3082
      %v3385 = vunpack.c.l.b16 %v3083
      %v3386 = vunpack.c.l.b16 %v3084
      %v3387 = vunpack.c.h.b16 %v3084
      %v3388 = vunpack.c.l.b16 %v3085
      %v3389 = vunpack.c.l.b16 %v3086
      %v3390 = vunpack.c.h.b16 %v3086
      %v3391 = vunpack.c.l.b16 %v3087
      %v3392 = vunpack.c.l.b16 %v3088
      %v3393 = vunpack.c.h.b16 %v3088
      %v3394 = vunpack.c.l.b16 %v3089
      %v3395 = vunpack.c.l.b16 %v3090
      %v3396 = vunpack.c.h.b16 %v3090
      %v3397 = vunpack.c.l.b16 %v3091
      %v3398 = vunpack.c.l.b16 %v3092
      %v3399 = vunpack.c.h.b16 %v3092
      %v3400 = vunpack.c.l.b16 %v3093
      %v3401 = vunpack.c.l.b16 %v3094
      %v3402 = vunpack.c.h.b16 %v3094
      %v3403 = vunpack.c.l.b16 %v3095
      %v3404 = vunpack.c.l.b16 %v3096
      %v3405 = vunpack.c.h.b16 %v3096
      %v3406 = vunpack.c.l.b16 %v3097
      %v3407 = vunpack.c.l.b16 %v3098
      %v3408 = vunpack.c.h.b16 %v3098
      %v3409 = vunpack.c.l.b16 %v3099
      %v3410 = vunpack.c.l.b16 %v3100
      %v3411 = vunpack.c.h.b16 %v3100
      %v3412 = vunpack.c.l.b16 %v3101
      %v3413 = vunpack.c.l.b16 %v3102
      %v3414 = vunpack.c.h.b16 %v3102
      %v3415 = vunpack.c.l.b16 %v3103
      %v3416 = vunpack.c.l.b16 %v3104
      %v3417 = vunpack.c.h.b16 %v3104
      %v3418 = vunpack.c.l.b16 %v3105
      %v3419 = vunpack.c.l.b16 %v3106
      %v3420 = vunpack.c.h.b16 %v3106
      %v3421 = vunpack.c.l.b16 %v3107
      %v3422 = vunpack.c.l.b16 %v3108
      %v3423 = vunpack.c.h.b16 %v3108
      %v3424 = vunpack.c.l.b16 %v3109
      %v3425 = vunpack.c.l.b16 %v3110
      %v3426 = vunpack.c.h.b16 %v3110
      %v3427 = vunpack.c.l.b16 %v3111
      %v3428 = vunpack.c.l.b16 %v3112
      %v3429 = vunpack.c.h.b16 %v3112
      %v3430 = vunpack.c.l.b16 %v3113
      %v3431 = vunpack.c.l.b16 %v3114
      %v3432 = vunpack.c.h.b16 %v3114
      %v3433 = vunpack.c.l.b16 %v3115
      %v3434 = vunpack.c.l.b16 %v3116
      %v3435 = vunpack.c.h.b16 %v3116
      %v3436 = vunpack.c.l.b16 %v3117
      %v3437 = vunpack.c.l.b16 %v3118
      %v3438 = vunpack.c.h.b16 %v3118
      %v3439 = vunpack.c.l.b16 %v3119
      %v3440 = vpack.c.b16 %v3347, %v3344
      %v3441 = vpack.c.b16 %v3348, %v3345
      %v3442 = vpack.c.b16 %v3349, %v3346
      %v3443 = vpack.c.b16 %v3353, %v3350
      %v3444 = vpack.c.b16 %v3354, %v3351
      %v3445 = vpack.c.b16 %v3355, %v3352
      %v3446 = vpack.c.b16 %v3359, %v3356
      %v3447 = vpack.c.b16 %v3360, %v3357
      %v3448 = vpack.c.b16 %v3361, %v3358
      %v3449 = vpack.c.b16 %v3365, %v3362
      %v3450 = vpack.c.b16 %v3366, %v3363
      %v3451 = vpack.c.b16 %v3367, %v3364
      %v3452 = vpack.c.b16 %v3371, %v3368
      %v3453 = vpack.c.b16 %v3372, %v3369
      %v3454 = vpack.c.b16 %v3373, %v3370
      %v3455 = vpack.c.b16 %v3377, %v3374
      %v3456 = vpack.c.b16 %v3378, %v3375
      %v3457 = vpack.c.b16 %v3379, %v3376
      %v3458 = vpack.c.b16 %v3383, %v3380
      %v3459 = vpack.c.b16 %v3384, %v3381
      %v3460 = vpack.c.b16 %v3385, %v3382
      %v3461 = vpack.c.b16 %v3389, %v3386
      %v3462 = vpack.c.b16 %v3390, %v3387
      %v3463 = vpack.c.b16 %v3391, %v3388
      %v3464 = vpack.c.b16 %v3395, %v3392
      %v3465 = vpack.c.b16 %v3396, %v3393
      %v3466 = vpack.c.b16 %v3397, %v3394
      %v3467 = vpack.c.b16 %v3401, %v3398
      %v3468 = vpack.c.b16 %v3402, %v3399
      %v3469 = vpack.c.b16 %v3403, %v3400
      %v3470 = vpack.c.b16 %v3407, %v3404
      %v3471 = vpack.c.b16 %v3408, %v3405
      %v3472 = vpack.c.b16 %v3409, %v3406
      %v3473 = vpack.c.b16 %v3413, %v3410
      %v3474 = vpack.c.b16 %v3414, %v3411
      %v3475 = vpack.c.b16 %v3415, %v3412
      %v3476 = vpack.c.b16 %v3419, %v3416
      %v3477 = vpack.c.b16 %v3420, %v3417
      %v3478 = vpack.c.b16 %v3421, %v3418
      %v3479 = vpack.c.b16 %v3425, %v3422
      %v3480 = vpack.c.b16 %v3426, %v3423
      %v3481 = vpack.c.b16 %v3427, %v3424
      %v3482 = vpack.c.b16 %v3431, %v3428
      %v3483 = vpack.c.b16 %v3432, %v3429
      %v3484 = vpack.c.b16 %v3433, %v3430
      %v3485 = vpack.c.b16 %v3437, %v3434
      %v3486 = vpack.c.b16 %v3438, %v3435
      %v3487 = vpack.c.b16 %v3439, %v3436
      %3536 = vmatprep.subr.bf16.mxu0 %v3441
      %3537 = vmatpush1.bf16.msra.mxu0 %v3440
      %3538 = vmatprep.subr.bf16.mxu0 %v3444
      %3539 = vmatpush1.bf16.msra.mxu0 %v3443
      %3540 = vmatprep.subr.bf16.mxu0 %v3447
      %3541 = vmatpush1.bf16.msra.mxu0 %v3446
      %3542 = vmatprep.subr.bf16.mxu0 %v3450
      %3543 = vmatpush1.bf16.msra.mxu0 %v3449
      %3544 = vmatprep.subr.bf16.mxu0 %v3453
      %3545 = vmatpush1.bf16.msra.mxu0 %v3452
      %3546 = vmatprep.subr.bf16.mxu0 %v3456
      %3547 = vmatpush1.bf16.msra.mxu0 %v3455
      %3548 = vmatprep.subr.bf16.mxu0 %v3459
      %3549 = vmatpush1.bf16.msra.mxu0 %v3458
      %3550 = vmatprep.subr.bf16.mxu0 %v3462
      %3551 = vmatpush1.bf16.msra.mxu0 %v3461
      %3552 = vmatprep.subr.bf16.mxu0 %v3465
      %3553 = vmatpush1.bf16.msra.mxu0 %v3464
      %3554 = vmatprep.subr.bf16.mxu0 %v3468
      %3555 = vmatpush1.bf16.msra.mxu0 %v3467
      %3556 = vmatprep.subr.bf16.mxu0 %v3471
      %3557 = vmatpush1.bf16.msra.mxu0 %v3470
      %3558 = vmatprep.subr.bf16.mxu0 %v3474
      %3559 = vmatpush1.bf16.msra.mxu0 %v3473
      %3560 = vmatprep.subr.bf16.mxu0 %v3477
      %3561 = vmatpush1.bf16.msra.mxu0 %v3476
      %3562 = vmatprep.subr.bf16.mxu0 %v3480
      %3563 = vmatpush1.bf16.msra.mxu0 %v3479
      %3564 = vmatprep.subr.bf16.mxu0 %v3483
      %3565 = vmatpush1.bf16.msra.mxu0 %v3482
      %3566 = vmatprep.subr.bf16.mxu0 %v3486
      %3567 = vmatpush1.bf16.msra.mxu0 %v3485
      %3568 = vmatprep.mubr.bf16.mxu0 %v3217
      %3569 = vmatmul.mubr.bf16.gmra.mrb[0].mxu0 %v3216
      %v3570 = vpop.f32.mrb[0].mxu0
      %v3571 = vadd.f32 0.0, %v3570
      %v3572 = vpop.f32.mrb[0].mxu0
      %v3573 = vadd.f32 0.0, %v3572
      %v3574 = vpop.f32.mrb[0].mxu0
      %v3575 = vadd.f32 0.0, %v3574
      %v3576 = vpop.f32.mrb[0].mxu0
      %v3577 = vadd.f32 0.0, %v3576
      %3578 = vmatprep.mubr.bf16.mxu0 %v3219
      %3579 = vmatmul.mubr.bf16.gmra.mrb[0].mxu0 %v3218
      %v3580 = vpop.f32.mrb[0].mxu0
      %v3581 = vadd.f32 0.0, %v3580
      %v3582 = vpop.f32.mrb[0].mxu0
      %v3583 = vadd.f32 0.0, %v3582
      %v3584 = vpop.f32.mrb[0].mxu0
      %v3585 = vadd.f32 0.0, %v3584
      %v3586 = vpop.f32.mrb[0].mxu0
      %v3587 = vadd.f32 0.0, %v3586
      %3588 = vmatprep.mubr.bf16.mxu0 %v3221
      %3589 = vmatmul.mubr.bf16.gmra.mrb[0].mxu0 %v3220
      %v3590 = vpop.f32.mrb[0].mxu0
      %v3591 = vadd.f32 0.0, %v3590
      %v3592 = vpop.f32.mrb[0].mxu0
      %v3593 = vadd.f32 0.0, %v3592
      %v3594 = vpop.f32.mrb[0].mxu0
      %v3595 = vadd.f32 0.0, %v3594
      %v3596 = vpop.f32.mrb[0].mxu0
      %v3597 = vadd.f32 0.0, %v3596
      %3598 = vmatprep.mubr.bf16.mxu0 %v3223
      %3599 = vmatmul.mubr.bf16.gmra.mrb[0].mxu0 %v3222
      %v3600 = vpop.f32.mrb[0].mxu0
      %v3601 = vadd.f32 0.0, %v3600
      %v3602 = vpop.f32.mrb[0].mxu0
      %v3603 = vadd.f32 0.0, %v3602
      %v3604 = vpop.f32.mrb[0].mxu0
      %v3605 = vadd.f32 0.0, %v3604
      %v3606 = vpop.f32.mrb[0].mxu0
      %v3607 = vadd.f32 0.0, %v3606
      %3608 = vmatprep.mubr.bf16.mxu0 %v3225
      %3609 = vmatmul.mubr.bf16.gmra.mrb[0].mxu0 %v3224
      %v3610 = vpop.f32.mrb[0].mxu0
      %v3611 = vadd.f32 0.0, %v3610
      %v3612 = vpop.f32.mrb[0].mxu0
      %v3613 = vadd.f32 0.0, %v3612
      %v3614 = vpop.f32.mrb[0].mxu0
      %v3615 = vadd.f32 0.0, %v3614
      %v3616 = vpop.f32.mrb[0].mxu0
      %v3617 = vadd.f32 0.0, %v3616
      %3618 = vmatprep.mubr.bf16.mxu0 %v3227
      %3619 = vmatmul.mubr.bf16.gmra.mrb[0].mxu0 %v3226
      %v3620 = vpop.f32.mrb[0].mxu0
      %v3621 = vadd.f32 0.0, %v3620
      %v3622 = vpop.f32.mrb[0].mxu0
      %v3623 = vadd.f32 0.0, %v3622
      %v3624 = vpop.f32.mrb[0].mxu0
      %v3625 = vadd.f32 0.0, %v3624
      %v3626 = vpop.f32.mrb[0].mxu0
      %v3627 = vadd.f32 0.0, %v3626
      %3628 = vmatprep.mubr.bf16.mxu0 %v3229
      %3629 = vmatmul.mubr.bf16.gmra.mrb[0].mxu0 %v3228
      %v3630 = vpop.f32.mrb[0].mxu0
      %v3631 = vadd.f32 0.0, %v3630
      %v3632 = vpop.f32.mrb[0].mxu0
      %v3633 = vadd.f32 0.0, %v3632
      %v3634 = vpop.f32.mrb[0].mxu0
      %v3635 = vadd.f32 0.0, %v3634
      %v3636 = vpop.f32.mrb[0].mxu0
      %v3637 = vadd.f32 0.0, %v3636
      %3638 = vmatprep.mubr.bf16.mxu0 %v3231
      %3639 = vmatmul.mubr.bf16.gmra.mrb[0].mxu0 %v3230
      %v3640 = vpop.f32.mrb[0].mxu0
      %v3641 = vadd.f32 0.0, %v3640
      %v3642 = vpop.f32.mrb[0].mxu0
      %v3643 = vadd.f32 0.0, %v3642
      %v3644 = vpop.f32.mrb[0].mxu0
      %v3645 = vadd.f32 0.0, %v3644
      %v3646 = vpop.f32.mrb[0].mxu0
      %v3647 = vadd.f32 0.0, %v3646
      %3648 = vmatprep.mubr.bf16.mxu0 %v3233
      %3649 = vmatmul.mubr.bf16.gmra.mrb[0].mxu0 %v3232
      %v3650 = vpop.f32.mrb[0].mxu0
      %v3651 = vadd.f32 0.0, %v3650
      %v3652 = vpop.f32.mrb[0].mxu0
      %v3653 = vadd.f32 0.0, %v3652
      %v3654 = vpop.f32.mrb[0].mxu0
      %v3655 = vadd.f32 0.0, %v3654
      %v3656 = vpop.f32.mrb[0].mxu0
      %v3657 = vadd.f32 0.0, %v3656
      %3658 = vmatprep.mubr.bf16.mxu0 %v3235
      %3659 = vmatmul.mubr.bf16.gmra.mrb[0].mxu0 %v3234
      %v3660 = vpop.f32.mrb[0].mxu0
      %v3661 = vadd.f32 0.0, %v3660
      %v3662 = vpop.f32.mrb[0].mxu0
      %v3663 = vadd.f32 0.0, %v3662
      %v3664 = vpop.f32.mrb[0].mxu0
      %v3665 = vadd.f32 0.0, %v3664
      %v3666 = vpop.f32.mrb[0].mxu0
      %v3667 = vadd.f32 0.0, %v3666
      %3668 = vmatprep.mubr.bf16.mxu0 %v3237
      %3669 = vmatmul.mubr.bf16.gmra.mrb[0].mxu0 %v3236
      %v3670 = vpop.f32.mrb[0].mxu0
      %v3671 = vadd.f32 0.0, %v3670
      %v3672 = vpop.f32.mrb[0].mxu0
      %v3673 = vadd.f32 0.0, %v3672
      %v3674 = vpop.f32.mrb[0].mxu0
      %v3675 = vadd.f32 0.0, %v3674
      %v3676 = vpop.f32.mrb[0].mxu0
      %v3677 = vadd.f32 0.0, %v3676
      %3678 = vmatprep.mubr.bf16.mxu0 %v3239
      %3679 = vmatmul.mubr.bf16.gmra.mrb[0].mxu0 %v3238
      %v3680 = vpop.f32.mrb[0].mxu0
      %v3681 = vadd.f32 0.0, %v3680
      %v3682 = vpop.f32.mrb[0].mxu0
      %v3683 = vadd.f32 0.0, %v3682
      %v3684 = vpop.f32.mrb[0].mxu0
      %v3685 = vadd.f32 0.0, %v3684
      %v3686 = vpop.f32.mrb[0].mxu0
      %v3687 = vadd.f32 0.0, %v3686
      %3688 = vmatprep.mubr.bf16.mxu0 %v3241
      %3689 = vmatmul.mubr.bf16.gmra.mrb[0].mxu0 %v3240
      %v3690 = vpop.f32.mrb[0].mxu0
      %v3691 = vadd.f32 0.0, %v3690
      %v3692 = vpop.f32.mrb[0].mxu0
      %v3693 = vadd.f32 0.0, %v3692
      %v3694 = vpop.f32.mrb[0].mxu0
      %v3695 = vadd.f32 0.0, %v3694
      %v3696 = vpop.f32.mrb[0].mxu0
      %v3697 = vadd.f32 0.0, %v3696
      %3698 = vmatprep.mubr.bf16.mxu0 %v3243
      %3699 = vmatmul.mubr.bf16.gmra.mrb[0].mxu0 %v3242
      %v3700 = vpop.f32.mrb[0].mxu0
      %v3701 = vadd.f32 0.0, %v3700
      %v3702 = vpop.f32.mrb[0].mxu0
      %v3703 = vadd.f32 0.0, %v3702
      %v3704 = vpop.f32.mrb[0].mxu0
      %v3705 = vadd.f32 0.0, %v3704
      %v3706 = vpop.f32.mrb[0].mxu0
      %v3707 = vadd.f32 0.0, %v3706
      %3708 = vmatprep.mubr.bf16.mxu0 %v3245
      %3709 = vmatmul.mubr.bf16.gmra.mrb[0].mxu0 %v3244
      %v3710 = vpop.f32.mrb[0].mxu0
      %v3711 = vadd.f32 0.0, %v3710
      %v3712 = vpop.f32.mrb[0].mxu0
      %v3713 = vadd.f32 0.0, %v3712
      %v3714 = vpop.f32.mrb[0].mxu0
      %v3715 = vadd.f32 0.0, %v3714
      %v3716 = vpop.f32.mrb[0].mxu0
      %v3717 = vadd.f32 0.0, %v3716
      %3718 = vmatprep.mubr.bf16.mxu0 %v3247
      %3719 = vmatmul.mubr.bf16.gmra.mrb[0].mxu0 %v3246
      %v3720 = vpop.f32.mrb[0].mxu0
      %v3721 = vadd.f32 0.0, %v3720
      %v3722 = vpop.f32.mrb[0].mxu0
      %v3723 = vadd.f32 0.0, %v3722
      %v3724 = vpop.f32.mrb[0].mxu0
      %v3725 = vadd.f32 0.0, %v3724
      %v3726 = vpop.f32.mrb[0].mxu0
      %v3727 = vadd.f32 0.0, %v3726
      %3728 = vdwg.mxu0
      %3729 = vmatprep.subr.bf16.mxu0 0
      %3730 = vmatpush1.bf16.msra.mxu0 %v3442
      %3731 = vmatprep.subr.bf16.mxu0 0
      %3732 = vmatpush1.bf16.msra.mxu0 %v3445
      %3733 = vmatprep.subr.bf16.mxu0 0
      %3734 = vmatpush1.bf16.msra.mxu0 %v3448
      %3735 = vmatprep.subr.bf16.mxu0 0
      %3736 = vmatpush1.bf16.msra.mxu0 %v3451
      %3737 = vmatprep.subr.bf16.mxu0 0
      %3738 = vmatpush1.bf16.msra.mxu0 %v3454
      %3739 = vmatprep.subr.bf16.mxu0 0
      %3740 = vmatpush1.bf16.msra.mxu0 %v3457
      %3741 = vmatprep.subr.bf16.mxu0 0
      %3742 = vmatpush1.bf16.msra.mxu0 %v3460
      %3743 = vmatprep.subr.bf16.mxu0 0
      %3744 = vmatpush1.bf16.msra.mxu0 %v3463
      %3745 = vmatprep.subr.bf16.mxu0 0
      %3746 = vmatpush1.bf16.msra.mxu0 %v3466
      %3747 = vmatprep.subr.bf16.mxu0 0
      %3748 = vmatpush1.bf16.msra.mxu0 %v3469
      %3749 = vmatprep.subr.bf16.mxu0 0
      %3750 = vmatpush1.bf16.msra.mxu0 %v3472
      %3751 = vmatprep.subr.bf16.mxu0 0
      %3752 = vmatpush1.bf16.msra.mxu0 %v3475
      %3753 = vmatprep.subr.bf16.mxu0 0
      %3754 = vmatpush1.bf16.msra.mxu0 %v3478
      %3755 = vmatprep.subr.bf16.mxu0 0
      %3756 = vmatpush1.bf16.msra.mxu0 %v3481
      %3757 = vmatprep.subr.bf16.mxu0 0
      %3758 = vmatpush1.bf16.msra.mxu0 %v3484
      %3759 = vmatprep.subr.bf16.mxu0 0
      %3760 = vmatpush1.bf16.msra.mxu0 %v3487
      %3761 = vmatprep.mubr.bf16.mxu0 %v3217
      %3762 = vmatmul.mubr.bf16.gmra.mrb[0].mxu0 %v3216
      %v3763 = vpop.f32.mrb[0].mxu0
      %v3764 = vadd.f32 0.0, %v3763
      %v3765 = vpop.f32.mrb[0].mxu0
      %v3766 = vpop.f32.mrb[0].mxu0
      %v3767 = vadd.f32 0.0, %v3766
      %v3768 = vpop.f32.mrb[0].mxu0
      %3769 = vmatprep.mubr.bf16.mxu0 %v3219
      %3770 = vmatmul.mubr.bf16.gmra.mrb[0].mxu0 %v3218
      %v3771 = vpop.f32.mrb[0].mxu0
      %v3772 = vadd.f32 0.0, %v3771
      %v3773 = vpop.f32.mrb[0].mxu0
      %v3774 = vpop.f32.mrb[0].mxu0
      %v3775 = vadd.f32 0.0, %v3774
      %v3776 = vpop.f32.mrb[0].mxu0
      %3777 = vmatprep.mubr.bf16.mxu0 %v3221
      %3778 = vmatmul.mubr.bf16.gmra.mrb[0].mxu0 %v3220
      %v3779 = vpop.f32.mrb[0].mxu0
      %v3780 = vadd.f32 0.0, %v3779
      %v3781 = vpop.f32.mrb[0].mxu0
      %v3782 = vpop.f32.mrb[0].mxu0
      %v3783 = vadd.f32 0.0, %v3782
      %v3784 = vpop.f32.mrb[0].mxu0
      %3785 = vmatprep.mubr.bf16.mxu0 %v3223
      %3786 = vmatmul.mubr.bf16.gmra.mrb[0].mxu0 %v3222
      %v3787 = vpop.f32.mrb[0].mxu0
      %v3788 = vadd.f32 0.0, %v3787
      %v3789 = vpop.f32.mrb[0].mxu0
      %v3790 = vpop.f32.mrb[0].mxu0
      %v3791 = vadd.f32 0.0, %v3790
      %v3792 = vpop.f32.mrb[0].mxu0
      %3793 = vmatprep.mubr.bf16.mxu0 %v3225
      %3794 = vmatmul.mubr.bf16.gmra.mrb[0].mxu0 %v3224
      %v3795 = vpop.f32.mrb[0].mxu0
      %v3796 = vadd.f32 0.0, %v3795
      %v3797 = vpop.f32.mrb[0].mxu0
      %v3798 = vpop.f32.mrb[0].mxu0
      %v3799 = vadd.f32 0.0, %v3798
      %v3800 = vpop.f32.mrb[0].mxu0
      %3801 = vmatprep.mubr.bf16.mxu0 %v3227
      %3802 = vmatmul.mubr.bf16.gmra.mrb[0].mxu0 %v3226
      %v3803 = vpop.f32.mrb[0].mxu0
      %v3804 = vadd.f32 0.0, %v3803
      %v3805 = vpop.f32.mrb[0].mxu0
      %v3806 = vpop.f32.mrb[0].mxu0
      %v3807 = vadd.f32 0.0, %v3806
      %v3808 = vpop.f32.mrb[0].mxu0
      %3809 = vmatprep.mubr.bf16.mxu0 %v3229
      %3810 = vmatmul.mubr.bf16.gmra.mrb[0].mxu0 %v3228
      %v3811 = vpop.f32.mrb[0].mxu0
      %v3812 = vadd.f32 0.0, %v3811
      %v3813 = vpop.f32.mrb[0].mxu0
      %v3814 = vpop.f32.mrb[0].mxu0
      %v3815 = vadd.f32 0.0, %v3814
      %v3816 = vpop.f32.mrb[0].mxu0
      %3817 = vmatprep.mubr.bf16.mxu0 %v3231
      %3818 = vmatmul.mubr.bf16.gmra.mrb[0].mxu0 %v3230
      %v3819 = vpop.f32.mrb[0].mxu0
      %v3820 = vadd.f32 0.0, %v3819
      %v3821 = vpop.f32.mrb[0].mxu0
      %v3822 = vpop.f32.mrb[0].mxu0
      %v3823 = vadd.f32 0.0, %v3822
      %v3824 = vpop.f32.mrb[0].mxu0
      %3825 = vmatprep.mubr.bf16.mxu0 %v3233
      %3826 = vmatmul.mubr.bf16.gmra.mrb[0].mxu0 %v3232
      %v3827 = vpop.f32.mrb[0].mxu0
      %v3828 = vadd.f32 0.0, %v3827
      %v3829 = vpop.f32.mrb[0].mxu0
      %v3830 = vpop.f32.mrb[0].mxu0
      %v3831 = vadd.f32 0.0, %v3830
      %v3832 = vpop.f32.mrb[0].mxu0
      %3833 = vmatprep.mubr.bf16.mxu0 %v3235
      %3834 = vmatmul.mubr.bf16.gmra.mrb[0].mxu0 %v3234
      %v3835 = vpop.f32.mrb[0].mxu0
      %v3836 = vadd.f32 0.0, %v3835
      %v3837 = vpop.f32.mrb[0].mxu0
      %v3838 = vpop.f32.mrb[0].mxu0
      %v3839 = vadd.f32 0.0, %v3838
      %v3840 = vpop.f32.mrb[0].mxu0
      %3841 = vmatprep.mubr.bf16.mxu0 %v3237
      %3842 = vmatmul.mubr.bf16.gmra.mrb[0].mxu0 %v3236
      %v3843 = vpop.f32.mrb[0].mxu0
      %v3844 = vadd.f32 0.0, %v3843
      %v3845 = vpop.f32.mrb[0].mxu0
      %v3846 = vpop.f32.mrb[0].mxu0
      %v3847 = vadd.f32 0.0, %v3846
      %v3848 = vpop.f32.mrb[0].mxu0
      %3849 = vmatprep.mubr.bf16.mxu0 %v3239
      %3850 = vmatmul.mubr.bf16.gmra.mrb[0].mxu0 %v3238
      %v3851 = vpop.f32.mrb[0].mxu0
      %v3852 = vadd.f32 0.0, %v3851
      %v3853 = vpop.f32.mrb[0].mxu0
      %v3854 = vpop.f32.mrb[0].mxu0
      %v3855 = vadd.f32 0.0, %v3854
      %v3856 = vpop.f32.mrb[0].mxu0
      %3857 = vmatprep.mubr.bf16.mxu0 %v3241
      %3858 = vmatmul.mubr.bf16.gmra.mrb[0].mxu0 %v3240
      %v3859 = vpop.f32.mrb[0].mxu0
      %v3860 = vadd.f32 0.0, %v3859
      %v3861 = vpop.f32.mrb[0].mxu0
      %v3862 = vpop.f32.mrb[0].mxu0
      %v3863 = vadd.f32 0.0, %v3862
      %v3864 = vpop.f32.mrb[0].mxu0
      %3865 = vmatprep.mubr.bf16.mxu0 %v3243
      %3866 = vmatmul.mubr.bf16.gmra.mrb[0].mxu0 %v3242
      %v3867 = vpop.f32.mrb[0].mxu0
      %v3868 = vadd.f32 0.0, %v3867
      %v3869 = vpop.f32.mrb[0].mxu0
      %v3870 = vpop.f32.mrb[0].mxu0
      %v3871 = vadd.f32 0.0, %v3870
      %v3872 = vpop.f32.mrb[0].mxu0
      %3873 = vmatprep.mubr.bf16.mxu0 %v3245
      %3874 = vmatmul.mubr.bf16.gmra.mrb[0].mxu0 %v3244
      %v3875 = vpop.f32.mrb[0].mxu0
      %v3876 = vadd.f32 0.0, %v3875
      %v3877 = vpop.f32.mrb[0].mxu0
      %v3878 = vpop.f32.mrb[0].mxu0
      %v3879 = vadd.f32 0.0, %v3878
      %v3880 = vpop.f32.mrb[0].mxu0
      %3881 = vmatprep.mubr.bf16.mxu0 %v3247
      %3882 = vmatmul.mubr.bf16.gmra.mrb[0].mxu0 %v3246
      %v3883 = vpop.f32.mrb[0].mxu0
      %v3884 = vadd.f32 0.0, %v3883
      %v3885 = vpop.f32.mrb[0].mxu0
      %v3886 = vpop.f32.mrb[0].mxu0
      %v3887 = vadd.f32 0.0, %v3886
      %v3888 = vpop.f32.mrb[0].mxu0
      %3889 = vdwg.mxu0
      %v3890 = vld [vmem:[#allocation2] sm:$0xff]
      %v3891 = vld [vmem:[#allocation2 + $0x8] sm:$0xff]
      %v3892 = vld [vmem:[#allocation2 + $0x10] sm:$0xff]
      %v3893 = vld [vmem:[#allocation2 + $0x18] sm:$0xff]
      %v3894 = vld [vmem:[#allocation2 + $0x20] sm:$0xff]
      %v3895 = vld [vmem:[#allocation2 + $0x28] sm:$0xff]
      %v3896 = vld [vmem:[#allocation2 + $0x30] sm:$0xff]
      %v3897 = vld [vmem:[#allocation2 + $0x38] sm:$0xff]
      %v3898 = vld [vmem:[#allocation2 + $0x40] sm:$0xff]
      %v3899 = vld [vmem:[#allocation2 + $0x48] sm:$0xff]
      %v3900 = vld [vmem:[#allocation2 + $0x50] sm:$0xff]
      %v3901 = vld [vmem:[#allocation2 + $0x58] sm:$0xff]
      %v3902 = vld [vmem:[#allocation2 + $0x60] sm:$0xff]
      %v3903 = vld [vmem:[#allocation2 + $0x68] sm:$0xff]
      %v3904 = vld [vmem:[#allocation2 + $0x70] sm:$0xff]
      %v3905 = vld [vmem:[#allocation2 + $0x78] sm:$0xff]
      %v3906 = vld [vmem:[#allocation2 + $0x80] sm:$0xff]
      %v3907 = vld [vmem:[#allocation2 + $0x88] sm:$0xff]
      %v3908 = vld [vmem:[#allocation2 + $0x90] sm:$0xff]
      %v3909 = vld [vmem:[#allocation2 + $0x98] sm:$0xff]
      %v3910 = vld [vmem:[#allocation2 + $0xa0] sm:$0xff]
      %v3911 = vld [vmem:[#allocation2 + $0xa8] sm:$0xff]
      %v3912 = vld [vmem:[#allocation2 + $0xb0] sm:$0xff]
      %v3913 = vld [vmem:[#allocation2 + $0xb8] sm:$0xff]
      %v3914 = vld [vmem:[#allocation2 + $0xc0] sm:$0xff]
      %v3915 = vld [vmem:[#allocation2 + $0xc8] sm:$0xff]
      %v3916 = vld [vmem:[#allocation2 + $0xd0] sm:$0xff]
      %v3917 = vld [vmem:[#allocation2 + $0xd8] sm:$0xff]
      %v3918 = vld [vmem:[#allocation2 + $0xe0] sm:$0xff]
      %v3919 = vld [vmem:[#allocation2 + $0xe8] sm:$0xff]
      %v3920 = vld [vmem:[#allocation2 + $0xf0] sm:$0xff]
      %v3921 = vld [vmem:[#allocation2 + $0xf8] sm:$0xff]
      %v3922 = vadd.f32 %v3890, %v3571
      %v3923 = vadd.f32 %v3891, %v3575
      %v3924 = vadd.f32 %v3892, %v3581
      %v3925 = vadd.f32 %v3893, %v3585
      %v3926 = vadd.f32 %v3894, %v3591
      %v3927 = vadd.f32 %v3895, %v3595
      %v3928 = vadd.f32 %v3896, %v3601
      %v3929 = vadd.f32 %v3897, %v3605
      %v3930 = vadd.f32 %v3898, %v3611
      %v3931 = vadd.f32 %v3899, %v3615
      %v3932 = vadd.f32 %v3900, %v3621
      %v3933 = vadd.f32 %v3901, %v3625
      %v3934 = vadd.f32 %v3902, %v3631
      %v3935 = vadd.f32 %v3903, %v3635
      %v3936 = vadd.f32 %v3904, %v3641
      %v3937 = vadd.f32 %v3905, %v3645
      %v3938 = vadd.f32 %v3906, %v3651
      %v3939 = vadd.f32 %v3907, %v3655
      %v3940 = vadd.f32 %v3908, %v3661
      %v3941 = vadd.f32 %v3909, %v3665
      %v3942 = vadd.f32 %v3910, %v3671
      %v3943 = vadd.f32 %v3911, %v3675
      %v3944 = vadd.f32 %v3912, %v3681
      %v3945 = vadd.f32 %v3913, %v3685
      %v3946 = vadd.f32 %v3914, %v3691
      %v3947 = vadd.f32 %v3915, %v3695
      %v3948 = vadd.f32 %v3916, %v3701
      %v3949 = vadd.f32 %v3917, %v3705
      %v3950 = vadd.f32 %v3918, %v3711
      %v3951 = vadd.f32 %v3919, %v3715
      %v3952 = vadd.f32 %v3920, %v3721
      %v3953 = vadd.f32 %v3921, %v3725
      %3954 = vst [vmem:[#allocation2] sm:$0xff] %v3922
      %3955 = vst [vmem:[#allocation2 + $0x8] sm:$0xff] %v3923
      %3956 = vst [vmem:[#allocation2 + $0x10] sm:$0xff] %v3924
      %3957 = vst [vmem:[#allocation2 + $0x18] sm:$0xff] %v3925
      %3958 = vst [vmem:[#allocation2 + $0x20] sm:$0xff] %v3926
      %3959 = vst [vmem:[#allocation2 + $0x28] sm:$0xff] %v3927
      %3960 = vst [vmem:[#allocation2 + $0x30] sm:$0xff] %v3928
      %3961 = vst [vmem:[#allocation2 + $0x38] sm:$0xff] %v3929
      %3962 = vst [vmem:[#allocation2 + $0x40] sm:$0xff] %v3930
      %3963 = vst [vmem:[#allocation2 + $0x48] sm:$0xff] %v3931
      %3964 = vst [vmem:[#allocation2 + $0x50] sm:$0xff] %v3932
      %3965 = vst [vmem:[#allocation2 + $0x58] sm:$0xff] %v3933
      %3966 = vst [vmem:[#allocation2 + $0x60] sm:$0xff] %v3934
      %3967 = vst [vmem:[#allocation2 + $0x68] sm:$0xff] %v3935
      %3968 = vst [vmem:[#allocation2 + $0x70] sm:$0xff] %v3936
      %3969 = vst [vmem:[#allocation2 + $0x78] sm:$0xff] %v3937
      %3970 = vst [vmem:[#allocation2 + $0x80] sm:$0xff] %v3938
      %3971 = vst [vmem:[#allocation2 + $0x88] sm:$0xff] %v3939
      %3972 = vst [vmem:[#allocation2 + $0x90] sm:$0xff] %v3940
      %3973 = vst [vmem:[#allocation2 + $0x98] sm:$0xff] %v3941
      %3974 = vst [vmem:[#allocation2 + $0xa0] sm:$0xff] %v3942
      %3975 = vst [vmem:[#allocation2 + $0xa8] sm:$0xff] %v3943
      %3976 = vst [vmem:[#allocation2 + $0xb0] sm:$0xff] %v3944
      %3977 = vst [vmem:[#allocation2 + $0xb8] sm:$0xff] %v3945
      %3978 = vst [vmem:[#allocation2 + $0xc0] sm:$0xff] %v3946
      %3979 = vst [vmem:[#allocation2 + $0xc8] sm:$0xff] %v3947
      %3980 = vst [vmem:[#allocation2 + $0xd0] sm:$0xff] %v3948
      %3981 = vst [vmem:[#allocation2 + $0xd8] sm:$0xff] %v3949
      %3982 = vst [vmem:[#allocation2 + $0xe0] sm:$0xff] %v3950
      %3983 = vst [vmem:[#allocation2 + $0xe8] sm:$0xff] %v3951
      %3984 = vst [vmem:[#allocation2 + $0xf0] sm:$0xff] %v3952
      %3985 = vst [vmem:[#allocation2 + $0xf8] sm:$0xff] %v3953
      %v3986 = vld [vmem:[#allocation2] sm:$0xff]
      %v3987 = vld [vmem:[#allocation2 + $0x8] sm:$0xff]
      %v3988 = vld [vmem:[#allocation2 + $0x10] sm:$0xff]
      %v3989 = vld [vmem:[#allocation2 + $0x18] sm:$0xff]
      %v3990 = vld [vmem:[#allocation2 + $0x20] sm:$0xff]
      %v3991 = vld [vmem:[#allocation2 + $0x28] sm:$0xff]
      %v3992 = vld [vmem:[#allocation2 + $0x30] sm:$0xff]
      %v3993 = vld [vmem:[#allocation2 + $0x38] sm:$0xff]
      %v3994 = vld [vmem:[#allocation2 + $0x40] sm:$0xff]
      %v3995 = vld [vmem:[#allocation2 + $0x48] sm:$0xff]
      %v3996 = vld [vmem:[#allocation2 + $0x50] sm:$0xff]
      %v3997 = vld [vmem:[#allocation2 + $0x58] sm:$0xff]
      %v3998 = vld [vmem:[#allocation2 + $0x60] sm:$0xff]
      %v3999 = vld [vmem:[#allocation2 + $0x68] sm:$0xff]
      %v4000 = vld [vmem:[#allocation2 + $0x70] sm:$0xff]
      %v4001 = vld [vmem:[#allocation2 + $0x78] sm:$0xff]
      %v4002 = vld [vmem:[#allocation2 + $0x80] sm:$0xff]
      %v4003 = vld [vmem:[#allocation2 + $0x88] sm:$0xff]
      %v4004 = vld [vmem:[#allocation2 + $0x90] sm:$0xff]
      %v4005 = vld [vmem:[#allocation2 + $0x98] sm:$0xff]
      %v4006 = vld [vmem:[#allocation2 + $0xa0] sm:$0xff]
      %v4007 = vld [vmem:[#allocation2 + $0xa8] sm:$0xff]
      %v4008 = vld [vmem:[#allocation2 + $0xb0] sm:$0xff]
      %v4009 = vld [vmem:[#allocation2 + $0xb8] sm:$0xff]
      %v4010 = vld [vmem:[#allocation2 + $0xc0] sm:$0xff]
      %v4011 = vld [vmem:[#allocation2 + $0xc8] sm:$0xff]
      %v4012 = vld [vmem:[#allocation2 + $0xd0] sm:$0xff]
      %v4013 = vld [vmem:[#allocation2 + $0xd8] sm:$0xff]
      %v4014 = vld [vmem:[#allocation2 + $0xe0] sm:$0xff]
      %v4015 = vld [vmem:[#allocation2 + $0xe8] sm:$0xff]
      %v4016 = vld [vmem:[#allocation2 + $0xf0] sm:$0xff]
      %v4017 = vld [vmem:[#allocation2 + $0xf8] sm:$0x7f]
      %v4050 = vrot.slane %v3573, 1
      %v4051 = vrot.slane %v3577, 1
      %v4052 = vsel %vm1230, %v4050, %v4051
      %v4053 = vrot.slane %v3583, 1
      %v4054 = vsel %vm1230, %v4051, %v4053
      %v4055 = vrot.slane %v3587, 1
      %v4056 = vsel %vm1230, %v4053, %v4055
      %v4057 = vrot.slane %v3593, 1
      %v4058 = vsel %vm1230, %v4055, %v4057
      %v4059 = vrot.slane %v3597, 1
      %v4060 = vsel %vm1230, %v4057, %v4059
      %v4061 = vrot.slane %v3603, 1
      %v4062 = vsel %vm1230, %v4059, %v4061
      %v4063 = vrot.slane %v3607, 1
      %v4064 = vsel %vm1230, %v4061, %v4063
      %v4065 = vrot.slane %v3613, 1
      %v4066 = vsel %vm1230, %v4063, %v4065
      %v4067 = vrot.slane %v3617, 1
      %v4068 = vsel %vm1230, %v4065, %v4067
      %v4069 = vrot.slane %v3623, 1
      %v4070 = vsel %vm1230, %v4067, %v4069
      %v4071 = vrot.slane %v3627, 1
      %v4072 = vsel %vm1230, %v4069, %v4071
      %v4073 = vrot.slane %v3633, 1
      %v4074 = vsel %vm1230, %v4071, %v4073
      %v4075 = vrot.slane %v3637, 1
      %v4076 = vsel %vm1230, %v4073, %v4075
      %v4077 = vrot.slane %v3643, 1
      %v4078 = vsel %vm1230, %v4075, %v4077
      %v4079 = vrot.slane %v3647, 1
      %v4080 = vsel %vm1230, %v4077, %v4079
      %v4081 = vrot.slane %v3653, 1
      %v4082 = vsel %vm1230, %v4079, %v4081
      %v4083 = vrot.slane %v3657, 1
      %v4084 = vsel %vm1230, %v4081, %v4083
      %v4085 = vrot.slane %v3663, 1
      %v4086 = vsel %vm1230, %v4083, %v4085
      %v4087 = vrot.slane %v3667, 1
      %v4088 = vsel %vm1230, %v4085, %v4087
      %v4089 = vrot.slane %v3673, 1
      %v4090 = vsel %vm1230, %v4087, %v4089
      %v4091 = vrot.slane %v3677, 1
      %v4092 = vsel %vm1230, %v4089, %v4091
      %v4093 = vrot.slane %v3683, 1
      %v4094 = vsel %vm1230, %v4091, %v4093
      %v4095 = vrot.slane %v3687, 1
      %v4096 = vsel %vm1230, %v4093, %v4095
      %v4097 = vrot.slane %v3693, 1
      %v4098 = vsel %vm1230, %v4095, %v4097
      %v4099 = vrot.slane %v3697, 1
      %v4100 = vsel %vm1230, %v4097, %v4099
      %v4101 = vrot.slane %v3703, 1
      %v4102 = vsel %vm1230, %v4099, %v4101
      %v4103 = vrot.slane %v3707, 1
      %v4104 = vsel %vm1230, %v4101, %v4103
      %v4105 = vrot.slane %v3713, 1
      %v4106 = vsel %vm1230, %v4103, %v4105
      %v4107 = vrot.slane %v3717, 1
      %v4108 = vsel %vm1230, %v4105, %v4107
      %v4109 = vrot.slane %v3723, 1
      %v4110 = vsel %vm1230, %v4107, %v4109
      %v4111 = vrot.slane %v3727, 1
      %v4112 = vsel %vm1230, %v4109, %v4111
      %v4145 = vadd.f32 %v3986, %v4052
      %v4146 = vadd.f32 %v3987, %v4054
      %v4147 = vadd.f32 %v3988, %v4056
      %v4148 = vadd.f32 %v3989, %v4058
      %v4149 = vadd.f32 %v3990, %v4060
      %v4150 = vadd.f32 %v3991, %v4062
      %v4151 = vadd.f32 %v3992, %v4064
      %v4152 = vadd.f32 %v3993, %v4066
      %v4153 = vadd.f32 %v3994, %v4068
      %v4154 = vadd.f32 %v3995, %v4070
      %v4155 = vadd.f32 %v3996, %v4072
      %v4156 = vadd.f32 %v3997, %v4074
      %v4157 = vadd.f32 %v3998, %v4076
      %v4158 = vadd.f32 %v3999, %v4078
      %v4159 = vadd.f32 %v4000, %v4080
      %v4160 = vadd.f32 %v4001, %v4082
      %v4161 = vadd.f32 %v4002, %v4084
      %v4162 = vadd.f32 %v4003, %v4086
      %v4163 = vadd.f32 %v4004, %v4088
      %v4164 = vadd.f32 %v4005, %v4090
      %v4165 = vadd.f32 %v4006, %v4092
      %v4166 = vadd.f32 %v4007, %v4094
      %v4167 = vadd.f32 %v4008, %v4096
      %v4168 = vadd.f32 %v4009, %v4098
      %v4169 = vadd.f32 %v4010, %v4100
      %v4170 = vadd.f32 %v4011, %v4102
      %v4171 = vadd.f32 %v4012, %v4104
      %v4172 = vadd.f32 %v4013, %v4106
      %v4173 = vadd.f32 %v4014, %v4108
      %v4174 = vadd.f32 %v4015, %v4110
      %v4175 = vadd.f32 %v4016, %v4112
      %v4176 = vadd.f32 %v4017, %v4111
      %4177 = vst [vmem:[#allocation2] sm:$0xff] %v4145
      %4178 = vst [vmem:[#allocation2 + $0x8] sm:$0xff] %v4146
      %4179 = vst [vmem:[#allocation2 + $0x10] sm:$0xff] %v4147
      %4180 = vst [vmem:[#allocation2 + $0x18] sm:$0xff] %v4148
      %4181 = vst [vmem:[#allocation2 + $0x20] sm:$0xff] %v4149
      %4182 = vst [vmem:[#allocation2 + $0x28] sm:$0xff] %v4150
      %4183 = vst [vmem:[#allocation2 + $0x30] sm:$0xff] %v4151
      %4184 = vst [vmem:[#allocation2 + $0x38] sm:$0xff] %v4152
      %4185 = vst [vmem:[#allocation2 + $0x40] sm:$0xff] %v4153
      %4186 = vst [vmem:[#allocation2 + $0x48] sm:$0xff] %v4154
      %4187 = vst [vmem:[#allocation2 + $0x50] sm:$0xff] %v4155
      %4188 = vst [vmem:[#allocation2 + $0x58] sm:$0xff] %v4156
      %4189 = vst [vmem:[#allocation2 + $0x60] sm:$0xff] %v4157
      %4190 = vst [vmem:[#allocation2 + $0x68] sm:$0xff] %v4158
      %4191 = vst [vmem:[#allocation2 + $0x70] sm:$0xff] %v4159
      %4192 = vst [vmem:[#allocation2 + $0x78] sm:$0xff] %v4160
      %4193 = vst [vmem:[#allocation2 + $0x80] sm:$0xff] %v4161
      %4194 = vst [vmem:[#allocation2 + $0x88] sm:$0xff] %v4162
      %4195 = vst [vmem:[#allocation2 + $0x90] sm:$0xff] %v4163
      %4196 = vst [vmem:[#allocation2 + $0x98] sm:$0xff] %v4164
      %4197 = vst [vmem:[#allocation2 + $0xa0] sm:$0xff] %v4165
      %4198 = vst [vmem:[#allocation2 + $0xa8] sm:$0xff] %v4166
      %4199 = vst [vmem:[#allocation2 + $0xb0] sm:$0xff] %v4167
      %4200 = vst [vmem:[#allocation2 + $0xb8] sm:$0xff] %v4168
      %4201 = vst [vmem:[#allocation2 + $0xc0] sm:$0xff] %v4169
      %4202 = vst [vmem:[#allocation2 + $0xc8] sm:$0xff] %v4170
      %4203 = vst [vmem:[#allocation2 + $0xd0] sm:$0xff] %v4171
      %4204 = vst [vmem:[#allocation2 + $0xd8] sm:$0xff] %v4172
      %4205 = vst [vmem:[#allocation2 + $0xe0] sm:$0xff] %v4173
      %4206 = vst [vmem:[#allocation2 + $0xe8] sm:$0xff] %v4174
      %4207 = vst [vmem:[#allocation2 + $0xf0] sm:$0xff] %v4175
      %4208 = vst [vmem:[#allocation2 + $0xf8] sm:$0x7f] %v4176
      %v4209 = vld [vmem:[#allocation2] sm:$0xff]
      %v4210 = vld [vmem:[#allocation2 + $0x8] sm:$0xff]
      %v4211 = vld [vmem:[#allocation2 + $0x10] sm:$0xff]
      %v4212 = vld [vmem:[#allocation2 + $0x18] sm:$0xff]
      %v4213 = vld [vmem:[#allocation2 + $0x20] sm:$0xff]
      %v4214 = vld [vmem:[#allocation2 + $0x28] sm:$0xff]
      %v4215 = vld [vmem:[#allocation2 + $0x30] sm:$0xff]
      %v4216 = vld [vmem:[#allocation2 + $0x38] sm:$0xff]
      %v4217 = vld [vmem:[#allocation2 + $0x40] sm:$0xff]
      %v4218 = vld [vmem:[#allocation2 + $0x48] sm:$0xff]
      %v4219 = vld [vmem:[#allocation2 + $0x50] sm:$0xff]
      %v4220 = vld [vmem:[#allocation2 + $0x58] sm:$0xff]
      %v4221 = vld [vmem:[#allocation2 + $0x60] sm:$0xff]
      %v4222 = vld [vmem:[#allocation2 + $0x68] sm:$0xff]
      %v4223 = vld [vmem:[#allocation2 + $0x70] sm:$0xff]
      %v4224 = vld [vmem:[#allocation2 + $0x78] sm:$0xff]
      %v4225 = vld [vmem:[#allocation2 + $0x80] sm:$0xff]
      %v4226 = vld [vmem:[#allocation2 + $0x88] sm:$0xff]
      %v4227 = vld [vmem:[#allocation2 + $0x90] sm:$0xff]
      %v4228 = vld [vmem:[#allocation2 + $0x98] sm:$0xff]
      %v4229 = vld [vmem:[#allocation2 + $0xa0] sm:$0xff]
      %v4230 = vld [vmem:[#allocation2 + $0xa8] sm:$0xff]
      %v4231 = vld [vmem:[#allocation2 + $0xb0] sm:$0xff]
      %v4232 = vld [vmem:[#allocation2 + $0xb8] sm:$0xff]
      %v4233 = vld [vmem:[#allocation2 + $0xc0] sm:$0xff]
      %v4234 = vld [vmem:[#allocation2 + $0xc8] sm:$0xff]
      %v4235 = vld [vmem:[#allocation2 + $0xd0] sm:$0xff]
      %v4236 = vld [vmem:[#allocation2 + $0xd8] sm:$0xff]
      %v4237 = vld [vmem:[#allocation2 + $0xe0] sm:$0xff]
      %v4238 = vld [vmem:[#allocation2 + $0xe8] sm:$0xff]
      %v4239 = vld [vmem:[#allocation2 + $0xf0] sm:$0xff]
      %v4240 = vld [vmem:[#allocation2 + $0xf8] sm:$0x3f]
      %v4273 = vrot.slane %v3764, 2
      %v4274 = vrot.slane %v3767, 2
      %v4275 = vsel %vm1454, %v4273, %v4274
      %v4276 = vrot.slane %v3772, 2
      %v4277 = vsel %vm1454, %v4274, %v4276
      %v4278 = vrot.slane %v3775, 2
      %v4279 = vsel %vm1454, %v4276, %v4278
      %v4280 = vrot.slane %v3780, 2
      %v4281 = vsel %vm1454, %v4278, %v4280
      %v4282 = vrot.slane %v3783, 2
      %v4283 = vsel %vm1454, %v4280, %v4282
      %v4284 = vrot.slane %v3788, 2
      %v4285 = vsel %vm1454, %v4282, %v4284
      %v4286 = vrot.slane %v3791, 2
      %v4287 = vsel %vm1454, %v4284, %v4286
      %v4288 = vrot.slane %v3796, 2
      %v4289 = vsel %vm1454, %v4286, %v4288
      %v4290 = vrot.slane %v3799, 2
      %v4291 = vsel %vm1454, %v4288, %v4290
      %v4292 = vrot.slane %v3804, 2
      %v4293 = vsel %vm1454, %v4290, %v4292
      %v4294 = vrot.slane %v3807, 2
      %v4295 = vsel %vm1454, %v4292, %v4294
      %v4296 = vrot.slane %v3812, 2
      %v4297 = vsel %vm1454, %v4294, %v4296
      %v4298 = vrot.slane %v3815, 2
      %v4299 = vsel %vm1454, %v4296, %v4298
      %v4300 = vrot.slane %v3820, 2
      %v4301 = vsel %vm1454, %v4298, %v4300
      %v4302 = vrot.slane %v3823, 2
      %v4303 = vsel %vm1454, %v4300, %v4302
      %v4304 = vrot.slane %v3828, 2
      %v4305 = vsel %vm1454, %v4302, %v4304
      %v4306 = vrot.slane %v3831, 2
      %v4307 = vsel %vm1454, %v4304, %v4306
      %v4308 = vrot.slane %v3836, 2
      %v4309 = vsel %vm1454, %v4306, %v4308
      %v4310 = vrot.slane %v3839, 2
      %v4311 = vsel %vm1454, %v4308, %v4310
      %v4312 = vrot.slane %v3844, 2
      %v4313 = vsel %vm1454, %v4310, %v4312
      %v4314 = vrot.slane %v3847, 2
      %v4315 = vsel %vm1454, %v4312, %v4314
      %v4316 = vrot.slane %v3852, 2
      %v4317 = vsel %vm1454, %v4314, %v4316
      %v4318 = vrot.slane %v3855, 2
      %v4319 = vsel %vm1454, %v4316, %v4318
      %v4320 = vrot.slane %v3860, 2
      %v4321 = vsel %vm1454, %v4318, %v4320
      %v4322 = vrot.slane %v3863, 2
      %v4323 = vsel %vm1454, %v4320, %v4322
      %v4324 = vrot.slane %v3868, 2
      %v4325 = vsel %vm1454, %v4322, %v4324
      %v4326 = vrot.slane %v3871, 2
      %v4327 = vsel %vm1454, %v4324, %v4326
      %v4328 = vrot.slane %v3876, 2
      %v4329 = vsel %vm1454, %v4326, %v4328
      %v4330 = vrot.slane %v3879, 2
      %v4331 = vsel %vm1454, %v4328, %v4330
      %v4332 = vrot.slane %v3884, 2
      %v4333 = vsel %vm1454, %v4330, %v4332
      %v4334 = vrot.slane %v3887, 2
      %v4335 = vsel %vm1454, %v4332, %v4334
      %v4368 = vadd.f32 %v4209, %v4275
      %v4369 = vadd.f32 %v4210, %v4277
      %v4370 = vadd.f32 %v4211, %v4279
      %v4371 = vadd.f32 %v4212, %v4281
      %v4372 = vadd.f32 %v4213, %v4283
      %v4373 = vadd.f32 %v4214, %v4285
      %v4374 = vadd.f32 %v4215, %v4287
      %v4375 = vadd.f32 %v4216, %v4289
      %v4376 = vadd.f32 %v4217, %v4291
      %v4377 = vadd.f32 %v4218, %v4293
      %v4378 = vadd.f32 %v4219, %v4295
      %v4379 = vadd.f32 %v4220, %v4297
      %v4380 = vadd.f32 %v4221, %v4299
      %v4381 = vadd.f32 %v4222, %v4301
      %v4382 = vadd.f32 %v4223, %v4303
      %v4383 = vadd.f32 %v4224, %v4305
      %v4384 = vadd.f32 %v4225, %v4307
      %v4385 = vadd.f32 %v4226, %v4309
      %v4386 = vadd.f32 %v4227, %v4311
      %v4387 = vadd.f32 %v4228, %v4313
      %v4388 = vadd.f32 %v4229, %v4315
      %v4389 = vadd.f32 %v4230, %v4317
      %v4390 = vadd.f32 %v4231, %v4319
      %v4391 = vadd.f32 %v4232, %v4321
      %v4392 = vadd.f32 %v4233, %v4323
      %v4393 = vadd.f32 %v4234, %v4325
      %v4394 = vadd.f32 %v4235, %v4327
      %v4395 = vadd.f32 %v4236, %v4329
      %v4396 = vadd.f32 %v4237, %v4331
      %v4397 = vadd.f32 %v4238, %v4333
      %v4398 = vadd.f32 %v4239, %v4335
      %v4399 = vadd.f32 %v4240, %v4334
      %4400 = vst [vmem:[#allocation2] sm:$0xff] %v4368
      %4401 = vst [vmem:[#allocation2 + $0x8] sm:$0xff] %v4369
      %4402 = vst [vmem:[#allocation2 + $0x10] sm:$0xff] %v4370
      %4403 = vst [vmem:[#allocation2 + $0x18] sm:$0xff] %v4371
      %4404 = vst [vmem:[#allocation2 + $0x20] sm:$0xff] %v4372
      %4405 = vst [vmem:[#allocation2 + $0x28] sm:$0xff] %v4373
      %4406 = vst [vmem:[#allocation2 + $0x30] sm:$0xff] %v4374
      %4407 = vst [vmem:[#allocation2 + $0x38] sm:$0xff] %v4375
      %4408 = vst [vmem:[#allocation2 + $0x40] sm:$0xff] %v4376
      %4409 = vst [vmem:[#allocation2 + $0x48] sm:$0xff] %v4377
      %4410 = vst [vmem:[#allocation2 + $0x50] sm:$0xff] %v4378
      %4411 = vst [vmem:[#allocation2 + $0x58] sm:$0xff] %v4379
      %4412 = vst [vmem:[#allocation2 + $0x60] sm:$0xff] %v4380
      %4413 = vst [vmem:[#allocation2 + $0x68] sm:$0xff] %v4381
      %4414 = vst [vmem:[#allocation2 + $0x70] sm:$0xff] %v4382
      %4415 = vst [vmem:[#allocation2 + $0x78] sm:$0xff] %v4383
      %4416 = vst [vmem:[#allocation2 + $0x80] sm:$0xff] %v4384
      %4417 = vst [vmem:[#allocation2 + $0x88] sm:$0xff] %v4385
      %4418 = vst [vmem:[#allocation2 + $0x90] sm:$0xff] %v4386
      %4419 = vst [vmem:[#allocation2 + $0x98] sm:$0xff] %v4387
      %4420 = vst [vmem:[#allocation2 + $0xa0] sm:$0xff] %v4388
      %4421 = vst [vmem:[#allocation2 + $0xa8] sm:$0xff] %v4389
      %4422 = vst [vmem:[#allocation2 + $0xb0] sm:$0xff] %v4390
      %4423 = vst [vmem:[#allocation2 + $0xb8] sm:$0xff] %v4391
      %4424 = vst [vmem:[#allocation2 + $0xc0] sm:$0xff] %v4392
      %4425 = vst [vmem:[#allocation2 + $0xc8] sm:$0xff] %v4393
      %4426 = vst [vmem:[#allocation2 + $0xd0] sm:$0xff] %v4394
      %4427 = vst [vmem:[#allocation2 + $0xd8] sm:$0xff] %v4395
      %4428 = vst [vmem:[#allocation2 + $0xe0] sm:$0xff] %v4396
      %4429 = vst [vmem:[#allocation2 + $0xe8] sm:$0xff] %v4397
      %4430 = vst [vmem:[#allocation2 + $0xf0] sm:$0xff] %v4398
      %4431 = vst [vmem:[#allocation2 + $0xf8] sm:$0x3f] %v4399
      %v4432 = vld [vmem:[#allocation2] sm:$0xff]
      %v4433 = vld [vmem:[#allocation2 + $0x8] sm:$0xff]
      %v4434 = vld [vmem:[#allocation2 + $0x10] sm:$0xff]
      %v4435 = vld [vmem:[#allocation2 + $0x18] sm:$0xff]
      %v4436 = vld [vmem:[#allocation2 + $0x20] sm:$0xff]
      %v4437 = vld [vmem:[#allocation2 + $0x28] sm:$0xff]
      %v4438 = vld [vmem:[#allocation2 + $0x30] sm:$0xff]
      %v4439 = vld [vmem:[#allocation2 + $0x38] sm:$0xff]
      %v4440 = vld [vmem:[#allocation2 + $0x40] sm:$0xff]
      %v4441 = vld [vmem:[#allocation2 + $0x48] sm:$0xff]
      %v4442 = vld [vmem:[#allocation2 + $0x50] sm:$0xff]
      %v4443 = vld [vmem:[#allocation2 + $0x58] sm:$0xff]
      %v4444 = vld [vmem:[#allocation2 + $0x60] sm:$0xff]
      %v4445 = vld [vmem:[#allocation2 + $0x68] sm:$0xff]
      %v4446 = vld [vmem:[#allocation2 + $0x70] sm:$0xff]
      %v4447 = vld [vmem:[#allocation2 + $0x78] sm:$0xff]
      %v4448 = vld [vmem:[#allocation2 + $0x80] sm:$0xff]
      %v4449 = vld [vmem:[#allocation2 + $0x88] sm:$0xff]
      %v4450 = vld [vmem:[#allocation2 + $0x90] sm:$0xff]
      %v4451 = vld [vmem:[#allocation2 + $0x98] sm:$0xff]
      %v4452 = vld [vmem:[#allocation2 + $0xa0] sm:$0xff]
      %v4453 = vld [vmem:[#allocation2 + $0xa8] sm:$0xff]
      %v4454 = vld [vmem:[#allocation2 + $0xb0] sm:$0xff]
      %v4455 = vld [vmem:[#allocation2 + $0xb8] sm:$0xff]
      %v4456 = vld [vmem:[#allocation2 + $0xc0] sm:$0xff]
      %v4457 = vld [vmem:[#allocation2 + $0xc8] sm:$0xff]
      %v4458 = vld [vmem:[#allocation2 + $0xd0] sm:$0xff]
      %v4459 = vld [vmem:[#allocation2 + $0xd8] sm:$0xff]
      %v4460 = vld [vmem:[#allocation2 + $0xe0] sm:$0xff]
      %v4461 = vld [vmem:[#allocation2 + $0xe8] sm:$0xff]
      %v4462 = vld [vmem:[#allocation2 + $0xf0] sm:$0xff]
      %v4463 = vld [vmem:[#allocation2 + $0xf8] sm:$0xff]
      %v4464 = vld [vmem:[%s2] sm:$0x1]
      %v4466 = vlaneseq
      %v4467 = vshrl.u32 %v4466, 7
      %v4468 = vsub.s32 0, %v4467
      %v4469 = vrot.slane %v4464, %v4468
      %v4471 = vadd.f32 %v4432, %v4469
      %v4472 = vadd.f32 %v4433, %v4469
      %v4473 = vadd.f32 %v4434, %v4469
      %v4474 = vadd.f32 %v4435, %v4469
      %v4475 = vadd.f32 %v4436, %v4469
      %v4476 = vadd.f32 %v4437, %v4469
      %v4477 = vadd.f32 %v4438, %v4469
      %v4478 = vadd.f32 %v4439, %v4469
      %v4479 = vadd.f32 %v4440, %v4469
      %v4480 = vadd.f32 %v4441, %v4469
      %v4481 = vadd.f32 %v4442, %v4469
      %v4482 = vadd.f32 %v4443, %v4469
      %v4483 = vadd.f32 %v4444, %v4469
      %v4484 = vadd.f32 %v4445, %v4469
      %v4485 = vadd.f32 %v4446, %v4469
      %v4486 = vadd.f32 %v4447, %v4469
      %v4487 = vadd.f32 %v4448, %v4469
      %v4488 = vadd.f32 %v4449, %v4469
      %v4489 = vadd.f32 %v4450, %v4469
      %v4490 = vadd.f32 %v4451, %v4469
      %v4491 = vadd.f32 %v4452, %v4469
      %v4492 = vadd.f32 %v4453, %v4469
      %v4493 = vadd.f32 %v4454, %v4469
      %v4494 = vadd.f32 %v4455, %v4469
      %v4495 = vadd.f32 %v4456, %v4469
      %v4496 = vadd.f32 %v4457, %v4469
      %v4497 = vadd.f32 %v4458, %v4469
      %v4498 = vadd.f32 %v4459, %v4469
      %v4499 = vadd.f32 %v4460, %v4469
      %v4500 = vadd.f32 %v4461, %v4469
      %v4501 = vadd.f32 %v4462, %v4469
      %v4502 = vadd.f32 %v4463, %v4469
      %v4503 = vlaneseq
      %v4504 = vand.u32 %v4503, 127
      %vm4505 = vcmp.lt.s32.totalorder %v4504, 64
      %v4506 = vmax.f32 %v4471, 0.0
      %v4507 = vmax.f32 %v4472, 0.0
      %v4508 = vmax.f32 %v4473, 0.0
      %v4509 = vmax.f32 %v4474, 0.0
      %v4510 = vmax.f32 %v4475, 0.0
      %v4511 = vmax.f32 %v4476, 0.0
      %v4512 = vmax.f32 %v4477, 0.0
      %v4513 = vmax.f32 %v4478, 0.0
      %v4514 = vmax.f32 %v4479, 0.0
      %v4515 = vmax.f32 %v4480, 0.0
      %v4516 = vmax.f32 %v4481, 0.0
      %v4517 = vmax.f32 %v4482, 0.0
      %v4518 = vmax.f32 %v4483, 0.0
      %v4519 = vmax.f32 %v4484, 0.0
      %v4520 = vmax.f32 %v4485, 0.0
      %v4521 = vmax.f32 %v4486, 0.0
      %v4522 = vmax.f32 %v4487, 0.0
      %v4523 = vmax.f32 %v4488, 0.0
      %v4524 = vmax.f32 %v4489, 0.0
      %v4525 = vmax.f32 %v4490, 0.0
      %v4526 = vmax.f32 %v4491, 0.0
      %v4527 = vmax.f32 %v4492, 0.0
      %v4528 = vmax.f32 %v4493, 0.0
      %v4529 = vmax.f32 %v4494, 0.0
      %v4530 = vmax.f32 %v4495, 0.0
      %v4531 = vmax.f32 %v4496, 0.0
      %v4532 = vmax.f32 %v4497, 0.0
      %v4533 = vmax.f32 %v4498, 0.0
      %v4534 = vmax.f32 %v4499, 0.0
      %v4535 = vmax.f32 %v4500, 0.0
      %v4536 = vmax.f32 %v4501, 0.0
      %v4537 = vmax.f32 %v4502, 0.0
      %v4538 = vsel %vm4505, %v4506, %v4471
      %v4539 = vsel %vm4505, %v4507, %v4472
      %v4540 = vsel %vm4505, %v4508, %v4473
      %v4541 = vsel %vm4505, %v4509, %v4474
      %v4542 = vsel %vm4505, %v4510, %v4475
      %v4543 = vsel %vm4505, %v4511, %v4476
      %v4544 = vsel %vm4505, %v4512, %v4477
      %v4545 = vsel %vm4505, %v4513, %v4478
      %v4546 = vsel %vm4505, %v4514, %v4479
      %v4547 = vsel %vm4505, %v4515, %v4480
      %v4548 = vsel %vm4505, %v4516, %v4481
      %v4549 = vsel %vm4505, %v4517, %v4482
      %v4550 = vsel %vm4505, %v4518, %v4483
      %v4551 = vsel %vm4505, %v4519, %v4484
      %v4552 = vsel %vm4505, %v4520, %v4485
      %v4553 = vsel %vm4505, %v4521, %v4486
      %v4554 = vsel %vm4505, %v4522, %v4487
      %v4555 = vsel %vm4505, %v4523, %v4488
      %v4556 = vsel %vm4505, %v4524, %v4489
      %v4557 = vsel %vm4505, %v4525, %v4490
      %v4558 = vsel %vm4505, %v4526, %v4491
      %v4559 = vsel %vm4505, %v4527, %v4492
      %v4560 = vsel %vm4505, %v4528, %v4493
      %v4561 = vsel %vm4505, %v4529, %v4494
      %v4562 = vsel %vm4505, %v4530, %v4495
      %v4563 = vsel %vm4505, %v4531, %v4496
      %v4564 = vsel %vm4505, %v4532, %v4497
      %v4565 = vsel %vm4505, %v4533, %v4498
      %v4566 = vsel %vm4505, %v4534, %v4499
      %v4567 = vsel %vm4505, %v4535, %v4500
      %v4568 = vsel %vm4505, %v4536, %v4501
      %v4569 = vsel %vm4505, %v4537, %v4502
      %v4570 = vpack.c.bf16 %v4539, %v4538
      %v4571 = vpack.c.bf16 %v4541, %v4540
      %v4572 = vpack.c.bf16 %v4543, %v4542
      %v4573 = vpack.c.bf16 %v4545, %v4544
      %v4574 = vpack.c.bf16 %v4547, %v4546
      %v4575 = vpack.c.bf16 %v4549, %v4548
      %v4576 = vpack.c.bf16 %v4551, %v4550
      %v4577 = vpack.c.bf16 %v4553, %v4552
      %v4578 = vpack.c.bf16 %v4555, %v4554
      %v4579 = vpack.c.bf16 %v4557, %v4556
      %v4580 = vpack.c.bf16 %v4559, %v4558
      %v4581 = vpack.c.bf16 %v4561, %v4560
      %v4582 = vpack.c.bf16 %v4563, %v4562
      %v4583 = vpack.c.bf16 %v4565, %v4564
      %v4584 = vpack.c.bf16 %v4567, %v4566
      %v4585 = vpack.c.bf16 %v4569, %v4568
      %v4602 = vunpack.c.l.b16 %v4570
      %v4603 = vunpack.c.h.b16 %v4570
      %v4604 = vunpack.c.l.b16 %v4571
      %v4605 = vunpack.c.h.b16 %v4571
      %v4606 = vunpack.c.l.b16 %v4572
      %v4607 = vunpack.c.h.b16 %v4572
      %v4608 = vunpack.c.l.b16 %v4573
      %v4609 = vunpack.c.h.b16 %v4573
      %v4610 = vunpack.c.l.b16 %v4574
      %v4611 = vunpack.c.h.b16 %v4574
      %v4612 = vunpack.c.l.b16 %v4575
      %v4613 = vunpack.c.h.b16 %v4575
      %v4614 = vunpack.c.l.b16 %v4576
      %v4615 = vunpack.c.h.b16 %v4576
      %v4616 = vunpack.c.l.b16 %v4577
      %v4617 = vunpack.c.h.b16 %v4577
      %v4618 = vunpack.c.l.b16 %v4578
      %v4619 = vunpack.c.h.b16 %v4578
      %v4620 = vunpack.c.l.b16 %v4579
      %v4621 = vunpack.c.h.b16 %v4579
      %v4622 = vunpack.c.l.b16 %v4580
      %v4623 = vunpack.c.h.b16 %v4580
      %v4624 = vunpack.c.l.b16 %v4581
      %v4625 = vunpack.c.h.b16 %v4581
      %v4626 = vunpack.c.l.b16 %v4582
      %v4627 = vunpack.c.h.b16 %v4582
      %v4628 = vunpack.c.l.b16 %v4583
      %v4629 = vunpack.c.h.b16 %v4583
      %v4630 = vunpack.c.l.b16 %v4584
      %v4631 = vunpack.c.h.b16 %v4584
      %v4632 = vunpack.c.l.b16 %v4585
      %v4633 = vunpack.c.h.b16 %v4585
      %v4634 = vpack.c.b16 %v4602, %v4602
      %v4635 = vpack.c.b16 %v4603, %v4603
      %v4636 = vpack.c.b16 %v4604, %v4604
      %v4637 = vpack.c.b16 %v4605, %v4605
      %v4638 = vpack.c.b16 %v4606, %v4606
      %v4639 = vpack.c.b16 %v4607, %v4607
      %v4640 = vpack.c.b16 %v4608, %v4608
      %v4641 = vpack.c.b16 %v4609, %v4609
      %v4642 = vpack.c.b16 %v4610, %v4610
      %v4643 = vpack.c.b16 %v4611, %v4611
      %v4644 = vpack.c.b16 %v4612, %v4612
      %v4645 = vpack.c.b16 %v4613, %v4613
      %v4646 = vpack.c.b16 %v4614, %v4614
      %v4647 = vpack.c.b16 %v4615, %v4615
      %v4648 = vpack.c.b16 %v4616, %v4616
      %v4649 = vpack.c.b16 %v4617, %v4617
      %v4650 = vpack.c.b16 %v4618, %v4618
      %v4651 = vpack.c.b16 %v4619, %v4619
      %v4652 = vpack.c.b16 %v4620, %v4620
      %v4653 = vpack.c.b16 %v4621, %v4621
      %v4654 = vpack.c.b16 %v4622, %v4622
      %v4655 = vpack.c.b16 %v4623, %v4623
      %v4656 = vpack.c.b16 %v4624, %v4624
      %v4657 = vpack.c.b16 %v4625, %v4625
      %v4658 = vpack.c.b16 %v4626, %v4626
      %v4659 = vpack.c.b16 %v4627, %v4627
      %v4660 = vpack.c.b16 %v4628, %v4628
      %v4661 = vpack.c.b16 %v4629, %v4629
      %v4662 = vpack.c.b16 %v4630, %v4630
      %v4663 = vpack.c.b16 %v4631, %v4631
      %v4664 = vpack.c.b16 %v4632, %v4632
      %v4665 = vpack.c.b16 %v4633, %v4633
      %4698 = vst [vmem:[%s170] sm:$0xf] %v4634
      %4699 = vst [vmem:[%s170 + $0x4] sm:$0xf] %v4635
      %4700 = vst [vmem:[%s170 + $0x8] sm:$0xf] %v4636
      %4701 = vst [vmem:[%s170 + $0xc] sm:$0xf] %v4637
      %4702 = vst [vmem:[%s170 + $0x10] sm:$0xf] %v4638
      %4703 = vst [vmem:[%s170 + $0x14] sm:$0xf] %v4639
      %4704 = vst [vmem:[%s170 + $0x18] sm:$0xf] %v4640
      %4705 = vst [vmem:[%s170 + $0x1c] sm:$0xf] %v4641
      %4706 = vst [vmem:[%s170 + $0x20] sm:$0xf] %v4642
      %4707 = vst [vmem:[%s170 + $0x24] sm:$0xf] %v4643
      %4708 = vst [vmem:[%s170 + $0x28] sm:$0xf] %v4644
      %4709 = vst [vmem:[%s170 + $0x2c] sm:$0xf] %v4645
      %4710 = vst [vmem:[%s170 + $0x30] sm:$0xf] %v4646
      %4711 = vst [vmem:[%s170 + $0x34] sm:$0xf] %v4647
      %4712 = vst [vmem:[%s170 + $0x38] sm:$0xf] %v4648
      %4713 = vst [vmem:[%s170 + $0x3c] sm:$0xf] %v4649
      %4714 = vst [vmem:[%s170 + $0x40] sm:$0xf] %v4650
      %4715 = vst [vmem:[%s170 + $0x44] sm:$0xf] %v4651
      %4716 = vst [vmem:[%s170 + $0x48] sm:$0xf] %v4652
      %4717 = vst [vmem:[%s170 + $0x4c] sm:$0xf] %v4653
      %4718 = vst [vmem:[%s170 + $0x50] sm:$0xf] %v4654
      %4719 = vst [vmem:[%s170 + $0x54] sm:$0xf] %v4655
      %4720 = vst [vmem:[%s170 + $0x58] sm:$0xf] %v4656
      %4721 = vst [vmem:[%s170 + $0x5c] sm:$0xf] %v4657
      %4722 = vst [vmem:[%s170 + $0x60] sm:$0xf] %v4658
      %4723 = vst [vmem:[%s170 + $0x64] sm:$0xf] %v4659
      %4724 = vst [vmem:[%s170 + $0x68] sm:$0xf] %v4660
      %4725 = vst [vmem:[%s170 + $0x6c] sm:$0xf] %v4661
      %4726 = vst [vmem:[%s170 + $0x70] sm:$0xf] %v4662
      %4727 = vst [vmem:[%s170 + $0x74] sm:$0xf] %v4663
      %4728 = vst [vmem:[%s170 + $0x78] sm:$0xf] %v4664
      %4729 = vst [vmem:[%s170 + $0x7c] sm:$0xf] %v4665
      %p4730 = scmp.lt.s32.totalorder %s14, 3
      %s4731 = scalar_select %p4730, %s14, 3
      %s4732 = smul.addr %s4731, 32
      %s4733 = smul.addr %s4732, 4
      %s4734 = scalar_lea.vmem %s3, %s4733
      // Predicated region
      $region33: #{pre_attention_forward.1} parent=31 // pred_check
        %p4735 = pneg %p100
      $region34: #{pre_attention_forward.1} parent=31 // pred_check_branch
        %4737 = sbr.rel (%p4735) target = $region36
      $region35: #{pre_attention_forward.1} parent=31 // pred_region
        _
      $region36: #{pre_attention_forward.1} parent=31 // pred_fallthru
        _
    $region32: #{pre_attention_forward.1} parent=5 // pred_fallthru
      _
    %p4738 = scmp.le.s32.totalorder 2, %s9
    // Predicated region
    $region37: #{pre_attention_forward.1} parent=5 // pred_check
      %p4739 = pneg %p4738
    $region38: #{pre_attention_forward.1} parent=5 // pred_check_branch
      %4741 = sbr.rel (%p4739) target = $region40
    $region39: #{pre_attention_forward.1} parent=5 // pred_region
      %s4742 = ssub.s32 %s9, 2
      // Predicated region
      $region41: #{pre_attention_forward.1} parent=39 // pred_check
        %p4743 = pneg %p106
      $region42: #{pre_attention_forward.1} parent=39 // pred_check_branch
        %4745 = sbr.rel (%p4743) target = $region44
      $region43: #{pre_attention_forward.1} parent=39 // pred_region
        %p4746 = scmp.lt.s32.totalorder %s15, 3
        %s4747 = scalar_select %p4746, %s15, 3
        %s4748 = smul.addr %s4747, 32
        %s4749 = smul.addr %s4748, 4
        %s4750 = scalar_lea.vmem %s3, %s4749
      $region44: #{pre_attention_forward.1} parent=39 // pred_fallthru
        _
    $region40: #{pre_attention_forward.1} parent=5 // pred_fallthru
      _
  $region6: #{pre_attention_forward.1} parent=0 // loop_footer
    %s13 = sadd.s32 1, %s9
  $region7: #{pre_attention_forward.1} parent=0 // loop_footer_branch
    %8 = sbr.rel target = $region3
  $region8: #{pre_attention_forward.1} parent=0 // loop_exit
    _

</llo_original>
